<compile_context>
chip_gen: v6e
topology: v6e:2x2x1
jax: 0.10.0
libtpu: 0.0.40
codegen_flags: <defaults>
</compile_context>

<pallas_src>
import functools

import jax
import jax.numpy as jnp
from jax.experimental import pallas as pl
from jax.experimental.pallas import tpu as pltpu

LANE = 128


def _round_up(n, m):
    return ((n + m - 1) // m) * m


def _choose_tile_m(M, tile_m):
    """Pick an M tile that is (8-multiple or full-dim) and gives >=2 grid
    steps when M allows, so both v7x TensorCores get work."""
    if tile_m >= M:
        if M < 16:
            return M                                  # single full block
        return _round_up(pl.cdiv(M, 2), 8)            # split in two
    return _round_up(min(tile_m, M), 8)


# ----------------------------------------------------------------------------
# Pallas kernels
# ----------------------------------------------------------------------------
def _matmul_bias_act_kernel(a_ref, w_ref, b_ref, o_ref, *, relu: bool):
    """o = act(a @ w + b); a:(TM,K) bf16, w:(K,128) bf16, b:(1,128) f32."""
    acc = jnp.dot(a_ref[...], w_ref[...], preferred_element_type=jnp.float32)
    acc = acc + b_ref[...]
    if relu:
        acc = jnp.maximum(acc, 0.0)
    o_ref[...] = acc.astype(o_ref.dtype)


def _fc_fused_kernel(x_ref, w1_ref, b1_ref, w2_ref, b2_ref, w3_ref, b3_ref,
                     o_ref):
    """Fused fc1->relu->fc2->relu->fc3; intermediates never leave VMEM/vregs.

    Matmuls in bf16 with f32 accumulation; bias + ReLU epilogue in f32.
    """
    h = jnp.dot(x_ref[...], w1_ref[...], preferred_element_type=jnp.float32)
    h = jnp.maximum(h + b1_ref[...], 0.0)
    h = jnp.dot(h.astype(w2_ref.dtype), w2_ref[...],
                preferred_element_type=jnp.float32)
    h = jnp.maximum(h + b2_ref[...], 0.0)
    h = jnp.dot(h.astype(w3_ref.dtype), w3_ref[...],
                preferred_element_type=jnp.float32)
    o_ref[...] = (h + b3_ref[...]).astype(o_ref.dtype)


def _maxpool2x2_kernel(x_ref, o_ref):
    """2x2/stride-2 max-pool on dense tiles.

    x_ref block: (R, 2, OW, 2*C)  (dim1 = h-in-pair, last dim = [w0-ch | w1-ch])
    o_ref block: (R, OW, C)
    Leading-dim select for the H pair; 128-aligned lane slices for the W pair.
    """
    x = x_ref[...]
    m = jnp.maximum(x[:, 0], x[:, 1])                 # (R, OW, 2C)
    c = o_ref.shape[-1]
    o_ref[...] = jnp.maximum(m[..., :c], m[..., c:])  # (R, OW, C)


# ----------------------------------------------------------------------------
# pallas_call wrappers
# ----------------------------------------------------------------------------
def matmul_bias_act(a, w, b_row, *, relu, tile_m, out_dtype=jnp.bfloat16):
    """a:(M,K), w:(K,N), b_row:(1,N) -> (M,N); gridded over M rows."""
    M, K = a.shape
    Kw, N = w.shape
    assert K == Kw and N % LANE == 0
    tm = _choose_tile_m(M, tile_m)
    grid = (pl.cdiv(M, tm),)
    kernel = functools.partial(_matmul_bias_act_kernel, relu=relu)
    bytes_accessed = (a.size * a.dtype.itemsize + w.size * w.dtype.itemsize
                      + b_row.size * b_row.dtype.itemsize
                      + M * N * jnp.dtype(out_dtype).itemsize)
    cost = pl.CostEstimate(flops=2 * M * K * N, transcendentals=0,
                           bytes_accessed=int(bytes_accessed))
    return pl.pallas_call(
        kernel,
        out_shape=jax.ShapeDtypeStruct((M, N), out_dtype),
        grid_spec=pltpu.PrefetchScalarGridSpec(
            num_scalar_prefetch=0,
            grid=grid,
            in_specs=[
                pl.BlockSpec((tm, K), lambda i: (i, 0)),
                pl.BlockSpec((K, N), lambda i: (0, 0)),   # grid-invariant
                pl.BlockSpec((1, N), lambda i: (0, 0)),   # grid-invariant
            ],
            out_specs=pl.BlockSpec((tm, N), lambda i: (i, 0)),
        ),
        compiler_params=pltpu.CompilerParams(
            dimension_semantics=("parallel",)),
        cost_estimate=cost,
    )(a, w, b_row)


def fc_fused(x, w1, b1, w2, b2, w3, b3, *, tile_m=256):
    """Fused 3-layer MLP head. x:(B,K) bf16 -> (B,128) f32 logits (padded)."""
    M, K = x.shape
    N1, N2, N3 = w1.shape[1], w2.shape[1], w3.shape[1]
    tm = _choose_tile_m(M, tile_m)
    grid = (pl.cdiv(M, tm),)
    bytes_accessed = (x.size * x.dtype.itemsize
                      + sum(a.size * a.dtype.itemsize
                            for a in (w1, b1, w2, b2, w3, b3))
                      + M * N3 * 4)
    cost = pl.CostEstimate(
        flops=2 * M * (K * N1 + N1 * N2 + N2 * N3), transcendentals=0,
        bytes_accessed=int(bytes_accessed))
    return pl.pallas_call(
        _fc_fused_kernel,
        out_shape=jax.ShapeDtypeStruct((M, N3), jnp.float32),
        grid_spec=pltpu.PrefetchScalarGridSpec(
            num_scalar_prefetch=0,
            grid=grid,
            in_specs=[
                pl.BlockSpec((tm, K), lambda i: (i, 0)),
                pl.BlockSpec(w1.shape, lambda i: (0, 0)),
                pl.BlockSpec((1, N1), lambda i: (0, 0)),
                pl.BlockSpec(w2.shape, lambda i: (0, 0)),
                pl.BlockSpec((1, N2), lambda i: (0, 0)),
                pl.BlockSpec(w3.shape, lambda i: (0, 0)),
                pl.BlockSpec((1, N3), lambda i: (0, 0)),
            ],
            out_specs=pl.BlockSpec((tm, N3), lambda i: (i, 0)),
        ),
        compiler_params=pltpu.CompilerParams(
            dimension_semantics=("parallel",)),
        cost_estimate=cost,
    )(x, w1, b1, w2, b2, w3, b3)


def maxpool2x2_nhwc(x):
    """x:(B,H,W,C) NHWC, C lane-dense (multiple of 128) -> (B,H//2,W//2,C)."""
    B, H, W, C = x.shape
    OH, OW = H // 2, W // 2
    # Free contiguous reshape: (B,H,W,C) -> (B*OH, 2, OW, 2*C)
    #   dim1 = h-in-pair, last dim = [w-in-pair 0 channels | w-in-pair 1 ch].
    xr = x.reshape(B * OH, 2, OW, 2 * C)
    M0 = B * OH
    r = min(128, pl.cdiv(M0, 2)) if M0 >= 2 else M0   # >=2 grid steps
    out = pl.pallas_call(
        _maxpool2x2_kernel,
        out_shape=jax.ShapeDtypeStruct((M0, OW, C), x.dtype),
        grid_spec=pltpu.PrefetchScalarGridSpec(
            num_scalar_prefetch=0,
            grid=(pl.cdiv(M0, r),),
            in_specs=[pl.BlockSpec((r, 2, OW, 2 * C),
                                   lambda i: (i, 0, 0, 0))],
            out_specs=pl.BlockSpec((r, OW, C), lambda i: (i, 0, 0)),
        ),
        compiler_params=pltpu.CompilerParams(
            dimension_semantics=("parallel",)),
    )(xr)
    return out.reshape(B, OH, OW, C)


def conv_block(x_nhwc, w_mat, b_row, *, ksize=5, tile_m=1024):
    """Valid conv (stride 1) + bias + ReLU, NHWC in / NHWC (128-ch padded) out.

    x:(B,H,W,C) bf16 with C = REAL channel count; w_mat:(C*k*k, 128) bf16 with
    rows ordered (C, kh, kw); b_row:(1,128) f32.
    """
    B, H, W, C = x_nhwc.shape
    OH, OW = H - ksize + 1, W - ksize + 1
    # One fused XLA gather; feature order (C, kh, kw) matches w_mat rows.
    patches = jax.lax.conv_general_dilated_patches(
        x_nhwc, (ksize, ksize), (1, 1), "VALID",
        dimension_numbers=("NHWC", "HWIO", "NHWC"))      # (B,OH,OW,C*k*k) bf16
    K = C * ksize * ksize
    assert w_mat.shape[0] == K
    a = patches.reshape(B * OH * OW, K)                   # no K padding
    y = matmul_bias_act(a, w_mat, b_row, relu=True, tile_m=tile_m)
    return y.reshape(B, OH, OW, w_mat.shape[1])           # NHWC, 128 lanes


# ----------------------------------------------------------------------------
# Parameters: PyTorch-style init + one-time layout/padding prep
# ----------------------------------------------------------------------------
def init_params(key, input_dim=1200, hidden_dims=(120, 84), output_dim=10):
    """PyTorch-default-like init (uniform(-1/sqrt(fan_in), +1/sqrt(fan_in)))."""
    keys = jax.random.split(key, 10)

    def u(k, shape, fan_in):
        bound = 1.0 / jnp.sqrt(fan_in)
        return jax.random.uniform(k, shape, jnp.float32, -bound, bound)

    p = {}
    p["conv1_w"] = u(keys[0], (18, 3, 5, 5), 3 * 5 * 5)
    p["conv1_b"] = u(keys[1], (18,), 3 * 5 * 5)
    p["conv2_w"] = u(keys[2], (48, 18, 5, 5), 18 * 5 * 5)
    p["conv2_b"] = u(keys[3], (48,), 18 * 5 * 5)
    p["fc1_w"] = u(keys[4], (hidden_dims[0], input_dim), input_dim)
    p["fc1_b"] = u(keys[5], (hidden_dims[0],), input_dim)
    p["fc2_w"] = u(keys[6], (hidden_dims[1], hidden_dims[0]), hidden_dims[0])
    p["fc2_b"] = u(keys[7], (hidden_dims[1],), hidden_dims[0])
    p["fc3_w"] = u(keys[8], (output_dim, hidden_dims[1]), hidden_dims[1])
    p["fc3_b"] = u(keys[9], (output_dim,), hidden_dims[1])
    return p


def _pad_axis_to(x, axis, size):
    pad = [(0, 0)] * x.ndim
    pad[axis] = (0, size - x.shape[axis])
    return jnp.pad(x, pad)


def prepare_params(p, lane=LANE):
    """One-time: transpose to (K,N), pad N (output lanes) to 128, keep K at its
    REAL size, permute fc1 columns to the NHWC flatten order, cast to bf16."""
    bf16 = jnp.bfloat16
    out = {}
    # conv1: (18,3,5,5) -> (75,18) -> (75,128)
    oc1, c1, k, _ = p["conv1_w"].shape
    w1 = p["conv1_w"].reshape(oc1, c1 * k * k).T
    out["conv1_w"] = _pad_axis_to(w1, 1, lane).astype(bf16)
    out["conv1_b"] = _pad_axis_to(p["conv1_b"].reshape(1, oc1), 1, lane)

    # conv2: real 18 input channels -> (450,48) -> (450,128)
    oc2, c2, k2, _ = p["conv2_w"].shape
    w2 = p["conv2_w"].reshape(oc2, c2 * k2 * k2).T
    out["conv2_w"] = _pad_axis_to(w2, 1, lane).astype(bf16)
    out["conv2_b"] = _pad_axis_to(p["conv2_b"].reshape(1, oc2), 1, lane)

    # fc1: PyTorch columns are (c,h,w); our flatten is (h,w,c) over REAL c=48.
    h1, in1 = p["fc1_w"].shape
    sp = int(round((in1 // oc2) ** 0.5))                          # 5
    wf1 = p["fc1_w"].reshape(h1, oc2, sp, sp).transpose(2, 3, 1, 0)  # (5,5,48,120)
    wf1 = _pad_axis_to(wf1, 3, lane)                              # (5,5,48,128)
    out["fc1_w"] = wf1.reshape(sp * sp * oc2, lane).astype(bf16)  # (1200,128)
    out["fc1_b"] = _pad_axis_to(p["fc1_b"].reshape(1, h1), 1, lane)

    h2 = p["fc2_w"].shape[0]
    out["fc2_w"] = _pad_axis_to(_pad_axis_to(p["fc2_w"].T, 0, lane),
                                1, lane).astype(bf16)             # (128,128)
    out["fc2_b"] = _pad_axis_to(p["fc2_b"].reshape(1, h2), 1, lane)
    od = p["fc3_w"].shape[0]
    out["fc3_w"] = _pad_axis_to(_pad_axis_to(p["fc3_w"].T, 0, lane),
                                1, lane).astype(bf16)             # (128,128)
    out["fc3_b"] = _pad_axis_to(p["fc3_b"].reshape(1, od), 1, lane)
    return out


# ----------------------------------------------------------------------------
# Forward pass (mirrors SimpleCNN_3.forward)
# ----------------------------------------------------------------------------
def simple_cnn3_forward(x, prep, oc1=18, oc2=48, out_dim=10):
    # x: (B, 3, 32, 32) NCHW float32 -> NHWC bf16 once, NHWC end-to-end.
    x = jnp.transpose(x, (0, 2, 3, 1)).astype(jnp.bfloat16)          # (B,32,32,3)
    x = conv_block(x, prep["conv1_w"], prep["conv1_b"], tile_m=1024)  # (B,28,28,128)
    x = maxpool2x2_nhwc(x)                                            # (B,14,14,128)
    x = x[..., :oc1]                                                  # de-pad -> 18 ch
    x = conv_block(x, prep["conv2_w"], prep["conv2_b"], tile_m=256)   # (B,10,10,128)
    x = maxpool2x2_nhwc(x)                                            # (B,5,5,128)
    x = x[..., :oc2].reshape(x.shape[0], -1)                          # (B,1200) (h,w,c)
    y = fc_fused(x, prep["fc1_w"], prep["fc1_b"],
                 prep["fc2_w"], prep["fc2_b"],
                 prep["fc3_w"], prep["fc3_b"])                        # (B,128) f32
    return y[:, :out_dim]


# Pure-JAX f32 reference (no Pallas) for a numerical sanity check.
def _reference_forward(x, p):
    def conv(x, w, b):
        y = jax.lax.conv_general_dilated(
            x, w, window_strides=(1, 1), padding="VALID",
            dimension_numbers=("NCHW", "OIHW", "NCHW"),
            precision=jax.lax.Precision.HIGHEST,
        )
        return jnp.maximum(y + b[None, :, None, None], 0.0)

    def pool(x):
        B, C, H, W = x.shape
        return jnp.max(x.reshape(B, C, H // 2, 2, W // 2, 2), axis=(3, 5))

    x = pool(conv(x, p["conv1_w"], p["conv1_b"]))
    x = pool(conv(x, p["conv2_w"], p["conv2_b"]))
    x = x.reshape(-1, 1200)
    x = jnp.maximum(x @ p["fc1_w"].T + p["fc1_b"], 0.0)
    x = jnp.maximum(x @ p["fc2_w"].T + p["fc2_b"], 0.0)
    return x @ p["fc3_w"].T + p["fc3_b"]


if __name__ == "__main__":
    key = jax.random.PRNGKey(0)
    k_x, k_p = jax.random.split(key)

    # Spatial size 32x32 is forced by the flatten to 16*3*5*5 = 1200.
    B = 2
    x = jax.random.normal(k_x, (B, 3, 32, 32), jnp.float32)
    params = init_params(k_p, input_dim=1200, hidden_dims=(120, 84),
                         output_dim=10)
    prep = prepare_params(params)

    fwd = jax.jit(simple_cnn3_forward)
    out = jax.block_until_ready(fwd(x, prep))
    assert out.shape == (B, 10), out.shape

    ref = jax.block_until_ready(_reference_forward(x, params))
    max_err = float(jnp.max(jnp.abs(out - ref)))
    # bf16 streamed operands (f32 accumulation) vs an f32 reference.
    assert jnp.allclose(out, ref, rtol=2e-2, atol=2e-2), max_err

    print("KERNEL_OK")
</pallas_src>

<mosaic_0001>
module attributes {stable_mosaic.version = 11 : i64} {
  func.func @_matmul_bias_act_kernel(%arg0: i32, %arg1: memref<1024x75xbf16, #tpu.memory_space<vmem>>, %arg2: memref<75x128xbf16, #tpu.memory_space<vmem>>, %arg3: memref<1x128xf32, #tpu.memory_space<vmem>>, %arg4: memref<1024x128xbf16, #tpu.memory_space<vmem>>) attributes {dimension_semantics = [#tpu.dimension_semantics<parallel>], iteration_bounds = array<i64: 2>, scalar_prefetch = 0 : i64, scratch_operands = 0 : i64, tpu.core_type = #tpu.core_type<tc>, window_params = [{transform_indices = @transform_0, window_bounds = array<i64: 1024, 75>}, {pipeline_mode = #tpu.pipeline_mode<synchronous>, transform_indices = @transform_1, window_bounds = array<i64: 75, 128>}, {pipeline_mode = #tpu.pipeline_mode<synchronous>, transform_indices = @transform_2, window_bounds = array<i64: 1, 128>}, {transform_indices = @transform_3, window_bounds = array<i64: 1024, 128>}]} {
    %c0 = arith.constant 0 : index
    %c0_0 = arith.constant 0 : index
    %0 = vector.load %arg1[%c0, %c0_0] : memref<1024x75xbf16, #tpu.memory_space<vmem>>, vector<1024x75xbf16>
    %c0_1 = arith.constant 0 : index
    %c0_2 = arith.constant 0 : index
    %1 = vector.load %arg2[%c0_1, %c0_2] : memref<75x128xbf16, #tpu.memory_space<vmem>>, vector<75x128xbf16>
    %cst = arith.constant dense<0.000000e+00> : vector<1024x128xf32>
    %2 = tpu.matmul %0, %1, %cst {dimension_numbers = #tpu.dot_dimension_numbers<[1], [0], [0], [1], [0, 0, 1, 1], [], []>} : vector<1024x75xbf16>, vector<75x128xbf16>, vector<1024x128xf32> -> vector<1024x128xf32>
    %c0_3 = arith.constant 0 : index
    %c0_4 = arith.constant 0 : index
    %3 = vector.load %arg3[%c0_3, %c0_4] : memref<1x128xf32, #tpu.memory_space<vmem>>, vector<1x128xf32>
    %4 = vector.broadcast %3 : vector<1x128xf32> to vector<1024x128xf32>
    %5 = arith.addf %2, %4 : vector<1024x128xf32>
    %cst_5 = arith.constant 0.000000e+00 : f32
    %6 = vector.broadcast %cst_5 : f32 to vector<1024x128xf32>
    %7 = arith.maximumf %5, %6 : vector<1024x128xf32>
    %8 = arith.truncf %7 : vector<1024x128xf32> to vector<1024x128xbf16>
    %c0_6 = arith.constant 0 : index
    %c0_7 = arith.constant 0 : index
    %9 = vector.load %arg4[%c0_6, %c0_7] : memref<1024x128xbf16, #tpu.memory_space<vmem>>, vector<1024x128xbf16>
    tpu.vector_store %arg4[%c0_6, %c0_7], %8 {strides = array<i32>} : memref<1024x128xbf16, #tpu.memory_space<vmem>>, vector<1024x128xbf16>,
    return
  }
  func.func @transform_0(%arg0: i32) -> (i32, i32) {
    %c0_i32 = arith.constant 0 : i32
    %c0_i32_0 = arith.constant 0 : i32
    return %arg0, %c0_i32 : i32, i32
  }
  func.func @transform_1(%arg0: i32) -> (i32, i32) {
    %c0_i32 = arith.constant 0 : i32
    %c0_i32_0 = arith.constant 0 : i32
    %c0_i32_1 = arith.constant 0 : i32
    return %c0_i32, %c0_i32_0 : i32, i32
  }
  func.func @transform_2(%arg0: i32) -> (i32, i32) {
    %c0_i32 = arith.constant 0 : i32
    %c0_i32_0 = arith.constant 0 : i32
    %c0_i32_1 = arith.constant 0 : i32
    return %c0_i32, %c0_i32_0 : i32, i32
  }
  func.func @transform_3(%arg0: i32) -> (i32, i32) {
    %c0_i32 = arith.constant 0 : i32
    %c0_i32_0 = arith.constant 0 : i32
    return %arg0, %c0_i32 : i32, i32
  }
}

module attributes {stable_mosaic.version = 11 : i64} {
  func.func @_maxpool2x2_kernel(%arg0: i32, %arg1: memref<14x2x14x256xbf16, #tpu.memory_space<vmem>>, %arg2: memref<14x14x128xbf16, #tpu.memory_space<vmem>>) attributes {dimension_semantics = [#tpu.dimension_semantics<parallel>], iteration_bounds = array<i64: 2>, scalar_prefetch = 0 : i64, scratch_operands = 0 : i64, tpu.core_type = #tpu.core_type<tc>, window_params = [{transform_indices = @transform_0, window_bounds = array<i64: 14, 2, 14, 256>}, {transform_indices = @transform_1, window_bounds = array<i64: 14, 14, 128>}]} {
    %c0 = arith.constant 0 : index
    %c0_0 = arith.constant 0 : index
    %c0_1 = arith.constant 0 : index
    %c0_2 = arith.constant 0 : index
    %0 = vector.load %arg1[%c0, %c0_0, %c0_1, %c0_2] : memref<14x2x14x256xbf16, #tpu.memory_space<vmem>>, vector<14x2x14x256xbf16>
    %1 = vector.extract_strided_slice %0 {offsets = [0, 0, 0, 0], sizes = [14, 1, 14, 256], strides = [1, 1, 1, 1]} : vector<14x2x14x256xbf16> to vector<14x1x14x256xbf16>
    %2 = vector.shape_cast %1 : vector<14x1x14x256xbf16> to vector<14x14x256xbf16>
    %3 = vector.extract_strided_slice %0 {offsets = [0, 1, 0, 0], sizes = [14, 1, 14, 256], strides = [1, 1, 1, 1]} : vector<14x2x14x256xbf16> to vector<14x1x14x256xbf16>
    %4 = vector.shape_cast %3 : vector<14x1x14x256xbf16> to vector<14x14x256xbf16>
    %5 = arith.maximumf %2, %4 : vector<14x14x256xbf16>
    %6 = vector.extract_strided_slice %5 {offsets = [0, 0, 0], sizes = [14, 14, 128], strides = [1, 1, 1]} : vector<14x14x256xbf16> to vector<14x14x128xbf16>
    %7 = vector.extract_strided_slice %5 {offsets = [0, 0, 128], sizes = [14, 14, 128], strides = [1, 1, 1]} : vector<14x14x256xbf16> to vector<14x14x128xbf16>
    %8 = arith.maximumf %6, %7 : vector<14x14x128xbf16>
    %c0_3 = arith.constant 0 : index
    %c0_4 = arith.constant 0 : index
    %c0_5 = arith.constant 0 : index
    %9 = vector.load %arg2[%c0_3, %c0_4, %c0_5] : memref<14x14x128xbf16, #tpu.memory_space<vmem>>, vector<14x14x128xbf16>
    tpu.vector_store %arg2[%c0_3, %c0_4, %c0_5], %8 {strides = array<i32>} : memref<14x14x128xbf16, #tpu.memory_space<vmem>>, vector<14x14x128xbf16>,
    return
  }
  func.func @transform_0(%arg0: i32) -> (i32, i32, i32, i32) {
    %c0_i32 = arith.constant 0 : i32
    %c0_i32_0 = arith.constant 0 : i32
    %c0_i32_1 = arith.constant 0 : i32
    %c0_i32_2 = arith.constant 0 : i32
    return %arg0, %c0_i32, %c0_i32_0, %c0_i32_1 : i32, i32, i32, i32
  }
  func.func @transform_1(%arg0: i32) -> (i32, i32, i32) {
    %c0_i32 = arith.constant 0 : i32
    %c0_i32_0 = arith.constant 0 : i32
    %c0_i32_1 = arith.constant 0 : i32
    return %arg0, %c0_i32, %c0_i32_0 : i32, i32, i32
  }
}

module attributes {stable_mosaic.version = 11 : i64} {
  func.func @_matmul_bias_act_kernel(%arg0: i32, %arg1: memref<104x450xbf16, #tpu.memory_space<vmem>>, %arg2: memref<450x128xbf16, #tpu.memory_space<vmem>>, %arg3: memref<1x128xf32, #tpu.memory_space<vmem>>, %arg4: memref<104x128xbf16, #tpu.memory_space<vmem>>) attributes {dimension_semantics = [#tpu.dimension_semantics<parallel>], iteration_bounds = array<i64: 2>, scalar_prefetch = 0 : i64, scratch_operands = 0 : i64, tpu.core_type = #tpu.core_type<tc>, window_params = [{transform_indices = @transform_0, window_bounds = array<i64: 104, 450>}, {pipeline_mode = #tpu.pipeline_mode<synchronous>, transform_indices = @transform_1, window_bounds = array<i64: 450, 128>}, {pipeline_mode = #tpu.pipeline_mode<synchronous>, transform_indices = @transform_2, window_bounds = array<i64: 1, 128>}, {transform_indices = @transform_3, window_bounds = array<i64: 104, 128>}]} {
    %c0 = arith.constant 0 : index
    %c0_0 = arith.constant 0 : index
    %0 = vector.load %arg1[%c0, %c0_0] : memref<104x450xbf16, #tpu.memory_space<vmem>>, vector<104x450xbf16>
    %c0_1 = arith.constant 0 : index
    %c0_2 = arith.constant 0 : index
    %1 = vector.load %arg2[%c0_1, %c0_2] : memref<450x128xbf16, #tpu.memory_space<vmem>>, vector<450x128xbf16>
    %cst = arith.constant dense<0.000000e+00> : vector<104x128xf32>
    %2 = tpu.matmul %0, %1, %cst {dimension_numbers = #tpu.dot_dimension_numbers<[1], [0], [0], [1], [0, 0, 1, 1], [], []>} : vector<104x450xbf16>, vector<450x128xbf16>, vector<104x128xf32> -> vector<104x128xf32>
    %c0_3 = arith.constant 0 : index
    %c0_4 = arith.constant 0 : index
    %3 = vector.load %arg3[%c0_3, %c0_4] : memref<1x128xf32, #tpu.memory_space<vmem>>, vector<1x128xf32>
    %4 = vector.broadcast %3 : vector<1x128xf32> to vector<104x128xf32>
    %5 = arith.addf %2, %4 : vector<104x128xf32>
    %cst_5 = arith.constant 0.000000e+00 : f32
    %6 = vector.broadcast %cst_5 : f32 to vector<104x128xf32>
    %7 = arith.maximumf %5, %6 : vector<104x128xf32>
    %8 = arith.truncf %7 : vector<104x128xf32> to vector<104x128xbf16>
    %c0_6 = arith.constant 0 : index
    %c0_7 = arith.constant 0 : index
    %9 = vector.load %arg4[%c0_6, %c0_7] : memref<104x128xbf16, #tpu.memory_space<vmem>>, vector<104x128xbf16>
    tpu.vector_store %arg4[%c0_6, %c0_7], %8 {strides = array<i32>} : memref<104x128xbf16, #tpu.memory_space<vmem>>, vector<104x128xbf16>,
    return
  }
  func.func @transform_0(%arg0: i32) -> (i32, i32) {
    %c0_i32 = arith.constant 0 : i32
    %c0_i32_0 = arith.constant 0 : i32
    return %arg0, %c0_i32 : i32, i32
  }
  func.func @transform_1(%arg0: i32) -> (i32, i32) {
    %c0_i32 = arith.constant 0 : i32
    %c0_i32_0 = arith.constant 0 : i32
    %c0_i32_1 = arith.constant 0 : i32
    return %c0_i32, %c0_i32_0 : i32, i32
  }
  func.func @transform_2(%arg0: i32) -> (i32, i32) {
    %c0_i32 = arith.constant 0 : i32
    %c0_i32_0 = arith.constant 0 : i32
    %c0_i32_1 = arith.constant 0 : i32
    return %c0_i32, %c0_i32_0 : i32, i32
  }
  func.func @transform_3(%arg0: i32) -> (i32, i32) {
    %c0_i32 = arith.constant 0 : i32
    %c0_i32_0 = arith.constant 0 : i32
    return %arg0, %c0_i32 : i32, i32
  }
}

module attributes {stable_mosaic.version = 11 : i64} {
  func.func @_maxpool2x2_kernel(%arg0: i32, %arg1: memref<5x2x5x256xbf16, #tpu.memory_space<vmem>>, %arg2: memref<5x5x128xbf16, #tpu.memory_space<vmem>>) attributes {dimension_semantics = [#tpu.dimension_semantics<parallel>], iteration_bounds = array<i64: 2>, scalar_prefetch = 0 : i64, scratch_operands = 0 : i64, tpu.core_type = #tpu.core_type<tc>, window_params = [{transform_indices = @transform_0, window_bounds = array<i64: 5, 2, 5, 256>}, {transform_indices = @transform_1, window_bounds = array<i64: 5, 5, 128>}]} {
    %c0 = arith.constant 0 : index
    %c0_0 = arith.constant 0 : index
    %c0_1 = arith.constant 0 : index
    %c0_2 = arith.constant 0 : index
    %0 = vector.load %arg1[%c0, %c0_0, %c0_1, %c0_2] : memref<5x2x5x256xbf16, #tpu.memory_space<vmem>>, vector<5x2x5x256xbf16>
    %1 = vector.extract_strided_slice %0 {offsets = [0, 0, 0, 0], sizes = [5, 1, 5, 256], strides = [1, 1, 1, 1]} : vector<5x2x5x256xbf16> to vector<5x1x5x256xbf16>
    %2 = vector.shape_cast %1 : vector<5x1x5x256xbf16> to vector<5x5x256xbf16>
    %3 = vector.extract_strided_slice %0 {offsets = [0, 1, 0, 0], sizes = [5, 1, 5, 256], strides = [1, 1, 1, 1]} : vector<5x2x5x256xbf16> to vector<5x1x5x256xbf16>
    %4 = vector.shape_cast %3 : vector<5x1x5x256xbf16> to vector<5x5x256xbf16>
    %5 = arith.maximumf %2, %4 : vector<5x5x256xbf16>
    %6 = vector.extract_strided_slice %5 {offsets = [0, 0, 0], sizes = [5, 5, 128], strides = [1, 1, 1]} : vector<5x5x256xbf16> to vector<5x5x128xbf16>
    %7 = vector.extract_strided_slice %5 {offsets = [0, 0, 128], sizes = [5, 5, 128], strides = [1, 1, 1]} : vector<5x5x256xbf16> to vector<5x5x128xbf16>
    %8 = arith.maximumf %6, %7 : vector<5x5x128xbf16>
    %c0_3 = arith.constant 0 : index
    %c0_4 = arith.constant 0 : index
    %c0_5 = arith.constant 0 : index
    %9 = vector.load %arg2[%c0_3, %c0_4, %c0_5] : memref<5x5x128xbf16, #tpu.memory_space<vmem>>, vector<5x5x128xbf16>
    tpu.vector_store %arg2[%c0_3, %c0_4, %c0_5], %8 {strides = array<i32>} : memref<5x5x128xbf16, #tpu.memory_space<vmem>>, vector<5x5x128xbf16>,
    return
  }
  func.func @transform_0(%arg0: i32) -> (i32, i32, i32, i32) {
    %c0_i32 = arith.constant 0 : i32
    %c0_i32_0 = arith.constant 0 : i32
    %c0_i32_1 = arith.constant 0 : i32
    %c0_i32_2 = arith.constant 0 : i32
    return %arg0, %c0_i32, %c0_i32_0, %c0_i32_1 : i32, i32, i32, i32
  }
  func.func @transform_1(%arg0: i32) -> (i32, i32, i32) {
    %c0_i32 = arith.constant 0 : i32
    %c0_i32_0 = arith.constant 0 : i32
    %c0_i32_1 = arith.constant 0 : i32
    return %arg0, %c0_i32, %c0_i32_0 : i32, i32, i32
  }
}

module attributes {stable_mosaic.version = 11 : i64} {
  func.func @_fc_fused_kernel(%arg0: i32, %arg1: memref<2x1200xbf16, #tpu.memory_space<vmem>>, %arg2: memref<1200x128xbf16, #tpu.memory_space<vmem>>, %arg3: memref<1x128xf32, #tpu.memory_space<vmem>>, %arg4: memref<128x128xbf16, #tpu.memory_space<vmem>>, %arg5: memref<1x128xf32, #tpu.memory_space<vmem>>, %arg6: memref<128x128xbf16, #tpu.memory_space<vmem>>, %arg7: memref<1x128xf32, #tpu.memory_space<vmem>>, %arg8: memref<2x128xf32, #tpu.memory_space<vmem>>) attributes {dimension_semantics = [#tpu.dimension_semantics<parallel>], iteration_bounds = array<i64: 1>, scalar_prefetch = 0 : i64, scratch_operands = 0 : i64, tpu.core_type = #tpu.core_type<tc>, window_params = [{transform_indices = @transform_0, window_bounds = array<i64: 2, 1200>}, {pipeline_mode = #tpu.pipeline_mode<synchronous>, transform_indices = @transform_1, window_bounds = array<i64: 1200, 128>}, {pipeline_mode = #tpu.pipeline_mode<synchronous>, transform_indices = @transform_2, window_bounds = array<i64: 1, 128>}, {pipeline_mode = #tpu.pipeline_mode<synchronous>, transform_indices = @transform_3, window_bounds = array<i64: 128, 128>}, {pipeline_mode = #tpu.pipeline_mode<synchronous>, transform_indices = @transform_4, window_bounds = array<i64: 1, 128>}, {pipeline_mode = #tpu.pipeline_mode<synchronous>, transform_indices = @transform_5, window_bounds = array<i64: 128, 128>}, {pipeline_mode = #tpu.pipeline_mode<synchronous>, transform_indices = @transform_6, window_bounds = array<i64: 1, 128>}, {transform_indices = @transform_7, window_bounds = array<i64: 2, 128>}]} {
    %c0 = arith.constant 0 : index
    %c0_0 = arith.constant 0 : index
    %0 = vector.load %arg1[%c0, %c0_0] : memref<2x1200xbf16, #tpu.memory_space<vmem>>, vector<2x1200xbf16>
    %c0_1 = arith.constant 0 : index
    %c0_2 = arith.constant 0 : index
    %1 = vector.load %arg2[%c0_1, %c0_2] : memref<1200x128xbf16, #tpu.memory_space<vmem>>, vector<1200x128xbf16>
    %cst = arith.constant dense<0.000000e+00> : vector<2x128xf32>
    %2 = tpu.matmul %0, %1, %cst {dimension_numbers = #tpu.dot_dimension_numbers<[1], [0], [0], [1], [0, 0, 1, 1], [], []>} : vector<2x1200xbf16>, vector<1200x128xbf16>, vector<2x128xf32> -> vector<2x128xf32>
    %c0_3 = arith.constant 0 : index
    %c0_4 = arith.constant 0 : index
    %3 = vector.load %arg3[%c0_3, %c0_4] : memref<1x128xf32, #tpu.memory_space<vmem>>, vector<1x128xf32>
    %4 = vector.broadcast %3 : vector<1x128xf32> to vector<2x128xf32>
    %5 = arith.addf %2, %4 : vector<2x128xf32>
    %cst_5 = arith.constant 0.000000e+00 : f32
    %6 = vector.broadcast %cst_5 : f32 to vector<2x128xf32>
    %7 = arith.maximumf %5, %6 : vector<2x128xf32>
    %8 = arith.truncf %7 : vector<2x128xf32> to vector<2x128xbf16>
    %c0_6 = arith.constant 0 : index
    %c0_7 = arith.constant 0 : index
    %9 = vector.load %arg4[%c0_6, %c0_7] : memref<128x128xbf16, #tpu.memory_space<vmem>>, vector<128x128xbf16>
    %cst_8 = arith.constant dense<0.000000e+00> : vector<2x128xf32>
    %10 = tpu.matmul %8, %9, %cst_8 {dimension_numbers = #tpu.dot_dimension_numbers<[1], [0], [0], [1], [0, 0, 1, 1], [], []>} : vector<2x128xbf16>, vector<128x128xbf16>, vector<2x128xf32> -> vector<2x128xf32>
    %c0_9 = arith.constant 0 : index
    %c0_10 = arith.constant 0 : index
    %11 = vector.load %arg5[%c0_9, %c0_10] : memref<1x128xf32, #tpu.memory_space<vmem>>, vector<1x128xf32>
    %12 = vector.broadcast %11 : vector<1x128xf32> to vector<2x128xf32>
    %13 = arith.addf %10, %12 : vector<2x128xf32>
    %cst_11 = arith.constant 0.000000e+00 : f32
    %14 = vector.broadcast %cst_11 : f32 to vector<2x128xf32>
    %15 = arith.maximumf %13, %14 : vector<2x128xf32>
    %16 = arith.truncf %15 : vector<2x128xf32> to vector<2x128xbf16>
    %c0_12 = arith.constant 0 : index
    %c0_13 = arith.constant 0 : index
    %17 = vector.load %arg6[%c0_12, %c0_13] : memref<128x128xbf16, #tpu.memory_space<vmem>>, vector<128x128xbf16>
    %cst_14 = arith.constant dense<0.000000e+00> : vector<2x128xf32>
    %18 = tpu.matmul %16, %17, %cst_14 {dimension_numbers = #tpu.dot_dimension_numbers<[1], [0], [0], [1], [0, 0, 1, 1], [], []>} : vector<2x128xbf16>, vector<128x128xbf16>, vector<2x128xf32> -> vector<2x128xf32>
    %c0_15 = arith.constant 0 : index
    %c0_16 = arith.constant 0 : index
    %19 = vector.load %arg7[%c0_15, %c0_16] : memref<1x128xf32, #tpu.memory_space<vmem>>, vector<1x128xf32>
    %20 = vector.broadcast %19 : vector<1x128xf32> to vector<2x128xf32>
    %21 = arith.addf %18, %20 : vector<2x128xf32>
    %c0_17 = arith.constant 0 : index
    %c0_18 = arith.constant 0 : index
    %22 = vector.load %arg8[%c0_17, %c0_18] : memref<2x128xf32, #tpu.memory_space<vmem>>, vector<2x128xf32>
    tpu.vector_store %arg8[%c0_17, %c0_18], %21 {strides = array<i32>} : memref<2x128xf32, #tpu.memory_space<vmem>>, vector<2x128xf32>,
    return
  }
  func.func @transform_0(%arg0: i32) -> (i32, i32) {
    %c0_i32 = arith.constant 0 : i32
    %c0_i32_0 = arith.constant 0 : i32
    return %arg0, %c0_i32 : i32, i32
  }
  func.func @transform_1(%arg0: i32) -> (i32, i32) {
    %c0_i32 = arith.constant 0 : i32
    %c0_i32_0 = arith.constant 0 : i32
    %c0_i32_1 = arith.constant 0 : i32
    return %c0_i32, %c0_i32_0 : i32, i32
  }
  func.func @transform_2(%arg0: i32) -> (i32, i32) {
    %c0_i32 = arith.constant 0 : i32
    %c0_i32_0 = arith.constant 0 : i32
    %c0_i32_1 = arith.constant 0 : i32
    return %c0_i32, %c0_i32_0 : i32, i32
  }
  func.func @transform_3(%arg0: i32) -> (i32, i32) {
    %c0_i32 = arith.constant 0 : i32
    %c0_i32_0 = arith.constant 0 : i32
    %c0_i32_1 = arith.constant 0 : i32
    return %c0_i32, %c0_i32_0 : i32, i32
  }
  func.func @transform_4(%arg0: i32) -> (i32, i32) {
    %c0_i32 = arith.constant 0 : i32
    %c0_i32_0 = arith.constant 0 : i32
    %c0_i32_1 = arith.constant 0 : i32
    return %c0_i32, %c0_i32_0 : i32, i32
  }
  func.func @transform_5(%arg0: i32) -> (i32, i32) {
    %c0_i32 = arith.constant 0 : i32
    %c0_i32_0 = arith.constant 0 : i32
    %c0_i32_1 = arith.constant 0 : i32
    return %c0_i32, %c0_i32_0 : i32, i32
  }
  func.func @transform_6(%arg0: i32) -> (i32, i32) {
    %c0_i32 = arith.constant 0 : i32
    %c0_i32_0 = arith.constant 0 : i32
    %c0_i32_1 = arith.constant 0 : i32
    return %c0_i32, %c0_i32_0 : i32, i32
  }
  func.func @transform_7(%arg0: i32) -> (i32, i32) {
    %c0_i32 = arith.constant 0 : i32
    %c0_i32_0 = arith.constant 0 : i32
    return %arg0, %c0_i32 : i32, i32
  }
}

</mosaic_0001>

<llo_original>
// kernel: simple_cnn3_forward.6
$region0: #{simple_cnn3_forward.6}
  #allocation0 [shape = 'u32[]', space=smem, size = 0x4, offset = 0x4, fixed_abs, tag = 'smem constant byte address 0x4 - core index']
  #allocation1 [shape = 'u32[144,128]{1,0:T(1,128)}', space=vmem, size = 0x12000, scoped, tag = 'internal scratch']
  %s0 = inlined_call_operand.vmem [shape: bf16[28,2,14,256], index: 0, kind: input, shape index: {}]
  %s1 = inlined_call_operand.vmem [shape: bf16[28,14,128], index: 1, kind: output, shape index: {}]
  %s2 = sld [smem:[#allocation0]]
  $region37: #{simple_cnn3_forward.6} parent=0
    _
  %s4 = ssub.s32 1, %s2
  %s5 = scalar_select 0, %s4, %s2
  loop: start=0, step=1, limit=4
  $region2: #{simple_cnn3_forward.6} parent=0 // loop_pre_header
    _
  $region3: #{simple_cnn3_forward.6} parent=0 // loop_header
    %s7 = sphi 0, %s11
    %p8 = scmp.ge.s32.totalorder %s7, 4
    %s17 = sphi 0, %s19
    %s20 = sphi 0, %s17
    %s21 = sphi 0, %s20
    %s37 = sphi 0, %s21
    %s43 = sphi 0, %s45
    %s46 = sphi 0, %s43
    %s47 = sphi 0, %s46
    %s63 = sphi 0, %s47
  $region4: #{simple_cnn3_forward.6} parent=0 // loop_header_branch
    %10 = sbr.rel (%p8) target = $region8
  $region5: #{simple_cnn3_forward.6} parent=0 // loop_body
    %s12 = ssub.s32 %s7, 1
    %s13 = ssub.s32 %s7, 2
    %s14 = sadd.s32 %s7, 1
    %s15 = ssub.s32 %s7, %s14
    %p16 = scmp.eq.s32.totalorder %s15, 0
    %s18 = sadd.s32 %s17, 1
    %s19 = scalar_select %p16, %s17, %s18
    %p22 = pneg %p16
    %p23 = scmp.eq.s32.totalorder %s7, 1
    %p24 = por %p22, %p23
    %p25 = scmp.ne.s32.totalorder %s17, %s20
    %p26 = scmp.eq.s32.totalorder %s7, 0
    %p27 = por %p25, %p26
    %p28 = scmp.ne.s32.totalorder %s17, %s20
    %p29 = scmp.eq.s32.totalorder %s12, 1
    %p30 = por %p28, %p29
    %p31 = scmp.ne.s32.totalorder %s20, %s21
    %p32 = scmp.eq.s32.totalorder %s12, 0
    %p33 = por %p31, %p32
    %p34 = scmp.ne.s32.totalorder %s20, %s21
    %p35 = scmp.eq.s32.totalorder %s13, 1
    %p36 = por %p34, %p35
    %p38 = scmp.ne.s32.totalorder %s21, %s37
    %p39 = scmp.eq.s32.totalorder %s13, 0
    %p40 = por %p38, %p39
    %s41 = ssub.s32 %s7, %s14
    %p42 = scmp.eq.s32.totalorder %s41, 0
    %s44 = sadd.s32 %s43, 1
    %s45 = scalar_select %p42, %s43, %s44
    %p48 = pneg %p42
    %p49 = scmp.eq.s32.totalorder %s7, 1
    %p50 = por %p48, %p49
    %p51 = scmp.ne.s32.totalorder %s43, %s46
    %p52 = scmp.eq.s32.totalorder %s7, 0
    %p53 = por %p51, %p52
    %p54 = scmp.ne.s32.totalorder %s43, %s46
    %p55 = scmp.eq.s32.totalorder %s12, 1
    %p56 = por %p54, %p55
    %p57 = scmp.ne.s32.totalorder %s46, %s47
    %p58 = scmp.eq.s32.totalorder %s12, 0
    %p59 = por %p57, %p58
    %p60 = scmp.ne.s32.totalorder %s46, %s47
    %p61 = scmp.eq.s32.totalorder %s13, 1
    %p62 = por %p60, %p61
    %p64 = scmp.ne.s32.totalorder %s47, %s63
    %p65 = scmp.eq.s32.totalorder %s13, 0
    %p66 = por %p64, %p65
    %p67 = scmp.le.s32.totalorder 1, %s7
    %p68 = scmp.lt.s32.totalorder %s7, 3
    %p69 = pnand %p67, %p68
    %p70 = pneg %p69
    // Predicated region
    $region9: #{simple_cnn3_forward.6} parent=5 // pred_check
      _
    $region10: #{simple_cnn3_forward.6} parent=5 // pred_check_branch
      %72 = sbr.rel (%p69) target = $region12
    $region11: #{simple_cnn3_forward.6} parent=5 // pred_region
      %s73 = ssub.s32 %s7, 1
    $region12: #{simple_cnn3_forward.6} parent=5 // pred_fallthru
      _
    %p74 = scmp.lt.s32.totalorder %s7, 2
    // Predicated region
    $region13: #{simple_cnn3_forward.6} parent=5 // pred_check
      %p75 = pneg %p74
    $region14: #{simple_cnn3_forward.6} parent=5 // pred_check_branch
      %77 = sbr.rel (%p75) target = $region16
    $region15: #{simple_cnn3_forward.6} parent=5 // pred_region
      // Predicated region
      $region17: #{simple_cnn3_forward.6} parent=15 // pred_check
        %p78 = pneg %p27
      $region18: #{simple_cnn3_forward.6} parent=15 // pred_check_branch
        %80 = sbr.rel (%p78) target = $region20
      $region19: #{simple_cnn3_forward.6} parent=15 // pred_region
        %s81 = smul.u32 14, %s7
        %p82 = scmp.lt.s32.totalorder %s81, 27
        %s83 = scalar_select %p82, %s81, 27
        %s84 = smul.addr %s83, 8
        %s85 = smul.addr %s84, 4
        %s86 = scalar_lea.vmem %s0, %s85
        %s87 = smul.u32 14, %s7
      $region20: #{simple_cnn3_forward.6} parent=15 // pred_fallthru
        _
    $region16: #{simple_cnn3_forward.6} parent=5 // pred_fallthru
      _
    %p88 = scmp.le.s32.totalorder 1, %s7
    %p89 = scmp.lt.s32.totalorder %s7, 3
    %p90 = pnand %p88, %p89
    %p91 = pneg %p90
    // Predicated region
    $region21: #{simple_cnn3_forward.6} parent=5 // pred_check
      _
    $region22: #{simple_cnn3_forward.6} parent=5 // pred_check_branch
      %93 = sbr.rel (%p90) target = $region24
    $region23: #{simple_cnn3_forward.6} parent=5 // pred_region
      %s94 = ssub.s32 %s7, 1
      %s95 = smul.u32 14, %s12
      %p96 = scmp.lt.s32.totalorder %s95, 27
      %s97 = scalar_select %p96, %s95, 27
      %s98 = smul.addr %s97, 8
      %s99 = smul.addr %s98, 4
      %s100 = scalar_lea.vmem %s0, %s99
      %p101 = pneg %p33
      %p102 = pneg %p30
      %p103 = pneg %p59
      %p104 = pneg %p56
      %s105 = smul.u32 14, %s12
      %p106 = scmp.lt.s32.totalorder %s105, 27
      %s107 = scalar_select %p106, %s105, 27
      %s108 = smul.addr %s107, 2
      %s109 = smul.addr %s108, 4
      %s110 = scalar_lea.vmem %s1, %s109
      %s111 = smul.u32 14, %s12
      %p112 = scmp.lt.s32.totalorder %s111, 27
      %s113 = scalar_select %p112, %s111, 27
      %s114 = smul.addr %s113, 8
      %s115 = smul.addr %s114, 4
      %s116 = scalar_lea.vmem %s0, %s115
      %s117 = smul.u32 14, %s12
      %s118 = smul.u32 14, %s12
      %p119 = scmp.lt.s32.totalorder %s118, 27
      %s120 = scalar_select %p119, %s118, 27
      %s121 = smul.addr %s120, 2
      %s122 = smul.addr %s121, 4
      %s123 = scalar_lea.vmem %s1, %s122
      %s124 = smul.u32 14, %s12
      %v125 = vld [vmem:[%s116] sm:$0xff]
      %v126 = vld [vmem:[%s116 + $0x8] sm:$0x77]
      %v127 = vld [vmem:[%s116 + $0x10] sm:$0xff]
      %v128 = vld [vmem:[%s116 + $0x18] sm:$0x77]
      %v129 = vld [vmem:[%s116 + $0x20] sm:$0xff]
      %v130 = vld [vmem:[%s116 + $0x28] sm:$0x77]
      %v131 = vld [vmem:[%s116 + $0x30] sm:$0xff]
      %v132 = vld [vmem:[%s116 + $0x38] sm:$0x77]
      %v133 = vld [vmem:[%s116 + $0x40] sm:$0xff]
      %v134 = vld [vmem:[%s116 + $0x48] sm:$0x77]
      %v135 = vld [vmem:[%s116 + $0x50] sm:$0xff]
      %v136 = vld [vmem:[%s116 + $0x58] sm:$0x77]
      %v137 = vld [vmem:[%s116 + $0x60] sm:$0xff]
      %v138 = vld [vmem:[%s116 + $0x68] sm:$0x77]
      %v139 = vld [vmem:[%s116 + $0x70] sm:$0xff]
      %v140 = vld [vmem:[%s116 + $0x78] sm:$0x77]
      %v141 = vld [vmem:[%s116 + $0x80] sm:$0xff]
      %v142 = vld [vmem:[%s116 + $0x88] sm:$0x77]
      %v143 = vld [vmem:[%s116 + $0x90] sm:$0xff]
      %v144 = vld [vmem:[%s116 + $0x98] sm:$0x77]
      %v145 = vld [vmem:[%s116 + $0xa0] sm:$0xff]
      %v146 = vld [vmem:[%s116 + $0xa8] sm:$0x77]
      %v147 = vld [vmem:[%s116 + $0xb0] sm:$0xff]
      %v148 = vld [vmem:[%s116 + $0xb8] sm:$0x77]
      %v149 = vld [vmem:[%s116 + $0xc0] sm:$0xff]
      %v150 = vld [vmem:[%s116 + $0xc8] sm:$0x77]
      %v151 = vld [vmem:[%s116 + $0xd0] sm:$0xff]
      %v152 = vld [vmem:[%s116 + $0xd8] sm:$0x77]
      %v153 = vld [vmem:[%s116 + $0xe0] sm:$0xff]
      %v154 = vld [vmem:[%s116 + $0xe8] sm:$0x77]
      %v155 = vld [vmem:[%s116 + $0xf0] sm:$0xff]
      %v156 = vld [vmem:[%s116 + $0xf8] sm:$0x77]
      %v157 = vld [vmem:[%s116 + $0x100] sm:$0xff]
      %v158 = vld [vmem:[%s116 + $0x108] sm:$0x77]
      %v159 = vld [vmem:[%s116 + $0x110] sm:$0xff]
      %v160 = vld [vmem:[%s116 + $0x118] sm:$0x77]
      %v161 = vld [vmem:[%s116 + $0x120] sm:$0xff]
      %v162 = vld [vmem:[%s116 + $0x128] sm:$0x77]
      %v163 = vld [vmem:[%s116 + $0x130] sm:$0xff]
      %v164 = vld [vmem:[%s116 + $0x138] sm:$0x77]
      %v165 = vld [vmem:[%s116 + $0x140] sm:$0xff]
      %v166 = vld [vmem:[%s116 + $0x148] sm:$0x77]
      %v167 = vld [vmem:[%s116 + $0x150] sm:$0xff]
      %v168 = vld [vmem:[%s116 + $0x158] sm:$0x77]
      %v169 = vld [vmem:[%s116 + $0x160] sm:$0xff]
      %v170 = vld [vmem:[%s116 + $0x168] sm:$0x77]
      %v171 = vld [vmem:[%s116 + $0x170] sm:$0xff]
      %v172 = vld [vmem:[%s116 + $0x178] sm:$0x77]
      %v173 = vld [vmem:[%s116 + $0x180] sm:$0xff]
      %v174 = vld [vmem:[%s116 + $0x188] sm:$0x77]
      %v175 = vld [vmem:[%s116 + $0x190] sm:$0xff]
      %v176 = vld [vmem:[%s116 + $0x198] sm:$0x77]
      %v177 = vld [vmem:[%s116 + $0x1a0] sm:$0xff]
      %v178 = vld [vmem:[%s116 + $0x1a8] sm:$0x77]
      %v179 = vld [vmem:[%s116 + $0x1b0] sm:$0xff]
      %v180 = vld [vmem:[%s116 + $0x1b8] sm:$0x77]
      %v181 = vmax.bf16 %v125, %v127
      %v182 = vmax.bf16 %v126, %v128
      %v183 = vmax.bf16 %v129, %v131
      %v184 = vmax.bf16 %v130, %v132
      %v185 = vmax.bf16 %v133, %v135
      %v186 = vmax.bf16 %v134, %v136
      %v187 = vmax.bf16 %v137, %v139
      %v188 = vmax.bf16 %v138, %v140
      %v189 = vmax.bf16 %v141, %v143
      %v190 = vmax.bf16 %v142, %v144
      %v191 = vmax.bf16 %v145, %v147
      %v192 = vmax.bf16 %v146, %v148
      %v193 = vmax.bf16 %v149, %v151
      %v194 = vmax.bf16 %v150, %v152
      %v195 = vmax.bf16 %v153, %v155
      %v196 = vmax.bf16 %v154, %v156
      %v197 = vmax.bf16 %v157, %v159
      %v198 = vmax.bf16 %v158, %v160
      %v199 = vmax.bf16 %v161, %v163
      %v200 = vmax.bf16 %v162, %v164
      %v201 = vmax.bf16 %v165, %v167
      %v202 = vmax.bf16 %v166, %v168
      %v203 = vmax.bf16 %v169, %v171
      %v204 = vmax.bf16 %v170, %v172
      %v205 = vmax.bf16 %v173, %v175
      %v206 = vmax.bf16 %v174, %v176
      %v207 = vmax.bf16 %v177, %v179
      %v208 = vmax.bf16 %v178, %v180
      %v237 = vrot.slane %v181, 4
      %v238 = vrot.slane %v182, 4
      %v239 = vrot.slane %v183, 4
      %v240 = vrot.slane %v184, 4
      %v241 = vrot.slane %v185, 4
      %v242 = vrot.slane %v186, 4
      %v243 = vrot.slane %v187, 4
      %v244 = vrot.slane %v188, 4
      %v245 = vrot.slane %v189, 4
      %v246 = vrot.slane %v190, 4
      %v247 = vrot.slane %v191, 4
      %v248 = vrot.slane %v192, 4
      %v249 = vrot.slane %v193, 4
      %v250 = vrot.slane %v194, 4
      %v251 = vrot.slane %v195, 4
      %v252 = vrot.slane %v196, 4
      %v253 = vrot.slane %v197, 4
      %v254 = vrot.slane %v198, 4
      %v255 = vrot.slane %v199, 4
      %v256 = vrot.slane %v200, 4
      %v257 = vrot.slane %v201, 4
      %v258 = vrot.slane %v202, 4
      %v259 = vrot.slane %v203, 4
      %v260 = vrot.slane %v204, 4
      %v261 = vrot.slane %v205, 4
      %v262 = vrot.slane %v206, 4
      %v263 = vrot.slane %v207, 4
      %v264 = vrot.slane %v208, 4
      %v293 = vmax.bf16 %v181, %v237
      %v294 = vmax.bf16 %v182, %v238
      %v295 = vmax.bf16 %v183, %v239
      %v296 = vmax.bf16 %v184, %v240
      %v297 = vmax.bf16 %v185, %v241
      %v298 = vmax.bf16 %v186, %v242
      %v299 = vmax.bf16 %v187, %v243
      %v300 = vmax.bf16 %v188, %v244
      %v301 = vmax.bf16 %v189, %v245
      %v302 = vmax.bf16 %v190, %v246
      %v303 = vmax.bf16 %v191, %v247
      %v304 = vmax.bf16 %v192, %v248
      %v305 = vmax.bf16 %v193, %v249
      %v306 = vmax.bf16 %v194, %v250
      %v307 = vmax.bf16 %v195, %v251
      %v308 = vmax.bf16 %v196, %v252
      %v309 = vmax.bf16 %v197, %v253
      %v310 = vmax.bf16 %v198, %v254
      %v311 = vmax.bf16 %v199, %v255
      %v312 = vmax.bf16 %v200, %v256
      %v313 = vmax.bf16 %v201, %v257
      %v314 = vmax.bf16 %v202, %v258
      %v315 = vmax.bf16 %v203, %v259
      %v316 = vmax.bf16 %v204, %v260
      %v317 = vmax.bf16 %v205, %v261
      %v318 = vmax.bf16 %v206, %v262
      %v319 = vmax.bf16 %v207, %v263
      %v320 = vmax.bf16 %v208, %v264
      %321 = vst [vmem:[%s123] sm:$0xf] %v293
      %322 = vst [vmem:[%s123 + $0x4] sm:$0x7] %v294
      %323 = vst [vmem:[%s123 + $0x8] sm:$0xf] %v295
      %324 = vst [vmem:[%s123 + $0xc] sm:$0x7] %v296
      %325 = vst [vmem:[%s123 + $0x10] sm:$0xf] %v297
      %326 = vst [vmem:[%s123 + $0x14] sm:$0x7] %v298
      %327 = vst [vmem:[%s123 + $0x18] sm:$0xf] %v299
      %328 = vst [vmem:[%s123 + $0x1c] sm:$0x7] %v300
      %329 = vst [vmem:[%s123 + $0x20] sm:$0xf] %v301
      %330 = vst [vmem:[%s123 + $0x24] sm:$0x7] %v302
      %331 = vst [vmem:[%s123 + $0x28] sm:$0xf] %v303
      %332 = vst [vmem:[%s123 + $0x2c] sm:$0x7] %v304
      %333 = vst [vmem:[%s123 + $0x30] sm:$0xf] %v305
      %334 = vst [vmem:[%s123 + $0x34] sm:$0x7] %v306
      %335 = vst [vmem:[%s123 + $0x38] sm:$0xf] %v307
      %336 = vst [vmem:[%s123 + $0x3c] sm:$0x7] %v308
      %337 = vst [vmem:[%s123 + $0x40] sm:$0xf] %v309
      %338 = vst [vmem:[%s123 + $0x44] sm:$0x7] %v310
      %339 = vst [vmem:[%s123 + $0x48] sm:$0xf] %v311
      %340 = vst [vmem:[%s123 + $0x4c] sm:$0x7] %v312
      %341 = vst [vmem:[%s123 + $0x50] sm:$0xf] %v313
      %342 = vst [vmem:[%s123 + $0x54] sm:$0x7] %v314
      %343 = vst [vmem:[%s123 + $0x58] sm:$0xf] %v315
      %344 = vst [vmem:[%s123 + $0x5c] sm:$0x7] %v316
      %345 = vst [vmem:[%s123 + $0x60] sm:$0xf] %v317
      %346 = vst [vmem:[%s123 + $0x64] sm:$0x7] %v318
      %347 = vst [vmem:[%s123 + $0x68] sm:$0xf] %v319
      %348 = vst [vmem:[%s123 + $0x6c] sm:$0x7] %v320
      %s349 = smul.u32 14, %s12
      %p350 = scmp.lt.s32.totalorder %s349, 27
      %s351 = scalar_select %p350, %s349, 27
      %s352 = smul.addr %s351, 2
      %s353 = smul.addr %s352, 4
      %s354 = scalar_lea.vmem %s1, %s353
      // Predicated region
      $region25: #{simple_cnn3_forward.6} parent=23 // pred_check
        %p355 = pneg %p56
      $region26: #{simple_cnn3_forward.6} parent=23 // pred_check_branch
        %357 = sbr.rel (%p355) target = $region28
      $region27: #{simple_cnn3_forward.6} parent=23 // pred_region
        %s358 = smul.u32 14, %s12
      $region28: #{simple_cnn3_forward.6} parent=23 // pred_fallthru
        _
    $region24: #{simple_cnn3_forward.6} parent=5 // pred_fallthru
      _
    %p359 = scmp.le.s32.totalorder 2, %s7
    // Predicated region
    $region29: #{simple_cnn3_forward.6} parent=5 // pred_check
      %p360 = pneg %p359
    $region30: #{simple_cnn3_forward.6} parent=5 // pred_check_branch
      %362 = sbr.rel (%p360) target = $region32
    $region31: #{simple_cnn3_forward.6} parent=5 // pred_region
      %s363 = ssub.s32 %s7, 2
      // Predicated region
      $region33: #{simple_cnn3_forward.6} parent=31 // pred_check
        %p364 = pneg %p62
      $region34: #{simple_cnn3_forward.6} parent=31 // pred_check_branch
        %366 = sbr.rel (%p364) target = $region36
      $region35: #{simple_cnn3_forward.6} parent=31 // pred_region
        %s367 = smul.u32 14, %s13
        %p368 = scmp.lt.s32.totalorder %s367, 27
        %s369 = scalar_select %p368, %s367, 27
        %s370 = smul.addr %s369, 2
        %s371 = smul.addr %s370, 4
        %s372 = scalar_lea.vmem %s1, %s371
      $region36: #{simple_cnn3_forward.6} parent=31 // pred_fallthru
        _
    $region32: #{simple_cnn3_forward.6} parent=5 // pred_fallthru
      _
  $region6: #{simple_cnn3_forward.6} parent=0 // loop_footer
    %s11 = sadd.s32 1, %s7
  $region7: #{simple_cnn3_forward.6} parent=0 // loop_footer_branch
    %6 = sbr.rel target = $region3
  $region8: #{simple_cnn3_forward.6} parent=0 // loop_exit
    _

// kernel: simple_cnn3_forward.5
$region0: #{simple_cnn3_forward.5}
  #allocation0 [shape = 'u32[]', space=smem, size = 0x4, offset = 0x4, fixed_abs, tag = 'smem constant byte address 0x4 - core index']
  #allocation1 [shape = 'u32[144,128]{1,0:T(1,128)}', space=vmem, size = 0x12000, scoped, tag = 'internal scratch']
  %s0 = inlined_call_operand.vmem [shape: bf16[1568,75], index: 0, kind: input, shape index: {}]
  %s1 = inlined_call_operand.vmem [shape: bf16[75,128], index: 1, kind: input, shape index: {}]
  %s2 = inlined_call_operand.vmem [shape: f32[1,128], index: 2, kind: input, shape index: {}]
  %s3 = inlined_call_operand.vmem [shape: bf16[1568,128], index: 3, kind: output, shape index: {}]
  %s4 = sld [smem:[#allocation0]]
  $region89: #{simple_cnn3_forward.5} parent=0
    _
  %s6 = ssub.s32 1, %s4
  %s7 = scalar_select 0, %s6, %s4
  $region1: #{simple_cnn3_forward.5} parent=0
    #allocation2 [shape = 'u8[524288]{0}', space=vmem, size = 0x80000, scoped, tag = 'output window, operand 0']
    loop: start=0, step=1, limit=4
    $region2: #{simple_cnn3_forward.5} parent=1 // loop_pre_header
      _
    $region3: #{simple_cnn3_forward.5} parent=1 // loop_header
      %s9 = sphi 0, %s13
      %p10 = scmp.ge.s32.totalorder %s9, 4
      %s19 = sphi 0, %s21
      %s22 = sphi 0, %s19
      %s23 = sphi 0, %s22
      %s39 = sphi 0, %s23
      %s43 = sphi 0, %s43
      %s45 = sphi 0, %s43
      %s46 = sphi 0, %s45
      %s60 = sphi 0, %s46
      %s64 = sphi 0, %s64
      %s66 = sphi 0, %s64
      %s67 = sphi 0, %s66
      %s81 = sphi 0, %s67
      %s87 = sphi 0, %s89
      %s90 = sphi 0, %s87
      %s91 = sphi 0, %s90
      %s107 = sphi 0, %s91
    $region4: #{simple_cnn3_forward.5} parent=1 // loop_header_branch
      %12 = sbr.rel (%p10) target = $region8
    $region5: #{simple_cnn3_forward.5} parent=1 // loop_body
      %s14 = ssub.s32 %s9, 1
      %s15 = ssub.s32 %s9, 2
      %s16 = sadd.s32 %s9, 1
      %s17 = ssub.s32 %s9, %s16
      %p18 = scmp.eq.s32.totalorder %s17, 0
      %s20 = sadd.s32 %s19, 1
      %s21 = scalar_select %p18, %s19, %s20
      %p24 = pneg %p18
      %p25 = scmp.eq.s32.totalorder %s9, 1
      %p26 = por %p24, %p25
      %p27 = scmp.ne.s32.totalorder %s19, %s22
      %p28 = scmp.eq.s32.totalorder %s9, 0
      %p29 = por %p27, %p28
      %p30 = scmp.ne.s32.totalorder %s19, %s22
      %p31 = scmp.eq.s32.totalorder %s14, 1
      %p32 = por %p30, %p31
      %p33 = scmp.ne.s32.totalorder %s22, %s23
      %p34 = scmp.eq.s32.totalorder %s14, 0
      %p35 = por %p33, %p34
      %p36 = scmp.ne.s32.totalorder %s22, %s23
      %p37 = scmp.eq.s32.totalorder %s15, 1
      %p38 = por %p36, %p37
      %p40 = scmp.ne.s32.totalorder %s23, %s39
      %p41 = scmp.eq.s32.totalorder %s15, 0
      %p42 = por %p40, %p41
      %s44 = sadd.s32 %s43, 1
      %p47 = scmp.eq.s32.totalorder %s9, 1
      %p48 = scmp.ne.s32.totalorder %s43, %s45
      %p49 = scmp.eq.s32.totalorder %s9, 0
      %p50 = por %p48, %p49
      %p51 = scmp.ne.s32.totalorder %s43, %s45
      %p52 = scmp.eq.s32.totalorder %s14, 1
      %p53 = por %p51, %p52
      %p54 = scmp.ne.s32.totalorder %s45, %s46
      %p55 = scmp.eq.s32.totalorder %s14, 0
      %p56 = por %p54, %p55
      %p57 = scmp.ne.s32.totalorder %s45, %s46
      %p58 = scmp.eq.s32.totalorder %s15, 1
      %p59 = por %p57, %p58
      %p61 = scmp.ne.s32.totalorder %s46, %s60
      %p62 = scmp.eq.s32.totalorder %s15, 0
      %p63 = por %p61, %p62
      %s65 = sadd.s32 %s64, 1
      %p68 = scmp.eq.s32.totalorder %s9, 1
      %p69 = scmp.ne.s32.totalorder %s64, %s66
      %p70 = scmp.eq.s32.totalorder %s9, 0
      %p71 = por %p69, %p70
      %p72 = scmp.ne.s32.totalorder %s64, %s66
      %p73 = scmp.eq.s32.totalorder %s14, 1
      %p74 = por %p72, %p73
      %p75 = scmp.ne.s32.totalorder %s66, %s67
      %p76 = scmp.eq.s32.totalorder %s14, 0
      %p77 = por %p75, %p76
      %p78 = scmp.ne.s32.totalorder %s66, %s67
      %p79 = scmp.eq.s32.totalorder %s15, 1
      %p80 = por %p78, %p79
      %p82 = scmp.ne.s32.totalorder %s67, %s81
      %p83 = scmp.eq.s32.totalorder %s15, 0
      %p84 = por %p82, %p83
      %s85 = ssub.s32 %s9, %s16
      %p86 = scmp.eq.s32.totalorder %s85, 0
      %s88 = sadd.s32 %s87, 1
      %s89 = scalar_select %p86, %s87, %s88
      %p92 = pneg %p86
      %p93 = scmp.eq.s32.totalorder %s9, 1
      %p94 = por %p92, %p93
      %p95 = scmp.ne.s32.totalorder %s87, %s90
      %p96 = scmp.eq.s32.totalorder %s9, 0
      %p97 = por %p95, %p96
      %p98 = scmp.ne.s32.totalorder %s87, %s90
      %p99 = scmp.eq.s32.totalorder %s14, 1
      %p100 = por %p98, %p99
      %p101 = scmp.ne.s32.totalorder %s90, %s91
      %p102 = scmp.eq.s32.totalorder %s14, 0
      %p103 = por %p101, %p102
      %p104 = scmp.ne.s32.totalorder %s90, %s91
      %p105 = scmp.eq.s32.totalorder %s15, 1
      %p106 = por %p104, %p105
      %p108 = scmp.ne.s32.totalorder %s91, %s107
      %p109 = scmp.eq.s32.totalorder %s15, 0
      %p110 = por %p108, %p109
      %p111 = scmp.le.s32.totalorder 1, %s9
      %p112 = scmp.lt.s32.totalorder %s9, 3
      %p113 = pnand %p111, %p112
      %p114 = pneg %p113
      // Predicated region
      $region9: #{simple_cnn3_forward.5} parent=5 // pred_check
        _
      $region10: #{simple_cnn3_forward.5} parent=5 // pred_check_branch
        %116 = sbr.rel (%p113) target = $region12
      $region11: #{simple_cnn3_forward.5} parent=5 // pred_region
        %s117 = ssub.s32 %s9, 1
        // Predicated region
        $region13: #{simple_cnn3_forward.5} parent=11 // pred_check
          %p118 = pneg %p56
        $region14: #{simple_cnn3_forward.5} parent=11 // pred_check_branch
          %120 = sbr.rel (%p118) target = $region16
        $region15: #{simple_cnn3_forward.5} parent=11 // pred_region
          _
        $region16: #{simple_cnn3_forward.5} parent=11 // pred_fallthru
          _
        // Predicated region
        $region17: #{simple_cnn3_forward.5} parent=11 // pred_check
          %p121 = pneg %p77
        $region18: #{simple_cnn3_forward.5} parent=11 // pred_check_branch
          %123 = sbr.rel (%p121) target = $region20
        $region19: #{simple_cnn3_forward.5} parent=11 // pred_region
          _
        $region20: #{simple_cnn3_forward.5} parent=11 // pred_fallthru
          _
      $region12: #{simple_cnn3_forward.5} parent=5 // pred_fallthru
        _
      %p124 = scmp.lt.s32.totalorder %s9, 2
      // Predicated region
      $region21: #{simple_cnn3_forward.5} parent=5 // pred_check
        %p125 = pneg %p124
      $region22: #{simple_cnn3_forward.5} parent=5 // pred_check_branch
        %127 = sbr.rel (%p125) target = $region24
      $region23: #{simple_cnn3_forward.5} parent=5 // pred_region
        // Predicated region
        $region25: #{simple_cnn3_forward.5} parent=23 // pred_check
          %p128 = pneg %p29
        $region26: #{simple_cnn3_forward.5} parent=23 // pred_check_branch
          %130 = sbr.rel (%p128) target = $region28
        $region27: #{simple_cnn3_forward.5} parent=23 // pred_region
          %s131 = smul.u32 128, %s9
          %s132 = ssub.s32 196, %s131
          %p133 = scmp.lt.s32.totalorder %s132, 128
          %s134 = scalar_select %p133, %s132, 128
          %s135 = smul.u32 64, %s134
          %p136 = scmp.lt.s32.totalorder %s131, 195
          %s137 = scalar_select %p136, %s131, 195
          %s138 = smul.addr %s137, 4
          %s139 = scalar_lea.vmem %s0, %s138
          %s140 = smul.u32 128, %s9
          %s141 = ssub.s32 196, %s140
          %p142 = scmp.lt.s32.totalorder %s141, 128
          %s143 = scalar_select %p142, %s141, 128
          %s144 = smul.u32 64, %s143
        $region28: #{simple_cnn3_forward.5} parent=23 // pred_fallthru
          _
      $region24: #{simple_cnn3_forward.5} parent=5 // pred_fallthru
        _
      %p145 = scmp.le.s32.totalorder 1, %s9
      %p146 = scmp.lt.s32.totalorder %s9, 3
      %p147 = pnand %p145, %p146
      %p148 = pneg %p147
      // Predicated region
      $region29: #{simple_cnn3_forward.5} parent=5 // pred_check
        _
      $region30: #{simple_cnn3_forward.5} parent=5 // pred_check_branch
        %150 = sbr.rel (%p147) target = $region32
      $region31: #{simple_cnn3_forward.5} parent=5 // pred_region
        %s151 = ssub.s32 %s9, 1
        %s152 = smul.u32 128, %s14
        %s153 = ssub.s32 196, %s152
        %p154 = scmp.lt.s32.totalorder %s153, 128
        %s155 = scalar_select %p154, %s153, 128
        %s156 = smul.u32 64, %s155
        %p157 = scmp.lt.s32.totalorder %s152, 195
        %s158 = scalar_select %p157, %s152, 195
        %s159 = smul.addr %s158, 4
        %s160 = scalar_lea.vmem %s0, %s159
        %p161 = pneg %p35
        %p162 = pneg %p32
        %p163 = pneg %p56
        %p164 = pneg %p53
        %p165 = pneg %p77
        %p166 = pneg %p74
        %p167 = pneg %p103
        %p168 = pneg %p100
        %s169 = sand.u32 %s90, 1
        %s170 = sand.u32 %s90, 1
        %s171 = smul.addr %s170, 512
        %s172 = scalar_lea.vmem [#allocation2], %s171
        %s173 = smul.u32 128, %s14
        %s174 = ssub.s32 196, %s173
        %p175 = scmp.lt.s32.totalorder %s174, 128
        %s176 = scalar_select %p175, %s174, 128
        %s177 = smul.u32 64, %s176
        %p178 = scmp.lt.s32.totalorder %s173, 195
        %s179 = scalar_select %p178, %s173, 195
        %s180 = smul.addr %s179, 4
        %s181 = scalar_lea.vmem %s0, %s180
        %s182 = smul.u32 128, %s14
        %s183 = ssub.s32 196, %s182
        %p184 = scmp.lt.s32.totalorder %s183, 128
        %s185 = scalar_select %p184, %s183, 128
        %s186 = smul.u32 64, %s185
        %s187 = smul.u32 128, %s14
        %s188 = ssub.s32 196, %s187
        %p189 = scmp.lt.s32.totalorder %s188, 128
        %s190 = scalar_select %p189, %s188, 128
        %s191 = smul.u32 64, %s190
        %v193 = vld [vmem:[%s181] sm:$0xf]
        %v194 = vld [vmem:[%s181 + $0x4] sm:$0xf]
        %v195 = vld [vmem:[%s181 + $0x8] sm:$0xf]
        %v196 = vld [vmem:[%s181 + $0xc] sm:$0xf]
        %v197 = vld [vmem:[%s181 + $0x10] sm:$0xf]
        %v198 = vld [vmem:[%s181 + $0x14] sm:$0xf]
        %v199 = vld [vmem:[%s181 + $0x18] sm:$0xf]
        %v200 = vld [vmem:[%s181 + $0x1c] sm:$0xf]
        %v201 = vld [vmem:[%s181 + $0x20] sm:$0xf]
        %v202 = vld [vmem:[%s181 + $0x24] sm:$0xf]
        %v203 = vld [vmem:[%s181 + $0x28] sm:$0xf]
        %v204 = vld [vmem:[%s181 + $0x2c] sm:$0xf]
        %v205 = vld [vmem:[%s181 + $0x30] sm:$0xf]
        %v206 = vld [vmem:[%s181 + $0x34] sm:$0xf]
        %v207 = vld [vmem:[%s181 + $0x38] sm:$0xf]
        %v208 = vld [vmem:[%s181 + $0x3c] sm:$0xf]
        %v209 = vld [vmem:[%s181 + $0x40] sm:$0xf]
        %v210 = vld [vmem:[%s181 + $0x44] sm:$0xf]
        %v211 = vld [vmem:[%s181 + $0x48] sm:$0xf]
        %v212 = vld [vmem:[%s181 + $0x4c] sm:$0xf]
        %v213 = vld [vmem:[%s181 + $0x50] sm:$0xf]
        %v214 = vld [vmem:[%s181 + $0x54] sm:$0xf]
        %v215 = vld [vmem:[%s181 + $0x58] sm:$0xf]
        %v216 = vld [vmem:[%s181 + $0x5c] sm:$0xf]
        %v217 = vld [vmem:[%s181 + $0x60] sm:$0xf]
        %v218 = vld [vmem:[%s181 + $0x64] sm:$0xf]
        %v219 = vld [vmem:[%s181 + $0x68] sm:$0xf]
        %v220 = vld [vmem:[%s181 + $0x6c] sm:$0xf]
        %v221 = vld [vmem:[%s181 + $0x70] sm:$0xf]
        %v222 = vld [vmem:[%s181 + $0x74] sm:$0xf]
        %v223 = vld [vmem:[%s181 + $0x78] sm:$0xf]
        %v224 = vld [vmem:[%s181 + $0x7c] sm:$0xf]
        %v225 = vld [vmem:[%s181 + $0x80] sm:$0xf]
        %v226 = vld [vmem:[%s181 + $0x84] sm:$0xf]
        %v227 = vld [vmem:[%s181 + $0x88] sm:$0xf]
        %v228 = vld [vmem:[%s181 + $0x8c] sm:$0xf]
        %v229 = vld [vmem:[%s181 + $0x90] sm:$0xf]
        %v230 = vld [vmem:[%s181 + $0x94] sm:$0xf]
        %v231 = vld [vmem:[%s181 + $0x98] sm:$0xf]
        %v232 = vld [vmem:[%s181 + $0x9c] sm:$0xf]
        %v233 = vld [vmem:[%s181 + $0xa0] sm:$0xf]
        %v234 = vld [vmem:[%s181 + $0xa4] sm:$0xf]
        %v235 = vld [vmem:[%s181 + $0xa8] sm:$0xf]
        %v236 = vld [vmem:[%s181 + $0xac] sm:$0xf]
        %v237 = vld [vmem:[%s181 + $0xb0] sm:$0xf]
        %v238 = vld [vmem:[%s181 + $0xb4] sm:$0xf]
        %v239 = vld [vmem:[%s181 + $0xb8] sm:$0xf]
        %v240 = vld [vmem:[%s181 + $0xbc] sm:$0xf]
        %v241 = vld [vmem:[%s181 + $0xc0] sm:$0xf]
        %v242 = vld [vmem:[%s181 + $0xc4] sm:$0xf]
        %v243 = vld [vmem:[%s181 + $0xc8] sm:$0xf]
        %v244 = vld [vmem:[%s181 + $0xcc] sm:$0xf]
        %v245 = vld [vmem:[%s181 + $0xd0] sm:$0xf]
        %v246 = vld [vmem:[%s181 + $0xd4] sm:$0xf]
        %v247 = vld [vmem:[%s181 + $0xd8] sm:$0xf]
        %v248 = vld [vmem:[%s181 + $0xdc] sm:$0xf]
        %v249 = vld [vmem:[%s181 + $0xe0] sm:$0xf]
        %v250 = vld [vmem:[%s181 + $0xe4] sm:$0xf]
        %v251 = vld [vmem:[%s181 + $0xe8] sm:$0xf]
        %v252 = vld [vmem:[%s181 + $0xec] sm:$0xf]
        %v253 = vld [vmem:[%s181 + $0xf0] sm:$0xf]
        %v254 = vld [vmem:[%s181 + $0xf4] sm:$0xf]
        %v255 = vld [vmem:[%s181 + $0xf8] sm:$0xf]
        %v256 = vld [vmem:[%s181 + $0xfc] sm:$0xf]
        %v257 = vld [vmem:[%s181 + $0x100] sm:$0xf]
        %v258 = vld [vmem:[%s181 + $0x104] sm:$0xf]
        %v259 = vld [vmem:[%s181 + $0x108] sm:$0xf]
        %v260 = vld [vmem:[%s181 + $0x10c] sm:$0xf]
        %v261 = vld [vmem:[%s181 + $0x110] sm:$0xf]
        %v262 = vld [vmem:[%s181 + $0x114] sm:$0xf]
        %v263 = vld [vmem:[%s181 + $0x118] sm:$0xf]
        %v264 = vld [vmem:[%s181 + $0x11c] sm:$0xf]
        %v265 = vld [vmem:[%s181 + $0x120] sm:$0xf]
        %v266 = vld [vmem:[%s181 + $0x124] sm:$0xf]
        %v267 = vld [vmem:[%s181 + $0x128] sm:$0xf]
        %v268 = vld [vmem:[%s181 + $0x12c] sm:$0xf]
        %v269 = vld [vmem:[%s181 + $0x130] sm:$0xf]
        %v270 = vld [vmem:[%s181 + $0x134] sm:$0xf]
        %v271 = vld [vmem:[%s181 + $0x138] sm:$0xf]
        %v272 = vld [vmem:[%s181 + $0x13c] sm:$0xf]
        %v273 = vld [vmem:[%s181 + $0x140] sm:$0xf]
        %v274 = vld [vmem:[%s181 + $0x144] sm:$0xf]
        %v275 = vld [vmem:[%s181 + $0x148] sm:$0xf]
        %v276 = vld [vmem:[%s181 + $0x14c] sm:$0xf]
        %v277 = vld [vmem:[%s181 + $0x150] sm:$0xf]
        %v278 = vld [vmem:[%s181 + $0x154] sm:$0xf]
        %v279 = vld [vmem:[%s181 + $0x158] sm:$0xf]
        %v280 = vld [vmem:[%s181 + $0x15c] sm:$0xf]
        %v281 = vld [vmem:[%s181 + $0x160] sm:$0xf]
        %v282 = vld [vmem:[%s181 + $0x164] sm:$0xf]
        %v283 = vld [vmem:[%s181 + $0x168] sm:$0xf]
        %v284 = vld [vmem:[%s181 + $0x16c] sm:$0xf]
        %v285 = vld [vmem:[%s181 + $0x170] sm:$0xf]
        %v286 = vld [vmem:[%s181 + $0x174] sm:$0xf]
        %v287 = vld [vmem:[%s181 + $0x178] sm:$0xf]
        %v288 = vld [vmem:[%s181 + $0x17c] sm:$0xf]
        %v289 = vld [vmem:[%s181 + $0x180] sm:$0xf]
        %v290 = vld [vmem:[%s181 + $0x184] sm:$0xf]
        %v291 = vld [vmem:[%s181 + $0x188] sm:$0xf]
        %v292 = vld [vmem:[%s181 + $0x18c] sm:$0xf]
        %v293 = vld [vmem:[%s181 + $0x190] sm:$0xf]
        %v294 = vld [vmem:[%s181 + $0x194] sm:$0xf]
        %v295 = vld [vmem:[%s181 + $0x198] sm:$0xf]
        %v296 = vld [vmem:[%s181 + $0x19c] sm:$0xf]
        %v297 = vld [vmem:[%s181 + $0x1a0] sm:$0xf]
        %v298 = vld [vmem:[%s181 + $0x1a4] sm:$0xf]
        %v299 = vld [vmem:[%s181 + $0x1a8] sm:$0xf]
        %v300 = vld [vmem:[%s181 + $0x1ac] sm:$0xf]
        %v301 = vld [vmem:[%s181 + $0x1b0] sm:$0xf]
        %v302 = vld [vmem:[%s181 + $0x1b4] sm:$0xf]
        %v303 = vld [vmem:[%s181 + $0x1b8] sm:$0xf]
        %v304 = vld [vmem:[%s181 + $0x1bc] sm:$0xf]
        %v305 = vld [vmem:[%s181 + $0x1c0] sm:$0xf]
        %v306 = vld [vmem:[%s181 + $0x1c4] sm:$0xf]
        %v307 = vld [vmem:[%s181 + $0x1c8] sm:$0xf]
        %v308 = vld [vmem:[%s181 + $0x1cc] sm:$0xf]
        %v309 = vld [vmem:[%s181 + $0x1d0] sm:$0xf]
        %v310 = vld [vmem:[%s181 + $0x1d4] sm:$0xf]
        %v311 = vld [vmem:[%s181 + $0x1d8] sm:$0xf]
        %v312 = vld [vmem:[%s181 + $0x1dc] sm:$0xf]
        %v313 = vld [vmem:[%s181 + $0x1e0] sm:$0xf]
        %v314 = vld [vmem:[%s181 + $0x1e4] sm:$0xf]
        %v315 = vld [vmem:[%s181 + $0x1e8] sm:$0xf]
        %v316 = vld [vmem:[%s181 + $0x1ec] sm:$0xf]
        %v317 = vld [vmem:[%s181 + $0x1f0] sm:$0xf]
        %v318 = vld [vmem:[%s181 + $0x1f4] sm:$0xf]
        %v319 = vld [vmem:[%s181 + $0x1f8] sm:$0xf]
        %v320 = vld [vmem:[%s181 + $0x1fc] sm:$0xf]
        %v321 = vld [vmem:[%s1] sm:$0xf]
        %v322 = vld [vmem:[%s1 + $0x4] sm:$0xf]
        %v323 = vld [vmem:[%s1 + $0x8] sm:$0xf]
        %v324 = vld [vmem:[%s1 + $0xc] sm:$0xf]
        %v325 = vld [vmem:[%s1 + $0x10] sm:$0xf]
        %v326 = vld [vmem:[%s1 + $0x14] sm:$0xf]
        %v327 = vld [vmem:[%s1 + $0x18] sm:$0xf]
        %v328 = vld [vmem:[%s1 + $0x1c] sm:$0xf]
        %v329 = vld [vmem:[%s1 + $0x20] sm:$0xf]
        %v330 = vld [vmem:[%s1 + $0x24] sm:$0x3]
        %v331 = vld [vmem:[%s2] sm:$0x1]
        %v333 = vlaneseq
        %v334 = vshrl.u32 %v333, 7
        %v335 = vsub.s32 0, %v334
        %v336 = vrot.slane %v331, %v335
        %v466 = vunpack.c.l.b16 %v193
        %v467 = vunpack.c.l.b16 %v194
        %v468 = vunpack.c.l.b16 %v195
        %v469 = vunpack.c.l.b16 %v196
        %v470 = vunpack.c.l.b16 %v197
        %v471 = vunpack.c.l.b16 %v198
        %v472 = vunpack.c.l.b16 %v199
        %v473 = vunpack.c.l.b16 %v200
        %v474 = vunpack.c.l.b16 %v201
        %v475 = vunpack.c.l.b16 %v202
        %v476 = vunpack.c.l.b16 %v203
        %v477 = vunpack.c.l.b16 %v204
        %v478 = vunpack.c.l.b16 %v205
        %v479 = vunpack.c.l.b16 %v206
        %v480 = vunpack.c.l.b16 %v207
        %v481 = vunpack.c.l.b16 %v208
        %v482 = vunpack.c.l.b16 %v209
        %v483 = vunpack.c.l.b16 %v210
        %v484 = vunpack.c.l.b16 %v211
        %v485 = vunpack.c.l.b16 %v212
        %v486 = vunpack.c.l.b16 %v213
        %v487 = vunpack.c.l.b16 %v214
        %v488 = vunpack.c.l.b16 %v215
        %v489 = vunpack.c.l.b16 %v216
        %v490 = vunpack.c.l.b16 %v217
        %v491 = vunpack.c.l.b16 %v218
        %v492 = vunpack.c.l.b16 %v219
        %v493 = vunpack.c.l.b16 %v220
        %v494 = vunpack.c.l.b16 %v221
        %v495 = vunpack.c.l.b16 %v222
        %v496 = vunpack.c.l.b16 %v223
        %v497 = vunpack.c.l.b16 %v224
        %v498 = vunpack.c.l.b16 %v225
        %v499 = vunpack.c.l.b16 %v226
        %v500 = vunpack.c.l.b16 %v227
        %v501 = vunpack.c.l.b16 %v228
        %v502 = vunpack.c.l.b16 %v229
        %v503 = vunpack.c.l.b16 %v230
        %v504 = vunpack.c.l.b16 %v231
        %v505 = vunpack.c.l.b16 %v232
        %v506 = vunpack.c.l.b16 %v233
        %v507 = vunpack.c.l.b16 %v234
        %v508 = vunpack.c.l.b16 %v235
        %v509 = vunpack.c.l.b16 %v236
        %v510 = vunpack.c.l.b16 %v237
        %v511 = vunpack.c.l.b16 %v238
        %v512 = vunpack.c.l.b16 %v239
        %v513 = vunpack.c.l.b16 %v240
        %v514 = vunpack.c.l.b16 %v241
        %v515 = vunpack.c.l.b16 %v242
        %v516 = vunpack.c.l.b16 %v243
        %v517 = vunpack.c.l.b16 %v244
        %v518 = vunpack.c.l.b16 %v245
        %v519 = vunpack.c.l.b16 %v246
        %v520 = vunpack.c.l.b16 %v247
        %v521 = vunpack.c.l.b16 %v248
        %v522 = vunpack.c.l.b16 %v249
        %v523 = vunpack.c.l.b16 %v250
        %v524 = vunpack.c.l.b16 %v251
        %v525 = vunpack.c.l.b16 %v252
        %v526 = vunpack.c.l.b16 %v253
        %v527 = vunpack.c.l.b16 %v254
        %v528 = vunpack.c.l.b16 %v255
        %v529 = vunpack.c.l.b16 %v256
        %v530 = vunpack.c.l.b16 %v257
        %v531 = vunpack.c.l.b16 %v258
        %v532 = vunpack.c.l.b16 %v259
        %v533 = vunpack.c.l.b16 %v260
        %v534 = vunpack.c.l.b16 %v261
        %v535 = vunpack.c.l.b16 %v262
        %v536 = vunpack.c.l.b16 %v263
        %v537 = vunpack.c.l.b16 %v264
        %v538 = vunpack.c.l.b16 %v265
        %v539 = vunpack.c.l.b16 %v266
        %v540 = vunpack.c.l.b16 %v267
        %v541 = vunpack.c.l.b16 %v268
        %v542 = vunpack.c.l.b16 %v269
        %v543 = vunpack.c.l.b16 %v270
        %v544 = vunpack.c.l.b16 %v271
        %v545 = vunpack.c.l.b16 %v272
        %v546 = vunpack.c.l.b16 %v273
        %v547 = vunpack.c.l.b16 %v274
        %v548 = vunpack.c.l.b16 %v275
        %v549 = vunpack.c.l.b16 %v276
        %v550 = vunpack.c.l.b16 %v277
        %v551 = vunpack.c.l.b16 %v278
        %v552 = vunpack.c.l.b16 %v279
        %v553 = vunpack.c.l.b16 %v280
        %v554 = vunpack.c.l.b16 %v281
        %v555 = vunpack.c.l.b16 %v282
        %v556 = vunpack.c.l.b16 %v283
        %v557 = vunpack.c.l.b16 %v284
        %v558 = vunpack.c.l.b16 %v285
        %v559 = vunpack.c.l.b16 %v286
        %v560 = vunpack.c.l.b16 %v287
        %v561 = vunpack.c.l.b16 %v288
        %v562 = vunpack.c.l.b16 %v289
        %v563 = vunpack.c.l.b16 %v290
        %v564 = vunpack.c.l.b16 %v291
        %v565 = vunpack.c.l.b16 %v292
        %v566 = vunpack.c.l.b16 %v293
        %v567 = vunpack.c.l.b16 %v294
        %v568 = vunpack.c.l.b16 %v295
        %v569 = vunpack.c.l.b16 %v296
        %v570 = vunpack.c.l.b16 %v297
        %v571 = vunpack.c.l.b16 %v298
        %v572 = vunpack.c.l.b16 %v299
        %v573 = vunpack.c.l.b16 %v300
        %v574 = vunpack.c.l.b16 %v301
        %v575 = vunpack.c.l.b16 %v302
        %v576 = vunpack.c.l.b16 %v303
        %v577 = vunpack.c.l.b16 %v304
        %v578 = vunpack.c.l.b16 %v305
        %v579 = vunpack.c.l.b16 %v306
        %v580 = vunpack.c.l.b16 %v307
        %v581 = vunpack.c.l.b16 %v308
        %v582 = vunpack.c.l.b16 %v309
        %v583 = vunpack.c.l.b16 %v310
        %v584 = vunpack.c.l.b16 %v311
        %v585 = vunpack.c.l.b16 %v312
        %v586 = vunpack.c.l.b16 %v313
        %v587 = vunpack.c.l.b16 %v314
        %v588 = vunpack.c.l.b16 %v315
        %v589 = vunpack.c.l.b16 %v316
        %v590 = vunpack.c.l.b16 %v317
        %v591 = vunpack.c.l.b16 %v318
        %v592 = vunpack.c.l.b16 %v319
        %v593 = vunpack.c.l.b16 %v320
        %v594 = vpack.c.b16 %v467, %v466
        %v595 = vpack.c.b16 %v469, %v468
        %v596 = vpack.c.b16 %v471, %v470
        %v597 = vpack.c.b16 %v473, %v472
        %v598 = vpack.c.b16 %v475, %v474
        %v599 = vpack.c.b16 %v477, %v476
        %v600 = vpack.c.b16 %v479, %v478
        %v601 = vpack.c.b16 %v481, %v480
        %v602 = vpack.c.b16 %v483, %v482
        %v603 = vpack.c.b16 %v485, %v484
        %v604 = vpack.c.b16 %v487, %v486
        %v605 = vpack.c.b16 %v489, %v488
        %v606 = vpack.c.b16 %v491, %v490
        %v607 = vpack.c.b16 %v493, %v492
        %v608 = vpack.c.b16 %v495, %v494
        %v609 = vpack.c.b16 %v497, %v496
        %v610 = vpack.c.b16 %v499, %v498
        %v611 = vpack.c.b16 %v501, %v500
        %v612 = vpack.c.b16 %v503, %v502
        %v613 = vpack.c.b16 %v505, %v504
        %v614 = vpack.c.b16 %v507, %v506
        %v615 = vpack.c.b16 %v509, %v508
        %v616 = vpack.c.b16 %v511, %v510
        %v617 = vpack.c.b16 %v513, %v512
        %v618 = vpack.c.b16 %v515, %v514
        %v619 = vpack.c.b16 %v517, %v516
        %v620 = vpack.c.b16 %v519, %v518
        %v621 = vpack.c.b16 %v521, %v520
        %v622 = vpack.c.b16 %v523, %v522
        %v623 = vpack.c.b16 %v525, %v524
        %v624 = vpack.c.b16 %v527, %v526
        %v625 = vpack.c.b16 %v529, %v528
        %v626 = vpack.c.b16 %v531, %v530
        %v627 = vpack.c.b16 %v533, %v532
        %v628 = vpack.c.b16 %v535, %v534
        %v629 = vpack.c.b16 %v537, %v536
        %v630 = vpack.c.b16 %v539, %v538
        %v631 = vpack.c.b16 %v541, %v540
        %v632 = vpack.c.b16 %v543, %v542
        %v633 = vpack.c.b16 %v545, %v544
        %v634 = vpack.c.b16 %v547, %v546
        %v635 = vpack.c.b16 %v549, %v548
        %v636 = vpack.c.b16 %v551, %v550
        %v637 = vpack.c.b16 %v553, %v552
        %v638 = vpack.c.b16 %v555, %v554
        %v639 = vpack.c.b16 %v557, %v556
        %v640 = vpack.c.b16 %v559, %v558
        %v641 = vpack.c.b16 %v561, %v560
        %v642 = vpack.c.b16 %v563, %v562
        %v643 = vpack.c.b16 %v565, %v564
        %v644 = vpack.c.b16 %v567, %v566
        %v645 = vpack.c.b16 %v569, %v568
        %v646 = vpack.c.b16 %v571, %v570
        %v647 = vpack.c.b16 %v573, %v572
        %v648 = vpack.c.b16 %v575, %v574
        %v649 = vpack.c.b16 %v577, %v576
        %v650 = vpack.c.b16 %v579, %v578
        %v651 = vpack.c.b16 %v581, %v580
        %v652 = vpack.c.b16 %v583, %v582
        %v653 = vpack.c.b16 %v585, %v584
        %v654 = vpack.c.b16 %v587, %v586
        %v655 = vpack.c.b16 %v589, %v588
        %v656 = vpack.c.b16 %v591, %v590
        %v657 = vpack.c.b16 %v593, %v592
        %v668 = vunpack.c.l.b16 %v321
        %v669 = vunpack.c.l.b16 %v322
        %v670 = vunpack.c.l.b16 %v323
        %v671 = vunpack.c.l.b16 %v324
        %v672 = vunpack.c.l.b16 %v325
        %v673 = vunpack.c.l.b16 %v326
        %v674 = vunpack.c.l.b16 %v327
        %v675 = vunpack.c.l.b16 %v328
        %v676 = vunpack.c.l.b16 %v329
        %v677 = vunpack.c.l.b16 %v330
        %v678 = vpack.c.b16 %v669, %v668
        %v679 = vpack.c.b16 %v671, %v670
        %v680 = vpack.c.b16 %v673, %v672
        %v681 = vpack.c.b16 %v675, %v674
        %v682 = vpack.c.b16 %v677, %v676
        %vm687 = vcmask 613376
        %v689 = vsel %vm687, %v594, 0
        %v692 = vsel %vm687, %v595, 0
        %v695 = vsel %vm687, %v596, 0
        %v698 = vsel %vm687, %v597, 0
        %v701 = vsel %vm687, %v598, 0
        %v704 = vsel %vm687, %v599, 0
        %v707 = vsel %vm687, %v600, 0
        %v710 = vsel %vm687, %v601, 0
        %v713 = vsel %vm687, %v602, 0
        %v716 = vsel %vm687, %v603, 0
        %v719 = vsel %vm687, %v604, 0
        %v722 = vsel %vm687, %v605, 0
        %v725 = vsel %vm687, %v606, 0
        %v728 = vsel %vm687, %v607, 0
        %v731 = vsel %vm687, %v608, 0
        %v734 = vsel %vm687, %v609, 0
        %v737 = vsel %vm687, %v610, 0
        %v740 = vsel %vm687, %v611, 0
        %v743 = vsel %vm687, %v612, 0
        %v746 = vsel %vm687, %v613, 0
        %v749 = vsel %vm687, %v614, 0
        %v752 = vsel %vm687, %v615, 0
        %v755 = vsel %vm687, %v616, 0
        %v758 = vsel %vm687, %v617, 0
        %v761 = vsel %vm687, %v618, 0
        %v764 = vsel %vm687, %v619, 0
        %v767 = vsel %vm687, %v620, 0
        %v770 = vsel %vm687, %v621, 0
        %v773 = vsel %vm687, %v622, 0
        %v776 = vsel %vm687, %v623, 0
        %v779 = vsel %vm687, %v624, 0
        %v782 = vsel %vm687, %v625, 0
        %v785 = vsel %vm687, %v626, 0
        %v788 = vsel %vm687, %v627, 0
        %v791 = vsel %vm687, %v628, 0
        %v794 = vsel %vm687, %v629, 0
        %v797 = vsel %vm687, %v630, 0
        %v800 = vsel %vm687, %v631, 0
        %v803 = vsel %vm687, %v632, 0
        %v806 = vsel %vm687, %v633, 0
        %v809 = vsel %vm687, %v634, 0
        %v812 = vsel %vm687, %v635, 0
        %v815 = vsel %vm687, %v636, 0
        %v818 = vsel %vm687, %v637, 0
        %v821 = vsel %vm687, %v638, 0
        %v824 = vsel %vm687, %v639, 0
        %v827 = vsel %vm687, %v640, 0
        %v830 = vsel %vm687, %v641, 0
        %v833 = vsel %vm687, %v642, 0
        %v836 = vsel %vm687, %v643, 0
        %v839 = vsel %vm687, %v644, 0
        %v842 = vsel %vm687, %v645, 0
        %v845 = vsel %vm687, %v646, 0
        %v848 = vsel %vm687, %v647, 0
        %v851 = vsel %vm687, %v648, 0
        %v854 = vsel %vm687, %v649, 0
        %v857 = vsel %vm687, %v650, 0
        %v860 = vsel %vm687, %v651, 0
        %v863 = vsel %vm687, %v652, 0
        %v866 = vsel %vm687, %v653, 0
        %v869 = vsel %vm687, %v654, 0
        %v872 = vsel %vm687, %v655, 0
        %v875 = vsel %vm687, %v656, 0
        %v878 = vsel %vm687, %v657, 0
        %vm880 = vcmask 1044480
        %vm881 = vcmask 1045504
        %v882 = vsel %vm880, 4294967295, 65535
        %v883 = vsel %vm881, %v882, 0
        %v885 = vand.u32 %v682, %v883
        %887 = vmatprep.subr.bf16.mxu0 0
        %888 = vmatpush1.bf16.msra.mxu0 0
        %889 = vmatprep.subr.bf16.mxu0 0
        %890 = vmatpush1.bf16.msra.mxu0 0
        %891 = vmatprep.subr.bf16.mxu0 0
        %892 = vmatpush1.bf16.msra.mxu0 0
        %893 = vmatprep.subr.bf16.mxu0 0
        %894 = vmatpush1.bf16.msra.mxu0 %v885
        %895 = vmatprep.subr.bf16.mxu0 0
        %896 = vmatpush1.bf16.msra.mxu0 %v681
        %897 = vmatprep.subr.bf16.mxu0 0
        %898 = vmatpush1.bf16.msra.mxu0 %v680
        %899 = vmatprep.subr.bf16.mxu0 0
        %900 = vmatpush1.bf16.msra.mxu0 %v679
        %901 = vmatprep.subr.bf16.mxu0 0
        %902 = vmatpush1.bf16.msra.mxu0 %v678
        %903 = vmatprep.subr.bf16.mxu0 0
        %904 = vmatpush2.bf16.msra.mxu0 0
        %905 = vmatprep.subr.bf16.mxu0 0
        %906 = vmatpush2.bf16.msra.mxu0 0
        %907 = vmatprep.subr.bf16.mxu0 0
        %908 = vmatpush2.bf16.msra.mxu0 0
        %909 = vmatprep.subr.bf16.mxu0 0
        %910 = vmatpush2.bf16.msra.mxu0 0
        %911 = vmatprep.subr.bf16.mxu0 0
        %912 = vmatpush2.bf16.msra.mxu0 0
        %913 = vmatprep.subr.bf16.mxu0 0
        %914 = vmatpush2.bf16.msra.mxu0 0
        %915 = vmatprep.subr.bf16.mxu0 0
        %916 = vmatpush2.bf16.msra.mxu0 0
        %917 = vmatprep.subr.bf16.mxu0 0
        %918 = vmatpush2.bf16.msra.mxu0 0
        %919 = vmatprep.mubr.bf16.mxu0 0
        %920 = vmatmul.mubr.bf16.gmra.mxu0 %v689
        %v921 = vpop.f32.mrf.mxu0
        %v922 = vadd.f32 %v336, %v921
        %v923 = vpop.f32.mrf.mxu0
        %v924 = vpop.f32.mrf.mxu0
        %v925 = vadd.f32 %v336, %v924
        %v926 = vpop.f32.mrf.mxu0
        %927 = vmatprep.mubr.bf16.mxu0 0
        %928 = vmatmul.mubr.bf16.gmra.mxu0 %v692
        %v929 = vpop.f32.mrf.mxu0
        %v930 = vadd.f32 %v336, %v929
        %v931 = vpop.f32.mrf.mxu0
        %v932 = vpop.f32.mrf.mxu0
        %v933 = vadd.f32 %v336, %v932
        %v934 = vpop.f32.mrf.mxu0
        %935 = vmatprep.mubr.bf16.mxu0 0
        %936 = vmatmul.mubr.bf16.gmra.mxu0 %v695
        %v937 = vpop.f32.mrf.mxu0
        %v938 = vadd.f32 %v336, %v937
        %v939 = vpop.f32.mrf.mxu0
        %v940 = vpop.f32.mrf.mxu0
        %v941 = vadd.f32 %v336, %v940
        %v942 = vpop.f32.mrf.mxu0
        %943 = vmatprep.mubr.bf16.mxu0 0
        %944 = vmatmul.mubr.bf16.gmra.mxu0 %v698
        %v945 = vpop.f32.mrf.mxu0
        %v946 = vadd.f32 %v336, %v945
        %v947 = vpop.f32.mrf.mxu0
        %v948 = vpop.f32.mrf.mxu0
        %v949 = vadd.f32 %v336, %v948
        %v950 = vpop.f32.mrf.mxu0
        %951 = vmatprep.mubr.bf16.mxu0 0
        %952 = vmatmul.mubr.bf16.gmra.mxu0 %v701
        %v953 = vpop.f32.mrf.mxu0
        %v954 = vadd.f32 %v336, %v953
        %v955 = vpop.f32.mrf.mxu0
        %v956 = vpop.f32.mrf.mxu0
        %v957 = vadd.f32 %v336, %v956
        %v958 = vpop.f32.mrf.mxu0
        %959 = vmatprep.mubr.bf16.mxu0 0
        %960 = vmatmul.mubr.bf16.gmra.mxu0 %v704
        %v961 = vpop.f32.mrf.mxu0
        %v962 = vadd.f32 %v336, %v961
        %v963 = vpop.f32.mrf.mxu0
        %v964 = vpop.f32.mrf.mxu0
        %v965 = vadd.f32 %v336, %v964
        %v966 = vpop.f32.mrf.mxu0
        %967 = vmatprep.mubr.bf16.mxu0 0
        %968 = vmatmul.mubr.bf16.gmra.mxu0 %v707
        %v969 = vpop.f32.mrf.mxu0
        %v970 = vadd.f32 %v336, %v969
        %v971 = vpop.f32.mrf.mxu0
        %v972 = vpop.f32.mrf.mxu0
        %v973 = vadd.f32 %v336, %v972
        %v974 = vpop.f32.mrf.mxu0
        %975 = vmatprep.mubr.bf16.mxu0 0
        %976 = vmatmul.mubr.bf16.gmra.mxu0 %v710
        %v977 = vpop.f32.mrf.mxu0
        %v978 = vadd.f32 %v336, %v977
        %v979 = vpop.f32.mrf.mxu0
        %v980 = vpop.f32.mrf.mxu0
        %v981 = vadd.f32 %v336, %v980
        %v982 = vpop.f32.mrf.mxu0
        %983 = vmatprep.mubr.bf16.mxu0 0
        %984 = vmatmul.mubr.bf16.gmra.mxu0 %v713
        %v985 = vpop.f32.mrf.mxu0
        %v986 = vadd.f32 %v336, %v985
        %v987 = vpop.f32.mrf.mxu0
        %v988 = vpop.f32.mrf.mxu0
        %v989 = vadd.f32 %v336, %v988
        %v990 = vpop.f32.mrf.mxu0
        %991 = vmatprep.mubr.bf16.mxu0 0
        %992 = vmatmul.mubr.bf16.gmra.mxu0 %v716
        %v993 = vpop.f32.mrf.mxu0
        %v994 = vadd.f32 %v336, %v993
        %v995 = vpop.f32.mrf.mxu0
        %v996 = vpop.f32.mrf.mxu0
        %v997 = vadd.f32 %v336, %v996
        %v998 = vpop.f32.mrf.mxu0
        %999 = vmatprep.mubr.bf16.mxu0 0
        %1000 = vmatmul.mubr.bf16.gmra.mxu0 %v719
        %v1001 = vpop.f32.mrf.mxu0
        %v1002 = vadd.f32 %v336, %v1001
        %v1003 = vpop.f32.mrf.mxu0
        %v1004 = vpop.f32.mrf.mxu0
        %v1005 = vadd.f32 %v336, %v1004
        %v1006 = vpop.f32.mrf.mxu0
        %1007 = vmatprep.mubr.bf16.mxu0 0
        %1008 = vmatmul.mubr.bf16.gmra.mxu0 %v722
        %v1009 = vpop.f32.mrf.mxu0
        %v1010 = vadd.f32 %v336, %v1009
        %v1011 = vpop.f32.mrf.mxu0
        %v1012 = vpop.f32.mrf.mxu0
        %v1013 = vadd.f32 %v336, %v1012
        %v1014 = vpop.f32.mrf.mxu0
        %1015 = vmatprep.mubr.bf16.mxu0 0
        %1016 = vmatmul.mubr.bf16.gmra.mxu0 %v725
        %v1017 = vpop.f32.mrf.mxu0
        %v1018 = vadd.f32 %v336, %v1017
        %v1019 = vpop.f32.mrf.mxu0
        %v1020 = vpop.f32.mrf.mxu0
        %v1021 = vadd.f32 %v336, %v1020
        %v1022 = vpop.f32.mrf.mxu0
        %1023 = vmatprep.mubr.bf16.mxu0 0
        %1024 = vmatmul.mubr.bf16.gmra.mxu0 %v728
        %v1025 = vpop.f32.mrf.mxu0
        %v1026 = vadd.f32 %v336, %v1025
        %v1027 = vpop.f32.mrf.mxu0
        %v1028 = vpop.f32.mrf.mxu0
        %v1029 = vadd.f32 %v336, %v1028
        %v1030 = vpop.f32.mrf.mxu0
        %1031 = vmatprep.mubr.bf16.mxu0 0
        %1032 = vmatmul.mubr.bf16.gmra.mxu0 %v731
        %v1033 = vpop.f32.mrf.mxu0
        %v1034 = vadd.f32 %v336, %v1033
        %v1035 = vpop.f32.mrf.mxu0
        %v1036 = vpop.f32.mrf.mxu0
        %v1037 = vadd.f32 %v336, %v1036
        %v1038 = vpop.f32.mrf.mxu0
        %1039 = vmatprep.mubr.bf16.mxu0 0
        %1040 = vmatmul.mubr.bf16.gmra.mxu0 %v734
        %v1041 = vpop.f32.mrf.mxu0
        %v1042 = vadd.f32 %v336, %v1041
        %v1043 = vpop.f32.mrf.mxu0
        %v1044 = vpop.f32.mrf.mxu0
        %v1045 = vadd.f32 %v336, %v1044
        %v1046 = vpop.f32.mrf.mxu0
        %1047 = vmatprep.mubr.bf16.mxu0 0
        %1048 = vmatmul.mubr.bf16.gmra.mxu0 %v737
        %v1049 = vpop.f32.mrf.mxu0
        %v1050 = vadd.f32 %v336, %v1049
        %v1051 = vpop.f32.mrf.mxu0
        %v1052 = vpop.f32.mrf.mxu0
        %v1053 = vadd.f32 %v336, %v1052
        %v1054 = vpop.f32.mrf.mxu0
        %1055 = vmatprep.mubr.bf16.mxu0 0
        %1056 = vmatmul.mubr.bf16.gmra.mxu0 %v740
        %v1057 = vpop.f32.mrf.mxu0
        %v1058 = vadd.f32 %v336, %v1057
        %v1059 = vpop.f32.mrf.mxu0
        %v1060 = vpop.f32.mrf.mxu0
        %v1061 = vadd.f32 %v336, %v1060
        %v1062 = vpop.f32.mrf.mxu0
        %1063 = vmatprep.mubr.bf16.mxu0 0
        %1064 = vmatmul.mubr.bf16.gmra.mxu0 %v743
        %v1065 = vpop.f32.mrf.mxu0
        %v1066 = vadd.f32 %v336, %v1065
        %v1067 = vpop.f32.mrf.mxu0
        %v1068 = vpop.f32.mrf.mxu0
        %v1069 = vadd.f32 %v336, %v1068
        %v1070 = vpop.f32.mrf.mxu0
        %1071 = vmatprep.mubr.bf16.mxu0 0
        %1072 = vmatmul.mubr.bf16.gmra.mxu0 %v746
        %v1073 = vpop.f32.mrf.mxu0
        %v1074 = vadd.f32 %v336, %v1073
        %v1075 = vpop.f32.mrf.mxu0
        %v1076 = vpop.f32.mrf.mxu0
        %v1077 = vadd.f32 %v336, %v1076
        %v1078 = vpop.f32.mrf.mxu0
        %1079 = vmatprep.mubr.bf16.mxu0 0
        %1080 = vmatmul.mubr.bf16.gmra.mxu0 %v749
        %v1081 = vpop.f32.mrf.mxu0
        %v1082 = vadd.f32 %v336, %v1081
        %v1083 = vpop.f32.mrf.mxu0
        %v1084 = vpop.f32.mrf.mxu0
        %v1085 = vadd.f32 %v336, %v1084
        %v1086 = vpop.f32.mrf.mxu0
        %1087 = vmatprep.mubr.bf16.mxu0 0
        %1088 = vmatmul.mubr.bf16.gmra.mxu0 %v752
        %v1089 = vpop.f32.mrf.mxu0
        %v1090 = vadd.f32 %v336, %v1089
        %v1091 = vpop.f32.mrf.mxu0
        %v1092 = vpop.f32.mrf.mxu0
        %v1093 = vadd.f32 %v336, %v1092
        %v1094 = vpop.f32.mrf.mxu0
        %1095 = vmatprep.mubr.bf16.mxu0 0
        %1096 = vmatmul.mubr.bf16.gmra.mxu0 %v755
        %v1097 = vpop.f32.mrf.mxu0
        %v1098 = vadd.f32 %v336, %v1097
        %v1099 = vpop.f32.mrf.mxu0
        %v1100 = vpop.f32.mrf.mxu0
        %v1101 = vadd.f32 %v336, %v1100
        %v1102 = vpop.f32.mrf.mxu0
        %1103 = vmatprep.mubr.bf16.mxu0 0
        %1104 = vmatmul.mubr.bf16.gmra.mxu0 %v758
        %v1105 = vpop.f32.mrf.mxu0
        %v1106 = vadd.f32 %v336, %v1105
        %v1107 = vpop.f32.mrf.mxu0
        %v1108 = vpop.f32.mrf.mxu0
        %v1109 = vadd.f32 %v336, %v1108
        %v1110 = vpop.f32.mrf.mxu0
        %1111 = vmatprep.mubr.bf16.mxu0 0
        %1112 = vmatmul.mubr.bf16.gmra.mxu0 %v761
        %v1113 = vpop.f32.mrf.mxu0
        %v1114 = vadd.f32 %v336, %v1113
        %v1115 = vpop.f32.mrf.mxu0
        %v1116 = vpop.f32.mrf.mxu0
        %v1117 = vadd.f32 %v336, %v1116
        %v1118 = vpop.f32.mrf.mxu0
        %1119 = vmatprep.mubr.bf16.mxu0 0
        %1120 = vmatmul.mubr.bf16.gmra.mxu0 %v764
        %v1121 = vpop.f32.mrf.mxu0
        %v1122 = vadd.f32 %v336, %v1121
        %v1123 = vpop.f32.mrf.mxu0
        %v1124 = vpop.f32.mrf.mxu0
        %v1125 = vadd.f32 %v336, %v1124
        %v1126 = vpop.f32.mrf.mxu0
        %1127 = vmatprep.mubr.bf16.mxu0 0
        %1128 = vmatmul.mubr.bf16.gmra.mxu0 %v767
        %v1129 = vpop.f32.mrf.mxu0
        %v1130 = vadd.f32 %v336, %v1129
        %v1131 = vpop.f32.mrf.mxu0
        %v1132 = vpop.f32.mrf.mxu0
        %v1133 = vadd.f32 %v336, %v1132
        %v1134 = vpop.f32.mrf.mxu0
        %1135 = vmatprep.mubr.bf16.mxu0 0
        %1136 = vmatmul.mubr.bf16.gmra.mxu0 %v770
        %v1137 = vpop.f32.mrf.mxu0
        %v1138 = vadd.f32 %v336, %v1137
        %v1139 = vpop.f32.mrf.mxu0
        %v1140 = vpop.f32.mrf.mxu0
        %v1141 = vadd.f32 %v336, %v1140
        %v1142 = vpop.f32.mrf.mxu0
        %1143 = vmatprep.mubr.bf16.mxu0 0
        %1144 = vmatmul.mubr.bf16.gmra.mxu0 %v773
        %v1145 = vpop.f32.mrf.mxu0
        %v1146 = vadd.f32 %v336, %v1145
        %v1147 = vpop.f32.mrf.mxu0
        %v1148 = vpop.f32.mrf.mxu0
        %v1149 = vadd.f32 %v336, %v1148
        %v1150 = vpop.f32.mrf.mxu0
        %1151 = vmatprep.mubr.bf16.mxu0 0
        %1152 = vmatmul.mubr.bf16.gmra.mxu0 %v776
        %v1153 = vpop.f32.mrf.mxu0
        %v1154 = vadd.f32 %v336, %v1153
        %v1155 = vpop.f32.mrf.mxu0
        %v1156 = vpop.f32.mrf.mxu0
        %v1157 = vadd.f32 %v336, %v1156
        %v1158 = vpop.f32.mrf.mxu0
        %1159 = vmatprep.mubr.bf16.mxu0 0
        %1160 = vmatmul.mubr.bf16.gmra.mxu0 %v779
        %v1161 = vpop.f32.mrf.mxu0
        %v1162 = vadd.f32 %v336, %v1161
        %v1163 = vpop.f32.mrf.mxu0
        %v1164 = vpop.f32.mrf.mxu0
        %v1165 = vadd.f32 %v336, %v1164
        %v1166 = vpop.f32.mrf.mxu0
        %1167 = vmatprep.mubr.bf16.mxu0 0
        %1168 = vmatmul.mubr.bf16.gmra.mxu0 %v782
        %v1169 = vpop.f32.mrf.mxu0
        %v1170 = vadd.f32 %v336, %v1169
        %v1171 = vpop.f32.mrf.mxu0
        %v1172 = vpop.f32.mrf.mxu0
        %v1173 = vadd.f32 %v336, %v1172
        %v1174 = vpop.f32.mrf.mxu0
        %1175 = vmatprep.mubr.bf16.mxu0 0
        %1176 = vmatmul.mubr.bf16.gmra.mxu0 %v785
        %v1177 = vpop.f32.mrf.mxu0
        %v1178 = vadd.f32 %v336, %v1177
        %v1179 = vpop.f32.mrf.mxu0
        %v1180 = vpop.f32.mrf.mxu0
        %v1181 = vadd.f32 %v336, %v1180
        %v1182 = vpop.f32.mrf.mxu0
        %1183 = vmatprep.mubr.bf16.mxu0 0
        %1184 = vmatmul.mubr.bf16.gmra.mxu0 %v788
        %v1185 = vpop.f32.mrf.mxu0
        %v1186 = vadd.f32 %v336, %v1185
        %v1187 = vpop.f32.mrf.mxu0
        %v1188 = vpop.f32.mrf.mxu0
        %v1189 = vadd.f32 %v336, %v1188
        %v1190 = vpop.f32.mrf.mxu0
        %1191 = vmatprep.mubr.bf16.mxu0 0
        %1192 = vmatmul.mubr.bf16.gmra.mxu0 %v791
        %v1193 = vpop.f32.mrf.mxu0
        %v1194 = vadd.f32 %v336, %v1193
        %v1195 = vpop.f32.mrf.mxu0
        %v1196 = vpop.f32.mrf.mxu0
        %v1197 = vadd.f32 %v336, %v1196
        %v1198 = vpop.f32.mrf.mxu0
        %1199 = vmatprep.mubr.bf16.mxu0 0
        %1200 = vmatmul.mubr.bf16.gmra.mxu0 %v794
        %v1201 = vpop.f32.mrf.mxu0
        %v1202 = vadd.f32 %v336, %v1201
        %v1203 = vpop.f32.mrf.mxu0
        %v1204 = vpop.f32.mrf.mxu0
        %v1205 = vadd.f32 %v336, %v1204
        %v1206 = vpop.f32.mrf.mxu0
        %1207 = vmatprep.mubr.bf16.mxu0 0
        %1208 = vmatmul.mubr.bf16.gmra.mxu0 %v797
        %v1209 = vpop.f32.mrf.mxu0
        %v1210 = vadd.f32 %v336, %v1209
        %v1211 = vpop.f32.mrf.mxu0
        %v1212 = vpop.f32.mrf.mxu0
        %v1213 = vadd.f32 %v336, %v1212
        %v1214 = vpop.f32.mrf.mxu0
        %1215 = vmatprep.mubr.bf16.mxu0 0
        %1216 = vmatmul.mubr.bf16.gmra.mxu0 %v800
        %v1217 = vpop.f32.mrf.mxu0
        %v1218 = vadd.f32 %v336, %v1217
        %v1219 = vpop.f32.mrf.mxu0
        %v1220 = vpop.f32.mrf.mxu0
        %v1221 = vadd.f32 %v336, %v1220
        %v1222 = vpop.f32.mrf.mxu0
        %1223 = vmatprep.mubr.bf16.mxu0 0
        %1224 = vmatmul.mubr.bf16.gmra.mxu0 %v803
        %v1225 = vpop.f32.mrf.mxu0
        %v1226 = vadd.f32 %v336, %v1225
        %v1227 = vpop.f32.mrf.mxu0
        %v1228 = vpop.f32.mrf.mxu0
        %v1229 = vadd.f32 %v336, %v1228
        %v1230 = vpop.f32.mrf.mxu0
        %1231 = vmatprep.mubr.bf16.mxu0 0
        %1232 = vmatmul.mubr.bf16.gmra.mxu0 %v806
        %v1233 = vpop.f32.mrf.mxu0
        %v1234 = vadd.f32 %v336, %v1233
        %v1235 = vpop.f32.mrf.mxu0
        %v1236 = vpop.f32.mrf.mxu0
        %v1237 = vadd.f32 %v336, %v1236
        %v1238 = vpop.f32.mrf.mxu0
        %1239 = vmatprep.mubr.bf16.mxu0 0
        %1240 = vmatmul.mubr.bf16.gmra.mxu0 %v809
        %v1241 = vpop.f32.mrf.mxu0
        %v1242 = vadd.f32 %v336, %v1241
        %v1243 = vpop.f32.mrf.mxu0
        %v1244 = vpop.f32.mrf.mxu0
        %v1245 = vadd.f32 %v336, %v1244
        %v1246 = vpop.f32.mrf.mxu0
        %1247 = vmatprep.mubr.bf16.mxu0 0
        %1248 = vmatmul.mubr.bf16.gmra.mxu0 %v812
        %v1249 = vpop.f32.mrf.mxu0
        %v1250 = vadd.f32 %v336, %v1249
        %v1251 = vpop.f32.mrf.mxu0
        %v1252 = vpop.f32.mrf.mxu0
        %v1253 = vadd.f32 %v336, %v1252
        %v1254 = vpop.f32.mrf.mxu0
        %1255 = vmatprep.mubr.bf16.mxu0 0
        %1256 = vmatmul.mubr.bf16.gmra.mxu0 %v815
        %v1257 = vpop.f32.mrf.mxu0
        %v1258 = vadd.f32 %v336, %v1257
        %v1259 = vpop.f32.mrf.mxu0
        %v1260 = vpop.f32.mrf.mxu0
        %v1261 = vadd.f32 %v336, %v1260
        %v1262 = vpop.f32.mrf.mxu0
        %1263 = vmatprep.mubr.bf16.mxu0 0
        %1264 = vmatmul.mubr.bf16.gmra.mxu0 %v818
        %v1265 = vpop.f32.mrf.mxu0
        %v1266 = vadd.f32 %v336, %v1265
        %v1267 = vpop.f32.mrf.mxu0
        %v1268 = vpop.f32.mrf.mxu0
        %v1269 = vadd.f32 %v336, %v1268
        %v1270 = vpop.f32.mrf.mxu0
        %1271 = vmatprep.mubr.bf16.mxu0 0
        %1272 = vmatmul.mubr.bf16.gmra.mxu0 %v821
        %v1273 = vpop.f32.mrf.mxu0
        %v1274 = vadd.f32 %v336, %v1273
        %v1275 = vpop.f32.mrf.mxu0
        %v1276 = vpop.f32.mrf.mxu0
        %v1277 = vadd.f32 %v336, %v1276
        %v1278 = vpop.f32.mrf.mxu0
        %1279 = vmatprep.mubr.bf16.mxu0 0
        %1280 = vmatmul.mubr.bf16.gmra.mxu0 %v824
        %v1281 = vpop.f32.mrf.mxu0
        %v1282 = vadd.f32 %v336, %v1281
        %v1283 = vpop.f32.mrf.mxu0
        %v1284 = vpop.f32.mrf.mxu0
        %v1285 = vadd.f32 %v336, %v1284
        %v1286 = vpop.f32.mrf.mxu0
        %1287 = vmatprep.mubr.bf16.mxu0 0
        %1288 = vmatmul.mubr.bf16.gmra.mxu0 %v827
        %v1289 = vpop.f32.mrf.mxu0
        %v1290 = vadd.f32 %v336, %v1289
        %v1291 = vpop.f32.mrf.mxu0
        %v1292 = vpop.f32.mrf.mxu0
        %v1293 = vadd.f32 %v336, %v1292
        %v1294 = vpop.f32.mrf.mxu0
        %1295 = vmatprep.mubr.bf16.mxu0 0
        %1296 = vmatmul.mubr.bf16.gmra.mxu0 %v830
        %v1297 = vpop.f32.mrf.mxu0
        %v1298 = vadd.f32 %v336, %v1297
        %v1299 = vpop.f32.mrf.mxu0
        %v1300 = vpop.f32.mrf.mxu0
        %v1301 = vadd.f32 %v336, %v1300
        %v1302 = vpop.f32.mrf.mxu0
        %1303 = vmatprep.mubr.bf16.mxu0 0
        %1304 = vmatmul.mubr.bf16.gmra.mxu0 %v833
        %v1305 = vpop.f32.mrf.mxu0
        %v1306 = vadd.f32 %v336, %v1305
        %v1307 = vpop.f32.mrf.mxu0
        %v1308 = vpop.f32.mrf.mxu0
        %v1309 = vadd.f32 %v336, %v1308
        %v1310 = vpop.f32.mrf.mxu0
        %1311 = vmatprep.mubr.bf16.mxu0 0
        %1312 = vmatmul.mubr.bf16.gmra.mxu0 %v836
        %v1313 = vpop.f32.mrf.mxu0
        %v1314 = vadd.f32 %v336, %v1313
        %v1315 = vpop.f32.mrf.mxu0
        %v1316 = vpop.f32.mrf.mxu0
        %v1317 = vadd.f32 %v336, %v1316
        %v1318 = vpop.f32.mrf.mxu0
        %1319 = vmatprep.mubr.bf16.mxu0 0
        %1320 = vmatmul.mubr.bf16.gmra.mxu0 %v839
        %v1321 = vpop.f32.mrf.mxu0
        %v1322 = vadd.f32 %v336, %v1321
        %v1323 = vpop.f32.mrf.mxu0
        %v1324 = vpop.f32.mrf.mxu0
        %v1325 = vadd.f32 %v336, %v1324
        %v1326 = vpop.f32.mrf.mxu0
        %1327 = vmatprep.mubr.bf16.mxu0 0
        %1328 = vmatmul.mubr.bf16.gmra.mxu0 %v842
        %v1329 = vpop.f32.mrf.mxu0
        %v1330 = vadd.f32 %v336, %v1329
        %v1331 = vpop.f32.mrf.mxu0
        %v1332 = vpop.f32.mrf.mxu0
        %v1333 = vadd.f32 %v336, %v1332
        %v1334 = vpop.f32.mrf.mxu0
        %1335 = vmatprep.mubr.bf16.mxu0 0
        %1336 = vmatmul.mubr.bf16.gmra.mxu0 %v845
        %v1337 = vpop.f32.mrf.mxu0
        %v1338 = vadd.f32 %v336, %v1337
        %v1339 = vpop.f32.mrf.mxu0
        %v1340 = vpop.f32.mrf.mxu0
        %v1341 = vadd.f32 %v336, %v1340
        %v1342 = vpop.f32.mrf.mxu0
        %1343 = vmatprep.mubr.bf16.mxu0 0
        %1344 = vmatmul.mubr.bf16.gmra.mxu0 %v848
        %v1345 = vpop.f32.mrf.mxu0
        %v1346 = vadd.f32 %v336, %v1345
        %v1347 = vpop.f32.mrf.mxu0
        %v1348 = vpop.f32.mrf.mxu0
        %v1349 = vadd.f32 %v336, %v1348
        %v1350 = vpop.f32.mrf.mxu0
        %1351 = vmatprep.mubr.bf16.mxu0 0
        %1352 = vmatmul.mubr.bf16.gmra.mxu0 %v851
        %v1353 = vpop.f32.mrf.mxu0
        %v1354 = vadd.f32 %v336, %v1353
        %v1355 = vpop.f32.mrf.mxu0
        %v1356 = vpop.f32.mrf.mxu0
        %v1357 = vadd.f32 %v336, %v1356
        %v1358 = vpop.f32.mrf.mxu0
        %1359 = vmatprep.mubr.bf16.mxu0 0
        %1360 = vmatmul.mubr.bf16.gmra.mxu0 %v854
        %v1361 = vpop.f32.mrf.mxu0
        %v1362 = vadd.f32 %v336, %v1361
        %v1363 = vpop.f32.mrf.mxu0
        %v1364 = vpop.f32.mrf.mxu0
        %v1365 = vadd.f32 %v336, %v1364
        %v1366 = vpop.f32.mrf.mxu0
        %1367 = vmatprep.mubr.bf16.mxu0 0
        %1368 = vmatmul.mubr.bf16.gmra.mxu0 %v857
        %v1369 = vpop.f32.mrf.mxu0
        %v1370 = vadd.f32 %v336, %v1369
        %v1371 = vpop.f32.mrf.mxu0
        %v1372 = vpop.f32.mrf.mxu0
        %v1373 = vadd.f32 %v336, %v1372
        %v1374 = vpop.f32.mrf.mxu0
        %1375 = vmatprep.mubr.bf16.mxu0 0
        %1376 = vmatmul.mubr.bf16.gmra.mxu0 %v860
        %v1377 = vpop.f32.mrf.mxu0
        %v1378 = vadd.f32 %v336, %v1377
        %v1379 = vpop.f32.mrf.mxu0
        %v1380 = vpop.f32.mrf.mxu0
        %v1381 = vadd.f32 %v336, %v1380
        %v1382 = vpop.f32.mrf.mxu0
        %1383 = vmatprep.mubr.bf16.mxu0 0
        %1384 = vmatmul.mubr.bf16.gmra.mxu0 %v863
        %v1385 = vpop.f32.mrf.mxu0
        %v1386 = vadd.f32 %v336, %v1385
        %v1387 = vpop.f32.mrf.mxu0
        %v1388 = vpop.f32.mrf.mxu0
        %v1389 = vadd.f32 %v336, %v1388
        %v1390 = vpop.f32.mrf.mxu0
        %1391 = vmatprep.mubr.bf16.mxu0 0
        %1392 = vmatmul.mubr.bf16.gmra.mxu0 %v866
        %v1393 = vpop.f32.mrf.mxu0
        %v1394 = vadd.f32 %v336, %v1393
        %v1395 = vpop.f32.mrf.mxu0
        %v1396 = vpop.f32.mrf.mxu0
        %v1397 = vadd.f32 %v336, %v1396
        %v1398 = vpop.f32.mrf.mxu0
        %1399 = vmatprep.mubr.bf16.mxu0 0
        %1400 = vmatmul.mubr.bf16.gmra.mxu0 %v869
        %v1401 = vpop.f32.mrf.mxu0
        %v1402 = vadd.f32 %v336, %v1401
        %v1403 = vpop.f32.mrf.mxu0
        %v1404 = vpop.f32.mrf.mxu0
        %v1405 = vadd.f32 %v336, %v1404
        %v1406 = vpop.f32.mrf.mxu0
        %1407 = vmatprep.mubr.bf16.mxu0 0
        %1408 = vmatmul.mubr.bf16.gmra.mxu0 %v872
        %v1409 = vpop.f32.mrf.mxu0
        %v1410 = vadd.f32 %v336, %v1409
        %v1411 = vpop.f32.mrf.mxu0
        %v1412 = vpop.f32.mrf.mxu0
        %v1413 = vadd.f32 %v336, %v1412
        %v1414 = vpop.f32.mrf.mxu0
        %1415 = vmatprep.mubr.bf16.mxu0 0
        %1416 = vmatmul.mubr.bf16.gmra.mxu0 %v875
        %v1417 = vpop.f32.mrf.mxu0
        %v1418 = vadd.f32 %v336, %v1417
        %v1419 = vpop.f32.mrf.mxu0
        %v1420 = vpop.f32.mrf.mxu0
        %v1421 = vadd.f32 %v336, %v1420
        %v1422 = vpop.f32.mrf.mxu0
        %1423 = vmatprep.mubr.bf16.mxu0 0
        %1424 = vmatmul.mubr.bf16.gmra.mxu0 %v878
        %v1425 = vpop.f32.mrf.mxu0
        %v1426 = vadd.f32 %v336, %v1425
        %v1427 = vpop.f32.mrf.mxu0
        %v1428 = vpop.f32.mrf.mxu0
        %v1429 = vadd.f32 %v336, %v1428
        %v1430 = vpop.f32.mrf.mxu0
        %1431 = vdwg.mxu0
        %v1432 = vmax.f32 %v922, 0.0
        %v1433 = vmax.f32 %v925, 0.0
        %v1434 = vmax.f32 %v930, 0.0
        %v1435 = vmax.f32 %v933, 0.0
        %v1436 = vmax.f32 %v938, 0.0
        %v1437 = vmax.f32 %v941, 0.0
        %v1438 = vmax.f32 %v946, 0.0
        %v1439 = vmax.f32 %v949, 0.0
        %v1440 = vmax.f32 %v954, 0.0
        %v1441 = vmax.f32 %v957, 0.0
        %v1442 = vmax.f32 %v962, 0.0
        %v1443 = vmax.f32 %v965, 0.0
        %v1444 = vmax.f32 %v970, 0.0
        %v1445 = vmax.f32 %v973, 0.0
        %v1446 = vmax.f32 %v978, 0.0
        %v1447 = vmax.f32 %v981, 0.0
        %v1448 = vmax.f32 %v986, 0.0
        %v1449 = vmax.f32 %v989, 0.0
        %v1450 = vmax.f32 %v994, 0.0
        %v1451 = vmax.f32 %v997, 0.0
        %v1452 = vmax.f32 %v1002, 0.0
        %v1453 = vmax.f32 %v1005, 0.0
        %v1454 = vmax.f32 %v1010, 0.0
        %v1455 = vmax.f32 %v1013, 0.0
        %v1456 = vmax.f32 %v1018, 0.0
        %v1457 = vmax.f32 %v1021, 0.0
        %v1458 = vmax.f32 %v1026, 0.0
        %v1459 = vmax.f32 %v1029, 0.0
        %v1460 = vmax.f32 %v1034, 0.0
        %v1461 = vmax.f32 %v1037, 0.0
        %v1462 = vmax.f32 %v1042, 0.0
        %v1463 = vmax.f32 %v1045, 0.0
        %v1464 = vmax.f32 %v1050, 0.0
        %v1465 = vmax.f32 %v1053, 0.0
        %v1466 = vmax.f32 %v1058, 0.0
        %v1467 = vmax.f32 %v1061, 0.0
        %v1468 = vmax.f32 %v1066, 0.0
        %v1469 = vmax.f32 %v1069, 0.0
        %v1470 = vmax.f32 %v1074, 0.0
        %v1471 = vmax.f32 %v1077, 0.0
        %v1472 = vmax.f32 %v1082, 0.0
        %v1473 = vmax.f32 %v1085, 0.0
        %v1474 = vmax.f32 %v1090, 0.0
        %v1475 = vmax.f32 %v1093, 0.0
        %v1476 = vmax.f32 %v1098, 0.0
        %v1477 = vmax.f32 %v1101, 0.0
        %v1478 = vmax.f32 %v1106, 0.0
        %v1479 = vmax.f32 %v1109, 0.0
        %v1480 = vmax.f32 %v1114, 0.0
        %v1481 = vmax.f32 %v1117, 0.0
        %v1482 = vmax.f32 %v1122, 0.0
        %v1483 = vmax.f32 %v1125, 0.0
        %v1484 = vmax.f32 %v1130, 0.0
        %v1485 = vmax.f32 %v1133, 0.0
        %v1486 = vmax.f32 %v1138, 0.0
        %v1487 = vmax.f32 %v1141, 0.0
        %v1488 = vmax.f32 %v1146, 0.0
        %v1489 = vmax.f32 %v1149, 0.0
        %v1490 = vmax.f32 %v1154, 0.0
        %v1491 = vmax.f32 %v1157, 0.0
        %v1492 = vmax.f32 %v1162, 0.0
        %v1493 = vmax.f32 %v1165, 0.0
        %v1494 = vmax.f32 %v1170, 0.0
        %v1495 = vmax.f32 %v1173, 0.0
        %v1496 = vmax.f32 %v1178, 0.0
        %v1497 = vmax.f32 %v1181, 0.0
        %v1498 = vmax.f32 %v1186, 0.0
        %v1499 = vmax.f32 %v1189, 0.0
        %v1500 = vmax.f32 %v1194, 0.0
        %v1501 = vmax.f32 %v1197, 0.0
        %v1502 = vmax.f32 %v1202, 0.0
        %v1503 = vmax.f32 %v1205, 0.0
        %v1504 = vmax.f32 %v1210, 0.0
        %v1505 = vmax.f32 %v1213, 0.0
        %v1506 = vmax.f32 %v1218, 0.0
        %v1507 = vmax.f32 %v1221, 0.0
        %v1508 = vmax.f32 %v1226, 0.0
        %v1509 = vmax.f32 %v1229, 0.0
        %v1510 = vmax.f32 %v1234, 0.0
        %v1511 = vmax.f32 %v1237, 0.0
        %v1512 = vmax.f32 %v1242, 0.0
        %v1513 = vmax.f32 %v1245, 0.0
        %v1514 = vmax.f32 %v1250, 0.0
        %v1515 = vmax.f32 %v1253, 0.0
        %v1516 = vmax.f32 %v1258, 0.0
        %v1517 = vmax.f32 %v1261, 0.0
        %v1518 = vmax.f32 %v1266, 0.0
        %v1519 = vmax.f32 %v1269, 0.0
        %v1520 = vmax.f32 %v1274, 0.0
        %v1521 = vmax.f32 %v1277, 0.0
        %v1522 = vmax.f32 %v1282, 0.0
        %v1523 = vmax.f32 %v1285, 0.0
        %v1524 = vmax.f32 %v1290, 0.0
        %v1525 = vmax.f32 %v1293, 0.0
        %v1526 = vmax.f32 %v1298, 0.0
        %v1527 = vmax.f32 %v1301, 0.0
        %v1528 = vmax.f32 %v1306, 0.0
        %v1529 = vmax.f32 %v1309, 0.0
        %v1530 = vmax.f32 %v1314, 0.0
        %v1531 = vmax.f32 %v1317, 0.0
        %v1532 = vmax.f32 %v1322, 0.0
        %v1533 = vmax.f32 %v1325, 0.0
        %v1534 = vmax.f32 %v1330, 0.0
        %v1535 = vmax.f32 %v1333, 0.0
        %v1536 = vmax.f32 %v1338, 0.0
        %v1537 = vmax.f32 %v1341, 0.0
        %v1538 = vmax.f32 %v1346, 0.0
        %v1539 = vmax.f32 %v1349, 0.0
        %v1540 = vmax.f32 %v1354, 0.0
        %v1541 = vmax.f32 %v1357, 0.0
        %v1542 = vmax.f32 %v1362, 0.0
        %v1543 = vmax.f32 %v1365, 0.0
        %v1544 = vmax.f32 %v1370, 0.0
        %v1545 = vmax.f32 %v1373, 0.0
        %v1546 = vmax.f32 %v1378, 0.0
        %v1547 = vmax.f32 %v1381, 0.0
        %v1548 = vmax.f32 %v1386, 0.0
        %v1549 = vmax.f32 %v1389, 0.0
        %v1550 = vmax.f32 %v1394, 0.0
        %v1551 = vmax.f32 %v1397, 0.0
        %v1552 = vmax.f32 %v1402, 0.0
        %v1553 = vmax.f32 %v1405, 0.0
        %v1554 = vmax.f32 %v1410, 0.0
        %v1555 = vmax.f32 %v1413, 0.0
        %v1556 = vmax.f32 %v1418, 0.0
        %v1557 = vmax.f32 %v1421, 0.0
        %v1558 = vmax.f32 %v1426, 0.0
        %v1559 = vmax.f32 %v1429, 0.0
        %v1560 = vpack.c.bf16 %v1433, %v1432
        %v1561 = vpack.c.bf16 %v1435, %v1434
        %v1562 = vpack.c.bf16 %v1437, %v1436
        %v1563 = vpack.c.bf16 %v1439, %v1438
        %v1564 = vpack.c.bf16 %v1441, %v1440
        %v1565 = vpack.c.bf16 %v1443, %v1442
        %v1566 = vpack.c.bf16 %v1445, %v1444
        %v1567 = vpack.c.bf16 %v1447, %v1446
        %v1568 = vpack.c.bf16 %v1449, %v1448
        %v1569 = vpack.c.bf16 %v1451, %v1450
        %v1570 = vpack.c.bf16 %v1453, %v1452
        %v1571 = vpack.c.bf16 %v1455, %v1454
        %v1572 = vpack.c.bf16 %v1457, %v1456
        %v1573 = vpack.c.bf16 %v1459, %v1458
        %v1574 = vpack.c.bf16 %v1461, %v1460
        %v1575 = vpack.c.bf16 %v1463, %v1462
        %v1576 = vpack.c.bf16 %v1465, %v1464
        %v1577 = vpack.c.bf16 %v1467, %v1466
        %v1578 = vpack.c.bf16 %v1469, %v1468
        %v1579 = vpack.c.bf16 %v1471, %v1470
        %v1580 = vpack.c.bf16 %v1473, %v1472
        %v1581 = vpack.c.bf16 %v1475, %v1474
        %v1582 = vpack.c.bf16 %v1477, %v1476
        %v1583 = vpack.c.bf16 %v1479, %v1478
        %v1584 = vpack.c.bf16 %v1481, %v1480
        %v1585 = vpack.c.bf16 %v1483, %v1482
        %v1586 = vpack.c.bf16 %v1485, %v1484
        %v1587 = vpack.c.bf16 %v1487, %v1486
        %v1588 = vpack.c.bf16 %v1489, %v1488
        %v1589 = vpack.c.bf16 %v1491, %v1490
        %v1590 = vpack.c.bf16 %v1493, %v1492
        %v1591 = vpack.c.bf16 %v1495, %v1494
        %v1592 = vpack.c.bf16 %v1497, %v1496
        %v1593 = vpack.c.bf16 %v1499, %v1498
        %v1594 = vpack.c.bf16 %v1501, %v1500
        %v1595 = vpack.c.bf16 %v1503, %v1502
        %v1596 = vpack.c.bf16 %v1505, %v1504
        %v1597 = vpack.c.bf16 %v1507, %v1506
        %v1598 = vpack.c.bf16 %v1509, %v1508
        %v1599 = vpack.c.bf16 %v1511, %v1510
        %v1600 = vpack.c.bf16 %v1513, %v1512
        %v1601 = vpack.c.bf16 %v1515, %v1514
        %v1602 = vpack.c.bf16 %v1517, %v1516
        %v1603 = vpack.c.bf16 %v1519, %v1518
        %v1604 = vpack.c.bf16 %v1521, %v1520
        %v1605 = vpack.c.bf16 %v1523, %v1522
        %v1606 = vpack.c.bf16 %v1525, %v1524
        %v1607 = vpack.c.bf16 %v1527, %v1526
        %v1608 = vpack.c.bf16 %v1529, %v1528
        %v1609 = vpack.c.bf16 %v1531, %v1530
        %v1610 = vpack.c.bf16 %v1533, %v1532
        %v1611 = vpack.c.bf16 %v1535, %v1534
        %v1612 = vpack.c.bf16 %v1537, %v1536
        %v1613 = vpack.c.bf16 %v1539, %v1538
        %v1614 = vpack.c.bf16 %v1541, %v1540
        %v1615 = vpack.c.bf16 %v1543, %v1542
        %v1616 = vpack.c.bf16 %v1545, %v1544
        %v1617 = vpack.c.bf16 %v1547, %v1546
        %v1618 = vpack.c.bf16 %v1549, %v1548
        %v1619 = vpack.c.bf16 %v1551, %v1550
        %v1620 = vpack.c.bf16 %v1553, %v1552
        %v1621 = vpack.c.bf16 %v1555, %v1554
        %v1622 = vpack.c.bf16 %v1557, %v1556
        %v1623 = vpack.c.bf16 %v1559, %v1558
        %v1688 = vunpack.c.l.b16 %v1560
        %v1689 = vunpack.c.h.b16 %v1560
        %v1690 = vunpack.c.l.b16 %v1561
        %v1691 = vunpack.c.h.b16 %v1561
        %v1692 = vunpack.c.l.b16 %v1562
        %v1693 = vunpack.c.h.b16 %v1562
        %v1694 = vunpack.c.l.b16 %v1563
        %v1695 = vunpack.c.h.b16 %v1563
        %v1696 = vunpack.c.l.b16 %v1564
        %v1697 = vunpack.c.h.b16 %v1564
        %v1698 = vunpack.c.l.b16 %v1565
        %v1699 = vunpack.c.h.b16 %v1565
        %v1700 = vunpack.c.l.b16 %v1566
        %v1701 = vunpack.c.h.b16 %v1566
        %v1702 = vunpack.c.l.b16 %v1567
        %v1703 = vunpack.c.h.b16 %v1567
        %v1704 = vunpack.c.l.b16 %v1568
        %v1705 = vunpack.c.h.b16 %v1568
        %v1706 = vunpack.c.l.b16 %v1569
        %v1707 = vunpack.c.h.b16 %v1569
        %v1708 = vunpack.c.l.b16 %v1570
        %v1709 = vunpack.c.h.b16 %v1570
        %v1710 = vunpack.c.l.b16 %v1571
        %v1711 = vunpack.c.h.b16 %v1571
        %v1712 = vunpack.c.l.b16 %v1572
        %v1713 = vunpack.c.h.b16 %v1572
        %v1714 = vunpack.c.l.b16 %v1573
        %v1715 = vunpack.c.h.b16 %v1573
        %v1716 = vunpack.c.l.b16 %v1574
        %v1717 = vunpack.c.h.b16 %v1574
        %v1718 = vunpack.c.l.b16 %v1575
        %v1719 = vunpack.c.h.b16 %v1575
        %v1720 = vunpack.c.l.b16 %v1576
        %v1721 = vunpack.c.h.b16 %v1576
        %v1722 = vunpack.c.l.b16 %v1577
        %v1723 = vunpack.c.h.b16 %v1577
        %v1724 = vunpack.c.l.b16 %v1578
        %v1725 = vunpack.c.h.b16 %v1578
        %v1726 = vunpack.c.l.b16 %v1579
        %v1727 = vunpack.c.h.b16 %v1579
        %v1728 = vunpack.c.l.b16 %v1580
        %v1729 = vunpack.c.h.b16 %v1580
        %v1730 = vunpack.c.l.b16 %v1581
        %v1731 = vunpack.c.h.b16 %v1581
        %v1732 = vunpack.c.l.b16 %v1582
        %v1733 = vunpack.c.h.b16 %v1582
        %v1734 = vunpack.c.l.b16 %v1583
        %v1735 = vunpack.c.h.b16 %v1583
        %v1736 = vunpack.c.l.b16 %v1584
        %v1737 = vunpack.c.h.b16 %v1584
        %v1738 = vunpack.c.l.b16 %v1585
        %v1739 = vunpack.c.h.b16 %v1585
        %v1740 = vunpack.c.l.b16 %v1586
        %v1741 = vunpack.c.h.b16 %v1586
        %v1742 = vunpack.c.l.b16 %v1587
        %v1743 = vunpack.c.h.b16 %v1587
        %v1744 = vunpack.c.l.b16 %v1588
        %v1745 = vunpack.c.h.b16 %v1588
        %v1746 = vunpack.c.l.b16 %v1589
        %v1747 = vunpack.c.h.b16 %v1589
        %v1748 = vunpack.c.l.b16 %v1590
        %v1749 = vunpack.c.h.b16 %v1590
        %v1750 = vunpack.c.l.b16 %v1591
        %v1751 = vunpack.c.h.b16 %v1591
        %v1752 = vunpack.c.l.b16 %v1592
        %v1753 = vunpack.c.h.b16 %v1592
        %v1754 = vunpack.c.l.b16 %v1593
        %v1755 = vunpack.c.h.b16 %v1593
        %v1756 = vunpack.c.l.b16 %v1594
        %v1757 = vunpack.c.h.b16 %v1594
        %v1758 = vunpack.c.l.b16 %v1595
        %v1759 = vunpack.c.h.b16 %v1595
        %v1760 = vunpack.c.l.b16 %v1596
        %v1761 = vunpack.c.h.b16 %v1596
        %v1762 = vunpack.c.l.b16 %v1597
        %v1763 = vunpack.c.h.b16 %v1597
        %v1764 = vunpack.c.l.b16 %v1598
        %v1765 = vunpack.c.h.b16 %v1598
        %v1766 = vunpack.c.l.b16 %v1599
        %v1767 = vunpack.c.h.b16 %v1599
        %v1768 = vunpack.c.l.b16 %v1600
        %v1769 = vunpack.c.h.b16 %v1600
        %v1770 = vunpack.c.l.b16 %v1601
        %v1771 = vunpack.c.h.b16 %v1601
        %v1772 = vunpack.c.l.b16 %v1602
        %v1773 = vunpack.c.h.b16 %v1602
        %v1774 = vunpack.c.l.b16 %v1603
        %v1775 = vunpack.c.h.b16 %v1603
        %v1776 = vunpack.c.l.b16 %v1604
        %v1777 = vunpack.c.h.b16 %v1604
        %v1778 = vunpack.c.l.b16 %v1605
        %v1779 = vunpack.c.h.b16 %v1605
        %v1780 = vunpack.c.l.b16 %v1606
        %v1781 = vunpack.c.h.b16 %v1606
        %v1782 = vunpack.c.l.b16 %v1607
        %v1783 = vunpack.c.h.b16 %v1607
        %v1784 = vunpack.c.l.b16 %v1608
        %v1785 = vunpack.c.h.b16 %v1608
        %v1786 = vunpack.c.l.b16 %v1609
        %v1787 = vunpack.c.h.b16 %v1609
        %v1788 = vunpack.c.l.b16 %v1610
        %v1789 = vunpack.c.h.b16 %v1610
        %v1790 = vunpack.c.l.b16 %v1611
        %v1791 = vunpack.c.h.b16 %v1611
        %v1792 = vunpack.c.l.b16 %v1612
        %v1793 = vunpack.c.h.b16 %v1612
        %v1794 = vunpack.c.l.b16 %v1613
        %v1795 = vunpack.c.h.b16 %v1613
        %v1796 = vunpack.c.l.b16 %v1614
        %v1797 = vunpack.c.h.b16 %v1614
        %v1798 = vunpack.c.l.b16 %v1615
        %v1799 = vunpack.c.h.b16 %v1615
        %v1800 = vunpack.c.l.b16 %v1616
        %v1801 = vunpack.c.h.b16 %v1616
        %v1802 = vunpack.c.l.b16 %v1617
        %v1803 = vunpack.c.h.b16 %v1617
        %v1804 = vunpack.c.l.b16 %v1618
        %v1805 = vunpack.c.h.b16 %v1618
        %v1806 = vunpack.c.l.b16 %v1619
        %v1807 = vunpack.c.h.b16 %v1619
        %v1808 = vunpack.c.l.b16 %v1620
        %v1809 = vunpack.c.h.b16 %v1620
        %v1810 = vunpack.c.l.b16 %v1621
        %v1811 = vunpack.c.h.b16 %v1621
        %v1812 = vunpack.c.l.b16 %v1622
        %v1813 = vunpack.c.h.b16 %v1622
        %v1814 = vunpack.c.l.b16 %v1623
        %v1815 = vunpack.c.h.b16 %v1623
        %v1816 = vpack.c.b16 %v1688, %v1688
        %v1817 = vpack.c.b16 %v1689, %v1689
        %v1818 = vpack.c.b16 %v1690, %v1690
        %v1819 = vpack.c.b16 %v1691, %v1691
        %v1820 = vpack.c.b16 %v1692, %v1692
        %v1821 = vpack.c.b16 %v1693, %v1693
        %v1822 = vpack.c.b16 %v1694, %v1694
        %v1823 = vpack.c.b16 %v1695, %v1695
        %v1824 = vpack.c.b16 %v1696, %v1696
        %v1825 = vpack.c.b16 %v1697, %v1697
        %v1826 = vpack.c.b16 %v1698, %v1698
        %v1827 = vpack.c.b16 %v1699, %v1699
        %v1828 = vpack.c.b16 %v1700, %v1700
        %v1829 = vpack.c.b16 %v1701, %v1701
        %v1830 = vpack.c.b16 %v1702, %v1702
        %v1831 = vpack.c.b16 %v1703, %v1703
        %v1832 = vpack.c.b16 %v1704, %v1704
        %v1833 = vpack.c.b16 %v1705, %v1705
        %v1834 = vpack.c.b16 %v1706, %v1706
        %v1835 = vpack.c.b16 %v1707, %v1707
        %v1836 = vpack.c.b16 %v1708, %v1708
        %v1837 = vpack.c.b16 %v1709, %v1709
        %v1838 = vpack.c.b16 %v1710, %v1710
        %v1839 = vpack.c.b16 %v1711, %v1711
        %v1840 = vpack.c.b16 %v1712, %v1712
        %v1841 = vpack.c.b16 %v1713, %v1713
        %v1842 = vpack.c.b16 %v1714, %v1714
        %v1843 = vpack.c.b16 %v1715, %v1715
        %v1844 = vpack.c.b16 %v1716, %v1716
        %v1845 = vpack.c.b16 %v1717, %v1717
        %v1846 = vpack.c.b16 %v1718, %v1718
        %v1847 = vpack.c.b16 %v1719, %v1719
        %v1848 = vpack.c.b16 %v1720, %v1720
        %v1849 = vpack.c.b16 %v1721, %v1721
        %v1850 = vpack.c.b16 %v1722, %v1722
        %v1851 = vpack.c.b16 %v1723, %v1723
        %v1852 = vpack.c.b16 %v1724, %v1724
        %v1853 = vpack.c.b16 %v1725, %v1725
        %v1854 = vpack.c.b16 %v1726, %v1726
        %v1855 = vpack.c.b16 %v1727, %v1727
        %v1856 = vpack.c.b16 %v1728, %v1728
        %v1857 = vpack.c.b16 %v1729, %v1729
        %v1858 = vpack.c.b16 %v1730, %v1730
        %v1859 = vpack.c.b16 %v1731, %v1731
        %v1860 = vpack.c.b16 %v1732, %v1732
        %v1861 = vpack.c.b16 %v1733, %v1733
        %v1862 = vpack.c.b16 %v1734, %v1734
        %v1863 = vpack.c.b16 %v1735, %v1735
        %v1864 = vpack.c.b16 %v1736, %v1736
        %v1865 = vpack.c.b16 %v1737, %v1737
        %v1866 = vpack.c.b16 %v1738, %v1738
        %v1867 = vpack.c.b16 %v1739, %v1739
        %v1868 = vpack.c.b16 %v1740, %v1740
        %v1869 = vpack.c.b16 %v1741, %v1741
        %v1870 = vpack.c.b16 %v1742, %v1742
        %v1871 = vpack.c.b16 %v1743, %v1743
        %v1872 = vpack.c.b16 %v1744, %v1744
        %v1873 = vpack.c.b16 %v1745, %v1745
        %v1874 = vpack.c.b16 %v1746, %v1746
        %v1875 = vpack.c.b16 %v1747, %v1747
        %v1876 = vpack.c.b16 %v1748, %v1748
        %v1877 = vpack.c.b16 %v1749, %v1749
        %v1878 = vpack.c.b16 %v1750, %v1750
        %v1879 = vpack.c.b16 %v1751, %v1751
        %v1880 = vpack.c.b16 %v1752, %v1752
        %v1881 = vpack.c.b16 %v1753, %v1753
        %v1882 = vpack.c.b16 %v1754, %v1754
        %v1883 = vpack.c.b16 %v1755, %v1755
        %v1884 = vpack.c.b16 %v1756, %v1756
        %v1885 = vpack.c.b16 %v1757, %v1757
        %v1886 = vpack.c.b16 %v1758, %v1758
        %v1887 = vpack.c.b16 %v1759, %v1759
        %v1888 = vpack.c.b16 %v1760, %v1760
        %v1889 = vpack.c.b16 %v1761, %v1761
        %v1890 = vpack.c.b16 %v1762, %v1762
        %v1891 = vpack.c.b16 %v1763, %v1763
        %v1892 = vpack.c.b16 %v1764, %v1764
        %v1893 = vpack.c.b16 %v1765, %v1765
        %v1894 = vpack.c.b16 %v1766, %v1766
        %v1895 = vpack.c.b16 %v1767, %v1767
        %v1896 = vpack.c.b16 %v1768, %v1768
        %v1897 = vpack.c.b16 %v1769, %v1769
        %v1898 = vpack.c.b16 %v1770, %v1770
        %v1899 = vpack.c.b16 %v1771, %v1771
        %v1900 = vpack.c.b16 %v1772, %v1772
        %v1901 = vpack.c.b16 %v1773, %v1773
        %v1902 = vpack.c.b16 %v1774, %v1774
        %v1903 = vpack.c.b16 %v1775, %v1775
        %v1904 = vpack.c.b16 %v1776, %v1776
        %v1905 = vpack.c.b16 %v1777, %v1777
        %v1906 = vpack.c.b16 %v1778, %v1778
        %v1907 = vpack.c.b16 %v1779, %v1779
        %v1908 = vpack.c.b16 %v1780, %v1780
        %v1909 = vpack.c.b16 %v1781, %v1781
        %v1910 = vpack.c.b16 %v1782, %v1782
        %v1911 = vpack.c.b16 %v1783, %v1783
        %v1912 = vpack.c.b16 %v1784, %v1784
        %v1913 = vpack.c.b16 %v1785, %v1785
        %v1914 = vpack.c.b16 %v1786, %v1786
        %v1915 = vpack.c.b16 %v1787, %v1787
        %v1916 = vpack.c.b16 %v1788, %v1788
        %v1917 = vpack.c.b16 %v1789, %v1789
        %v1918 = vpack.c.b16 %v1790, %v1790
        %v1919 = vpack.c.b16 %v1791, %v1791
        %v1920 = vpack.c.b16 %v1792, %v1792
        %v1921 = vpack.c.b16 %v1793, %v1793
        %v1922 = vpack.c.b16 %v1794, %v1794
        %v1923 = vpack.c.b16 %v1795, %v1795
        %v1924 = vpack.c.b16 %v1796, %v1796
        %v1925 = vpack.c.b16 %v1797, %v1797
        %v1926 = vpack.c.b16 %v1798, %v1798
        %v1927 = vpack.c.b16 %v1799, %v1799
        %v1928 = vpack.c.b16 %v1800, %v1800
        %v1929 = vpack.c.b16 %v1801, %v1801
        %v1930 = vpack.c.b16 %v1802, %v1802
        %v1931 = vpack.c.b16 %v1803, %v1803
        %v1932 = vpack.c.b16 %v1804, %v1804
        %v1933 = vpack.c.b16 %v1805, %v1805
        %v1934 = vpack.c.b16 %v1806, %v1806
        %v1935 = vpack.c.b16 %v1807, %v1807
        %v1936 = vpack.c.b16 %v1808, %v1808
        %v1937 = vpack.c.b16 %v1809, %v1809
        %v1938 = vpack.c.b16 %v1810, %v1810
        %v1939 = vpack.c.b16 %v1811, %v1811
        %v1940 = vpack.c.b16 %v1812, %v1812
        %v1941 = vpack.c.b16 %v1813, %v1813
        %v1942 = vpack.c.b16 %v1814, %v1814
        %v1943 = vpack.c.b16 %v1815, %v1815
        %2072 = vst [vmem:[%s172] sm:$0xf] %v1816
        %2073 = vst [vmem:[%s172 + $0x4] sm:$0xf] %v1817
        %2074 = vst [vmem:[%s172 + $0x8] sm:$0xf] %v1818
        %2075 = vst [vmem:[%s172 + $0xc] sm:$0xf] %v1819
        %2076 = vst [vmem:[%s172 + $0x10] sm:$0xf] %v1820
        %2077 = vst [vmem:[%s172 + $0x14] sm:$0xf] %v1821
        %2078 = vst [vmem:[%s172 + $0x18] sm:$0xf] %v1822
        %2079 = vst [vmem:[%s172 + $0x1c] sm:$0xf] %v1823
        %2080 = vst [vmem:[%s172 + $0x20] sm:$0xf] %v1824
        %2081 = vst [vmem:[%s172 + $0x24] sm:$0xf] %v1825
        %2082 = vst [vmem:[%s172 + $0x28] sm:$0xf] %v1826
        %2083 = vst [vmem:[%s172 + $0x2c] sm:$0xf] %v1827
        %2084 = vst [vmem:[%s172 + $0x30] sm:$0xf] %v1828
        %2085 = vst [vmem:[%s172 + $0x34] sm:$0xf] %v1829
        %2086 = vst [vmem:[%s172 + $0x38] sm:$0xf] %v1830
        %2087 = vst [vmem:[%s172 + $0x3c] sm:$0xf] %v1831
        %2088 = vst [vmem:[%s172 + $0x40] sm:$0xf] %v1832
        %2089 = vst [vmem:[%s172 + $0x44] sm:$0xf] %v1833
        %2090 = vst [vmem:[%s172 + $0x48] sm:$0xf] %v1834
        %2091 = vst [vmem:[%s172 + $0x4c] sm:$0xf] %v1835
        %2092 = vst [vmem:[%s172 + $0x50] sm:$0xf] %v1836
        %2093 = vst [vmem:[%s172 + $0x54] sm:$0xf] %v1837
        %2094 = vst [vmem:[%s172 + $0x58] sm:$0xf] %v1838
        %2095 = vst [vmem:[%s172 + $0x5c] sm:$0xf] %v1839
        %2096 = vst [vmem:[%s172 + $0x60] sm:$0xf] %v1840
        %2097 = vst [vmem:[%s172 + $0x64] sm:$0xf] %v1841
        %2098 = vst [vmem:[%s172 + $0x68] sm:$0xf] %v1842
        %2099 = vst [vmem:[%s172 + $0x6c] sm:$0xf] %v1843
        %2100 = vst [vmem:[%s172 + $0x70] sm:$0xf] %v1844
        %2101 = vst [vmem:[%s172 + $0x74] sm:$0xf] %v1845
        %2102 = vst [vmem:[%s172 + $0x78] sm:$0xf] %v1846
        %2103 = vst [vmem:[%s172 + $0x7c] sm:$0xf] %v1847
        %2104 = vst [vmem:[%s172 + $0x80] sm:$0xf] %v1848
        %2105 = vst [vmem:[%s172 + $0x84] sm:$0xf] %v1849
        %2106 = vst [vmem:[%s172 + $0x88] sm:$0xf] %v1850
        %2107 = vst [vmem:[%s172 + $0x8c] sm:$0xf] %v1851
        %2108 = vst [vmem:[%s172 + $0x90] sm:$0xf] %v1852
        %2109 = vst [vmem:[%s172 + $0x94] sm:$0xf] %v1853
        %2110 = vst [vmem:[%s172 + $0x98] sm:$0xf] %v1854
        %2111 = vst [vmem:[%s172 + $0x9c] sm:$0xf] %v1855
        %2112 = vst [vmem:[%s172 + $0xa0] sm:$0xf] %v1856
        %2113 = vst [vmem:[%s172 + $0xa4] sm:$0xf] %v1857
        %2114 = vst [vmem:[%s172 + $0xa8] sm:$0xf] %v1858
        %2115 = vst [vmem:[%s172 + $0xac] sm:$0xf] %v1859
        %2116 = vst [vmem:[%s172 + $0xb0] sm:$0xf] %v1860
        %2117 = vst [vmem:[%s172 + $0xb4] sm:$0xf] %v1861
        %2118 = vst [vmem:[%s172 + $0xb8] sm:$0xf] %v1862
        %2119 = vst [vmem:[%s172 + $0xbc] sm:$0xf] %v1863
        %2120 = vst [vmem:[%s172 + $0xc0] sm:$0xf] %v1864
        %2121 = vst [vmem:[%s172 + $0xc4] sm:$0xf] %v1865
        %2122 = vst [vmem:[%s172 + $0xc8] sm:$0xf] %v1866
        %2123 = vst [vmem:[%s172 + $0xcc] sm:$0xf] %v1867
        %2124 = vst [vmem:[%s172 + $0xd0] sm:$0xf] %v1868
        %2125 = vst [vmem:[%s172 + $0xd4] sm:$0xf] %v1869
        %2126 = vst [vmem:[%s172 + $0xd8] sm:$0xf] %v1870
        %2127 = vst [vmem:[%s172 + $0xdc] sm:$0xf] %v1871
        %2128 = vst [vmem:[%s172 + $0xe0] sm:$0xf] %v1872
        %2129 = vst [vmem:[%s172 + $0xe4] sm:$0xf] %v1873
        %2130 = vst [vmem:[%s172 + $0xe8] sm:$0xf] %v1874
        %2131 = vst [vmem:[%s172 + $0xec] sm:$0xf] %v1875
        %2132 = vst [vmem:[%s172 + $0xf0] sm:$0xf] %v1876
        %2133 = vst [vmem:[%s172 + $0xf4] sm:$0xf] %v1877
        %2134 = vst [vmem:[%s172 + $0xf8] sm:$0xf] %v1878
        %2135 = vst [vmem:[%s172 + $0xfc] sm:$0xf] %v1879
        %2136 = vst [vmem:[%s172 + $0x100] sm:$0xf] %v1880
        %2137 = vst [vmem:[%s172 + $0x104] sm:$0xf] %v1881
        %2138 = vst [vmem:[%s172 + $0x108] sm:$0xf] %v1882
        %2139 = vst [vmem:[%s172 + $0x10c] sm:$0xf] %v1883
        %2140 = vst [vmem:[%s172 + $0x110] sm:$0xf] %v1884
        %2141 = vst [vmem:[%s172 + $0x114] sm:$0xf] %v1885
        %2142 = vst [vmem:[%s172 + $0x118] sm:$0xf] %v1886
        %2143 = vst [vmem:[%s172 + $0x11c] sm:$0xf] %v1887
        %2144 = vst [vmem:[%s172 + $0x120] sm:$0xf] %v1888
        %2145 = vst [vmem:[%s172 + $0x124] sm:$0xf] %v1889
        %2146 = vst [vmem:[%s172 + $0x128] sm:$0xf] %v1890
        %2147 = vst [vmem:[%s172 + $0x12c] sm:$0xf] %v1891
        %2148 = vst [vmem:[%s172 + $0x130] sm:$0xf] %v1892
        %2149 = vst [vmem:[%s172 + $0x134] sm:$0xf] %v1893
        %2150 = vst [vmem:[%s172 + $0x138] sm:$0xf] %v1894
        %2151 = vst [vmem:[%s172 + $0x13c] sm:$0xf] %v1895
        %2152 = vst [vmem:[%s172 + $0x140] sm:$0xf] %v1896
        %2153 = vst [vmem:[%s172 + $0x144] sm:$0xf] %v1897
        %2154 = vst [vmem:[%s172 + $0x148] sm:$0xf] %v1898
        %2155 = vst [vmem:[%s172 + $0x14c] sm:$0xf] %v1899
        %2156 = vst [vmem:[%s172 + $0x150] sm:$0xf] %v1900
        %2157 = vst [vmem:[%s172 + $0x154] sm:$0xf] %v1901
        %2158 = vst [vmem:[%s172 + $0x158] sm:$0xf] %v1902
        %2159 = vst [vmem:[%s172 + $0x15c] sm:$0xf] %v1903
        %2160 = vst [vmem:[%s172 + $0x160] sm:$0xf] %v1904
        %2161 = vst [vmem:[%s172 + $0x164] sm:$0xf] %v1905
        %2162 = vst [vmem:[%s172 + $0x168] sm:$0xf] %v1906
        %2163 = vst [vmem:[%s172 + $0x16c] sm:$0xf] %v1907
        %2164 = vst [vmem:[%s172 + $0x170] sm:$0xf] %v1908
        %2165 = vst [vmem:[%s172 + $0x174] sm:$0xf] %v1909
        %2166 = vst [vmem:[%s172 + $0x178] sm:$0xf] %v1910
        %2167 = vst [vmem:[%s172 + $0x17c] sm:$0xf] %v1911
        %2168 = vst [vmem:[%s172 + $0x180] sm:$0xf] %v1912
        %2169 = vst [vmem:[%s172 + $0x184] sm:$0xf] %v1913
        %2170 = vst [vmem:[%s172 + $0x188] sm:$0xf] %v1914
        %2171 = vst [vmem:[%s172 + $0x18c] sm:$0xf] %v1915
        %2172 = vst [vmem:[%s172 + $0x190] sm:$0xf] %v1916
        %2173 = vst [vmem:[%s172 + $0x194] sm:$0xf] %v1917
        %2174 = vst [vmem:[%s172 + $0x198] sm:$0xf] %v1918
        %2175 = vst [vmem:[%s172 + $0x19c] sm:$0xf] %v1919
        %2176 = vst [vmem:[%s172 + $0x1a0] sm:$0xf] %v1920
        %2177 = vst [vmem:[%s172 + $0x1a4] sm:$0xf] %v1921
        %2178 = vst [vmem:[%s172 + $0x1a8] sm:$0xf] %v1922
        %2179 = vst [vmem:[%s172 + $0x1ac] sm:$0xf] %v1923
        %2180 = vst [vmem:[%s172 + $0x1b0] sm:$0xf] %v1924
        %2181 = vst [vmem:[%s172 + $0x1b4] sm:$0xf] %v1925
        %2182 = vst [vmem:[%s172 + $0x1b8] sm:$0xf] %v1926
        %2183 = vst [vmem:[%s172 + $0x1bc] sm:$0xf] %v1927
        %2184 = vst [vmem:[%s172 + $0x1c0] sm:$0xf] %v1928
        %2185 = vst [vmem:[%s172 + $0x1c4] sm:$0xf] %v1929
        %2186 = vst [vmem:[%s172 + $0x1c8] sm:$0xf] %v1930
        %2187 = vst [vmem:[%s172 + $0x1cc] sm:$0xf] %v1931
        %2188 = vst [vmem:[%s172 + $0x1d0] sm:$0xf] %v1932
        %2189 = vst [vmem:[%s172 + $0x1d4] sm:$0xf] %v1933
        %2190 = vst [vmem:[%s172 + $0x1d8] sm:$0xf] %v1934
        %2191 = vst [vmem:[%s172 + $0x1dc] sm:$0xf] %v1935
        %2192 = vst [vmem:[%s172 + $0x1e0] sm:$0xf] %v1936
        %2193 = vst [vmem:[%s172 + $0x1e4] sm:$0xf] %v1937
        %2194 = vst [vmem:[%s172 + $0x1e8] sm:$0xf] %v1938
        %2195 = vst [vmem:[%s172 + $0x1ec] sm:$0xf] %v1939
        %2196 = vst [vmem:[%s172 + $0x1f0] sm:$0xf] %v1940
        %2197 = vst [vmem:[%s172 + $0x1f4] sm:$0xf] %v1941
        %2198 = vst [vmem:[%s172 + $0x1f8] sm:$0xf] %v1942
        %2199 = vst [vmem:[%s172 + $0x1fc] sm:$0xf] %v1943
        %s2200 = sand.u32 %s90, 1
        %s2201 = sand.u32 %s90, 1
        %s2202 = smul.addr %s2201, 512
        %s2203 = scalar_lea.vmem [#allocation2], %s2202
        // Predicated region
        $region33: #{simple_cnn3_forward.5} parent=31 // pred_check
          %p2204 = pneg %p100
        $region34: #{simple_cnn3_forward.5} parent=31 // pred_check_branch
          %2206 = sbr.rel (%p2204) target = $region36
        $region35: #{simple_cnn3_forward.5} parent=31 // pred_region
          %s2207 = smul.u32 128, %s14
          %s2208 = ssub.s32 196, %s2207
          %p2209 = scmp.lt.s32.totalorder %s2208, 128
          %s2210 = scalar_select %p2209, %s2208, 128
          %s2211 = smul.u32 64, %s2210
          %p2212 = scmp.ne.s32.totalorder 0, %s2211
          %s2213 = smul.addr %s2207, 4
          %s2214 = scalar_lea.vmem %s3, %s2213
          // Predicated region
          $region37: #{simple_cnn3_forward.5} parent=35 // pred_check
            %p2215 = pneg %p2212
          $region38: #{simple_cnn3_forward.5} parent=35 // pred_check_branch
            %2217 = sbr.rel (%p2215) target = $region40
          $region39: #{simple_cnn3_forward.5} parent=35 // pred_region
            // Predicated region
            $region41: #{simple_cnn3_forward.5} parent=39 // pred_check
              _
            $region42: #{simple_cnn3_forward.5} parent=39 // pred_check_branch
              %2219 = sbr.rel target = $region44
            $region43: #{simple_cnn3_forward.5} parent=39 // pred_region
              // Predicated region
              $region63: #{simple_cnn3_forward.5} parent=43 // pred_check
                _
              $region64: #{simple_cnn3_forward.5} parent=43 // pred_check_branch
                %2395 = sbr.rel (0) target = $region66
              $region65: #{simple_cnn3_forward.5} parent=43 // pred_region
                %s2397 = ssub.s32 16, 1
                %s2398 = sshrl.u32 %s2210, 6
                // While loop
                $region67: #{simple_cnn3_forward.5} parent=65 // loop_pre_header
                  _
                $region68: #{simple_cnn3_forward.5} parent=65 // loop_header
                  %s2400 = sphi 0, %s2402
                  %p2401 = scmp.ge.s32.totalorder %s2400, %s2398
                  %s2405 = sphi 0, %s2538
                  %s2406 = sphi %s2203, %s2541
                  %s2407 = sphi %s2214, %s2542
                $region69: #{simple_cnn3_forward.5} parent=65 // loop_header_branch
                  %2404 = sbr.rel (%p2401) target = $region73
                $region70: #{simple_cnn3_forward.5} parent=65 // loop_body
                  %v2408 = vld [vmem:[%s2406] sm:%s2397]
                  %2409 = vst [vmem:[%s2407] sm:%s2397] %v2408
                  %v2410 = vld [vmem:[%s2406 + $0x4] sm:%s2397]
                  %2411 = vst [vmem:[%s2407 + $0x4] sm:%s2397] %v2410
                  %v2412 = vld [vmem:[%s2406 + $0x8] sm:%s2397]
                  %2413 = vst [vmem:[%s2407 + $0x8] sm:%s2397] %v2412
                  %v2414 = vld [vmem:[%s2406 + $0xc] sm:%s2397]
                  %2415 = vst [vmem:[%s2407 + $0xc] sm:%s2397] %v2414
                  %v2416 = vld [vmem:[%s2406 + $0x10] sm:%s2397]
                  %2417 = vst [vmem:[%s2407 + $0x10] sm:%s2397] %v2416
                  %v2418 = vld [vmem:[%s2406 + $0x14] sm:%s2397]
                  %2419 = vst [vmem:[%s2407 + $0x14] sm:%s2397] %v2418
                  %v2420 = vld [vmem:[%s2406 + $0x18] sm:%s2397]
                  %2421 = vst [vmem:[%s2407 + $0x18] sm:%s2397] %v2420
                  %v2422 = vld [vmem:[%s2406 + $0x1c] sm:%s2397]
                  %2423 = vst [vmem:[%s2407 + $0x1c] sm:%s2397] %v2422
                  %v2424 = vld [vmem:[%s2406 + $0x20] sm:%s2397]
                  %2425 = vst [vmem:[%s2407 + $0x20] sm:%s2397] %v2424
                  %v2426 = vld [vmem:[%s2406 + $0x24] sm:%s2397]
                  %2427 = vst [vmem:[%s2407 + $0x24] sm:%s2397] %v2426
                  %v2428 = vld [vmem:[%s2406 + $0x28] sm:%s2397]
                  %2429 = vst [vmem:[%s2407 + $0x28] sm:%s2397] %v2428
                  %v2430 = vld [vmem:[%s2406 + $0x2c] sm:%s2397]
                  %2431 = vst [vmem:[%s2407 + $0x2c] sm:%s2397] %v2430
                  %v2432 = vld [vmem:[%s2406 + $0x30] sm:%s2397]
                  %2433 = vst [vmem:[%s2407 + $0x30] sm:%s2397] %v2432
                  %v2434 = vld [vmem:[%s2406 + $0x34] sm:%s2397]
                  %2435 = vst [vmem:[%s2407 + $0x34] sm:%s2397] %v2434
                  %v2436 = vld [vmem:[%s2406 + $0x38] sm:%s2397]
                  %2437 = vst [vmem:[%s2407 + $0x38] sm:%s2397] %v2436
                  %v2438 = vld [vmem:[%s2406 + $0x3c] sm:%s2397]
                  %2439 = vst [vmem:[%s2407 + $0x3c] sm:%s2397] %v2438
                  %v2440 = vld [vmem:[%s2406 + $0x40] sm:%s2397]
                  %2441 = vst [vmem:[%s2407 + $0x40] sm:%s2397] %v2440
                  %v2442 = vld [vmem:[%s2406 + $0x44] sm:%s2397]
                  %2443 = vst [vmem:[%s2407 + $0x44] sm:%s2397] %v2442
                  %v2444 = vld [vmem:[%s2406 + $0x48] sm:%s2397]
                  %2445 = vst [vmem:[%s2407 + $0x48] sm:%s2397] %v2444
                  %v2446 = vld [vmem:[%s2406 + $0x4c] sm:%s2397]
                  %2447 = vst [vmem:[%s2407 + $0x4c] sm:%s2397] %v2446
                  %v2448 = vld [vmem:[%s2406 + $0x50] sm:%s2397]
                  %2449 = vst [vmem:[%s2407 + $0x50] sm:%s2397] %v2448
                  %v2450 = vld [vmem:[%s2406 + $0x54] sm:%s2397]
                  %2451 = vst [vmem:[%s2407 + $0x54] sm:%s2397] %v2450
                  %v2452 = vld [vmem:[%s2406 + $0x58] sm:%s2397]
                  %2453 = vst [vmem:[%s2407 + $0x58] sm:%s2397] %v2452
                  %v2454 = vld [vmem:[%s2406 + $0x5c] sm:%s2397]
                  %2455 = vst [vmem:[%s2407 + $0x5c] sm:%s2397] %v2454
                  %v2456 = vld [vmem:[%s2406 + $0x60] sm:%s2397]
                  %2457 = vst [vmem:[%s2407 + $0x60] sm:%s2397] %v2456
                  %v2458 = vld [vmem:[%s2406 + $0x64] sm:%s2397]
                  %2459 = vst [vmem:[%s2407 + $0x64] sm:%s2397] %v2458
                  %v2460 = vld [vmem:[%s2406 + $0x68] sm:%s2397]
                  %2461 = vst [vmem:[%s2407 + $0x68] sm:%s2397] %v2460
                  %v2462 = vld [vmem:[%s2406 + $0x6c] sm:%s2397]
                  %2463 = vst [vmem:[%s2407 + $0x6c] sm:%s2397] %v2462
                  %v2464 = vld [vmem:[%s2406 + $0x70] sm:%s2397]
                  %2465 = vst [vmem:[%s2407 + $0x70] sm:%s2397] %v2464
                  %v2466 = vld [vmem:[%s2406 + $0x74] sm:%s2397]
                  %2467 = vst [vmem:[%s2407 + $0x74] sm:%s2397] %v2466
                  %v2468 = vld [vmem:[%s2406 + $0x78] sm:%s2397]
                  %2469 = vst [vmem:[%s2407 + $0x78] sm:%s2397] %v2468
                  %v2470 = vld [vmem:[%s2406 + $0x7c] sm:%s2397]
                  %2471 = vst [vmem:[%s2407 + $0x7c] sm:%s2397] %v2470
                  %v2472 = vld [vmem:[%s2406 + $0x80] sm:%s2397]
                  %2473 = vst [vmem:[%s2407 + $0x80] sm:%s2397] %v2472
                  %v2474 = vld [vmem:[%s2406 + $0x84] sm:%s2397]
                  %2475 = vst [vmem:[%s2407 + $0x84] sm:%s2397] %v2474
                  %v2476 = vld [vmem:[%s2406 + $0x88] sm:%s2397]
                  %2477 = vst [vmem:[%s2407 + $0x88] sm:%s2397] %v2476
                  %v2478 = vld [vmem:[%s2406 + $0x8c] sm:%s2397]
                  %2479 = vst [vmem:[%s2407 + $0x8c] sm:%s2397] %v2478
                  %v2480 = vld [vmem:[%s2406 + $0x90] sm:%s2397]
                  %2481 = vst [vmem:[%s2407 + $0x90] sm:%s2397] %v2480
                  %v2482 = vld [vmem:[%s2406 + $0x94] sm:%s2397]
                  %2483 = vst [vmem:[%s2407 + $0x94] sm:%s2397] %v2482
                  %v2484 = vld [vmem:[%s2406 + $0x98] sm:%s2397]
                  %2485 = vst [vmem:[%s2407 + $0x98] sm:%s2397] %v2484
                  %v2486 = vld [vmem:[%s2406 + $0x9c] sm:%s2397]
                  %2487 = vst [vmem:[%s2407 + $0x9c] sm:%s2397] %v2486
                  %v2488 = vld [vmem:[%s2406 + $0xa0] sm:%s2397]
                  %2489 = vst [vmem:[%s2407 + $0xa0] sm:%s2397] %v2488
                  %v2490 = vld [vmem:[%s2406 + $0xa4] sm:%s2397]
                  %2491 = vst [vmem:[%s2407 + $0xa4] sm:%s2397] %v2490
                  %v2492 = vld [vmem:[%s2406 + $0xa8] sm:%s2397]
                  %2493 = vst [vmem:[%s2407 + $0xa8] sm:%s2397] %v2492
                  %v2494 = vld [vmem:[%s2406 + $0xac] sm:%s2397]
                  %2495 = vst [vmem:[%s2407 + $0xac] sm:%s2397] %v2494
                  %v2496 = vld [vmem:[%s2406 + $0xb0] sm:%s2397]
                  %2497 = vst [vmem:[%s2407 + $0xb0] sm:%s2397] %v2496
                  %v2498 = vld [vmem:[%s2406 + $0xb4] sm:%s2397]
                  %2499 = vst [vmem:[%s2407 + $0xb4] sm:%s2397] %v2498
                  %v2500 = vld [vmem:[%s2406 + $0xb8] sm:%s2397]
                  %2501 = vst [vmem:[%s2407 + $0xb8] sm:%s2397] %v2500
                  %v2502 = vld [vmem:[%s2406 + $0xbc] sm:%s2397]
                  %2503 = vst [vmem:[%s2407 + $0xbc] sm:%s2397] %v2502
                  %v2504 = vld [vmem:[%s2406 + $0xc0] sm:%s2397]
                  %2505 = vst [vmem:[%s2407 + $0xc0] sm:%s2397] %v2504
                  %v2506 = vld [vmem:[%s2406 + $0xc4] sm:%s2397]
                  %2507 = vst [vmem:[%s2407 + $0xc4] sm:%s2397] %v2506
                  %v2508 = vld [vmem:[%s2406 + $0xc8] sm:%s2397]
                  %2509 = vst [vmem:[%s2407 + $0xc8] sm:%s2397] %v2508
                  %v2510 = vld [vmem:[%s2406 + $0xcc] sm:%s2397]
                  %2511 = vst [vmem:[%s2407 + $0xcc] sm:%s2397] %v2510
                  %v2512 = vld [vmem:[%s2406 + $0xd0] sm:%s2397]
                  %2513 = vst [vmem:[%s2407 + $0xd0] sm:%s2397] %v2512
                  %v2514 = vld [vmem:[%s2406 + $0xd4] sm:%s2397]
                  %2515 = vst [vmem:[%s2407 + $0xd4] sm:%s2397] %v2514
                  %v2516 = vld [vmem:[%s2406 + $0xd8] sm:%s2397]
                  %2517 = vst [vmem:[%s2407 + $0xd8] sm:%s2397] %v2516
                  %v2518 = vld [vmem:[%s2406 + $0xdc] sm:%s2397]
                  %2519 = vst [vmem:[%s2407 + $0xdc] sm:%s2397] %v2518
                  %v2520 = vld [vmem:[%s2406 + $0xe0] sm:%s2397]
                  %2521 = vst [vmem:[%s2407 + $0xe0] sm:%s2397] %v2520
                  %v2522 = vld [vmem:[%s2406 + $0xe4] sm:%s2397]
                  %2523 = vst [vmem:[%s2407 + $0xe4] sm:%s2397] %v2522
                  %v2524 = vld [vmem:[%s2406 + $0xe8] sm:%s2397]
                  %2525 = vst [vmem:[%s2407 + $0xe8] sm:%s2397] %v2524
                  %v2526 = vld [vmem:[%s2406 + $0xec] sm:%s2397]
                  %2527 = vst [vmem:[%s2407 + $0xec] sm:%s2397] %v2526
                  %v2528 = vld [vmem:[%s2406 + $0xf0] sm:%s2397]
                  %2529 = vst [vmem:[%s2407 + $0xf0] sm:%s2397] %v2528
                  %v2530 = vld [vmem:[%s2406 + $0xf4] sm:%s2397]
                  %2531 = vst [vmem:[%s2407 + $0xf4] sm:%s2397] %v2530
                  %v2532 = vld [vmem:[%s2406 + $0xf8] sm:%s2397]
                  %2533 = vst [vmem:[%s2407 + $0xf8] sm:%s2397] %v2532
                  %v2534 = vld [vmem:[%s2406 + $0xfc] sm:%s2397]
                  %2535 = vst [vmem:[%s2407 + $0xfc] sm:%s2397] %v2534
                  %s2536 = sadd.s32 1, %s2405
                  %p2537 = scmp.ge.s32.totalorder %s2536, %s2398
                  %s2538 = scalar_select %p2537, 0, %s2536
                  %s2539 = smul.u32 %s2538, 256
                  %s2540 = smul.u32 %s2538, 256
                  %s2541 = scalar_lea.vmem %s2203, %s2539 [#allocation2]
                  %s2542 = scalar_lea.vmem %s2214, %s2540
                $region71: #{simple_cnn3_forward.5} parent=65 // loop_footer
                  %s2402 = sadd.s32 %s2400, 1
                $region72: #{simple_cnn3_forward.5} parent=65 // loop_footer_branch
                  %2399 = sbr.rel target = $region68
                $region73: #{simple_cnn3_forward.5} parent=65 // loop_exit
                  _
                %s2543 = sshrl.u32 %s2210, 6
                %s2544 = sand.u32 %s2210, 63
                %s2545 = smul.u32 %s2543, 64
                %s2546 = smul.u32 4, %s2545
                %s2547 = scalar_lea.vmem %s2203, %s2546 [#allocation2]
                %s2548 = smul.u32 4, %s2545
                %s2549 = scalar_lea.vmem %s2214, %s2548
                // While loop
                $region74: #{simple_cnn3_forward.5} parent=65 // loop_pre_header
                  _
                $region75: #{simple_cnn3_forward.5} parent=65 // loop_header
                  %s2551 = sphi 0, %s2553
                  %p2552 = scmp.ge.s32.totalorder %s2551, %s2544
                  %s2556 = sphi 0, %s2563
                  %s2557 = sphi %s2547, %s2566
                  %s2558 = sphi %s2549, %s2567
                $region76: #{simple_cnn3_forward.5} parent=65 // loop_header_branch
                  %2555 = sbr.rel (%p2552) target = $region80
                $region77: #{simple_cnn3_forward.5} parent=65 // loop_body
                  %v2559 = vld [vmem:[%s2557] sm:%s2397]
                  %2560 = vst [vmem:[%s2558] sm:%s2397] %v2559
                  %s2561 = sadd.s32 1, %s2556
                  %p2562 = scmp.ge.s32.totalorder %s2561, %s2544
                  %s2563 = scalar_select %p2562, 0, %s2561
                  %s2564 = smul.u32 %s2563, 4
                  %s2565 = smul.u32 %s2563, 4
                  %s2566 = scalar_lea.vmem %s2547, %s2564 [#allocation2]
                  %s2567 = scalar_lea.vmem %s2549, %s2565
                $region78: #{simple_cnn3_forward.5} parent=65 // loop_footer
                  %s2553 = sadd.s32 %s2551, 1
                $region79: #{simple_cnn3_forward.5} parent=65 // loop_footer_branch
                  %2550 = sbr.rel target = $region75
                $region80: #{simple_cnn3_forward.5} parent=65 // loop_exit
                  _
              $region66: #{simple_cnn3_forward.5} parent=43 // pred_fallthru
                _
            $region44: #{simple_cnn3_forward.5} parent=39 // pred_fallthru
              _
            // Predicated region
            $region45: #{simple_cnn3_forward.5} parent=39 // pred_check
              _
            $region46: #{simple_cnn3_forward.5} parent=39 // pred_check_branch
              %2221 = sbr.rel (0) target = $region48
            $region47: #{simple_cnn3_forward.5} parent=39 // pred_region
              %s2223 = ssub.s32 16, 1
              %s2224 = sshrl.u32 %s2210, 6
              // While loop
              $region49: #{simple_cnn3_forward.5} parent=47 // loop_pre_header
                _
              $region50: #{simple_cnn3_forward.5} parent=47 // loop_header
                %s2226 = sphi 0, %s2228
                %p2227 = scmp.ge.s32.totalorder %s2226, %s2224
                %s2231 = sphi 0, %s2364
                %s2232 = sphi %s2203, %s2367
                %s2233 = sphi %s2214, %s2368
              $region51: #{simple_cnn3_forward.5} parent=47 // loop_header_branch
                %2230 = sbr.rel (%p2227) target = $region55
              $region52: #{simple_cnn3_forward.5} parent=47 // loop_body
                %v2234 = vld [vmem:[%s2232] sm:%s2223]
                %2235 = vst [vmem:[%s2233] sm:%s2223] %v2234
                %v2236 = vld [vmem:[%s2232 + $0x4] sm:%s2223]
                %2237 = vst [vmem:[%s2233 + $0x4] sm:%s2223] %v2236
                %v2238 = vld [vmem:[%s2232 + $0x8] sm:%s2223]
                %2239 = vst [vmem:[%s2233 + $0x8] sm:%s2223] %v2238
                %v2240 = vld [vmem:[%s2232 + $0xc] sm:%s2223]
                %2241 = vst [vmem:[%s2233 + $0xc] sm:%s2223] %v2240
                %v2242 = vld [vmem:[%s2232 + $0x10] sm:%s2223]
                %2243 = vst [vmem:[%s2233 + $0x10] sm:%s2223] %v2242
                %v2244 = vld [vmem:[%s2232 + $0x14] sm:%s2223]
                %2245 = vst [vmem:[%s2233 + $0x14] sm:%s2223] %v2244
                %v2246 = vld [vmem:[%s2232 + $0x18] sm:%s2223]
                %2247 = vst [vmem:[%s2233 + $0x18] sm:%s2223] %v2246
                %v2248 = vld [vmem:[%s2232 + $0x1c] sm:%s2223]
                %2249 = vst [vmem:[%s2233 + $0x1c] sm:%s2223] %v2248
                %v2250 = vld [vmem:[%s2232 + $0x20] sm:%s2223]
                %2251 = vst [vmem:[%s2233 + $0x20] sm:%s2223] %v2250
                %v2252 = vld [vmem:[%s2232 + $0x24] sm:%s2223]
                %2253 = vst [vmem:[%s2233 + $0x24] sm:%s2223] %v2252
                %v2254 = vld [vmem:[%s2232 + $0x28] sm:%s2223]
                %2255 = vst [vmem:[%s2233 + $0x28] sm:%s2223] %v2254
                %v2256 = vld [vmem:[%s2232 + $0x2c] sm:%s2223]
                %2257 = vst [vmem:[%s2233 + $0x2c] sm:%s2223] %v2256
                %v2258 = vld [vmem:[%s2232 + $0x30] sm:%s2223]
                %2259 = vst [vmem:[%s2233 + $0x30] sm:%s2223] %v2258
                %v2260 = vld [vmem:[%s2232 + $0x34] sm:%s2223]
                %2261 = vst [vmem:[%s2233 + $0x34] sm:%s2223] %v2260
                %v2262 = vld [vmem:[%s2232 + $0x38] sm:%s2223]
                %2263 = vst [vmem:[%s2233 + $0x38] sm:%s2223] %v2262
                %v2264 = vld [vmem:[%s2232 + $0x3c] sm:%s2223]
                %2265 = vst [vmem:[%s2233 + $0x3c] sm:%s2223] %v2264
                %v2266 = vld [vmem:[%s2232 + $0x40] sm:%s2223]
                %2267 = vst [vmem:[%s2233 + $0x40] sm:%s2223] %v2266
                %v2268 = vld [vmem:[%s2232 + $0x44] sm:%s2223]
                %2269 = vst [vmem:[%s2233 + $0x44] sm:%s2223] %v2268
                %v2270 = vld [vmem:[%s2232 + $0x48] sm:%s2223]
                %2271 = vst [vmem:[%s2233 + $0x48] sm:%s2223] %v2270
                %v2272 = vld [vmem:[%s2232 + $0x4c] sm:%s2223]
                %2273 = vst [vmem:[%s2233 + $0x4c] sm:%s2223] %v2272
                %v2274 = vld [vmem:[%s2232 + $0x50] sm:%s2223]
                %2275 = vst [vmem:[%s2233 + $0x50] sm:%s2223] %v2274
                %v2276 = vld [vmem:[%s2232 + $0x54] sm:%s2223]
                %2277 = vst [vmem:[%s2233 + $0x54] sm:%s2223] %v2276
                %v2278 = vld [vmem:[%s2232 + $0x58] sm:%s2223]
                %2279 = vst [vmem:[%s2233 + $0x58] sm:%s2223] %v2278
                %v2280 = vld [vmem:[%s2232 + $0x5c] sm:%s2223]
                %2281 = vst [vmem:[%s2233 + $0x5c] sm:%s2223] %v2280
                %v2282 = vld [vmem:[%s2232 + $0x60] sm:%s2223]
                %2283 = vst [vmem:[%s2233 + $0x60] sm:%s2223] %v2282
                %v2284 = vld [vmem:[%s2232 + $0x64] sm:%s2223]
                %2285 = vst [vmem:[%s2233 + $0x64] sm:%s2223] %v2284
                %v2286 = vld [vmem:[%s2232 + $0x68] sm:%s2223]
                %2287 = vst [vmem:[%s2233 + $0x68] sm:%s2223] %v2286
                %v2288 = vld [vmem:[%s2232 + $0x6c] sm:%s2223]
                %2289 = vst [vmem:[%s2233 + $0x6c] sm:%s2223] %v2288
                %v2290 = vld [vmem:[%s2232 + $0x70] sm:%s2223]
                %2291 = vst [vmem:[%s2233 + $0x70] sm:%s2223] %v2290
                %v2292 = vld [vmem:[%s2232 + $0x74] sm:%s2223]
                %2293 = vst [vmem:[%s2233 + $0x74] sm:%s2223] %v2292
                %v2294 = vld [vmem:[%s2232 + $0x78] sm:%s2223]
                %2295 = vst [vmem:[%s2233 + $0x78] sm:%s2223] %v2294
                %v2296 = vld [vmem:[%s2232 + $0x7c] sm:%s2223]
                %2297 = vst [vmem:[%s2233 + $0x7c] sm:%s2223] %v2296
                %v2298 = vld [vmem:[%s2232 + $0x80] sm:%s2223]
                %2299 = vst [vmem:[%s2233 + $0x80] sm:%s2223] %v2298
                %v2300 = vld [vmem:[%s2232 + $0x84] sm:%s2223]
                %2301 = vst [vmem:[%s2233 + $0x84] sm:%s2223] %v2300
                %v2302 = vld [vmem:[%s2232 + $0x88] sm:%s2223]
                %2303 = vst [vmem:[%s2233 + $0x88] sm:%s2223] %v2302
                %v2304 = vld [vmem:[%s2232 + $0x8c] sm:%s2223]
                %2305 = vst [vmem:[%s2233 + $0x8c] sm:%s2223] %v2304
                %v2306 = vld [vmem:[%s2232 + $0x90] sm:%s2223]
                %2307 = vst [vmem:[%s2233 + $0x90] sm:%s2223] %v2306
                %v2308 = vld [vmem:[%s2232 + $0x94] sm:%s2223]
                %2309 = vst [vmem:[%s2233 + $0x94] sm:%s2223] %v2308
                %v2310 = vld [vmem:[%s2232 + $0x98] sm:%s2223]
                %2311 = vst [vmem:[%s2233 + $0x98] sm:%s2223] %v2310
                %v2312 = vld [vmem:[%s2232 + $0x9c] sm:%s2223]
                %2313 = vst [vmem:[%s2233 + $0x9c] sm:%s2223] %v2312
                %v2314 = vld [vmem:[%s2232 + $0xa0] sm:%s2223]
                %2315 = vst [vmem:[%s2233 + $0xa0] sm:%s2223] %v2314
                %v2316 = vld [vmem:[%s2232 + $0xa4] sm:%s2223]
                %2317 = vst [vmem:[%s2233 + $0xa4] sm:%s2223] %v2316
                %v2318 = vld [vmem:[%s2232 + $0xa8] sm:%s2223]
                %2319 = vst [vmem:[%s2233 + $0xa8] sm:%s2223] %v2318
                %v2320 = vld [vmem:[%s2232 + $0xac] sm:%s2223]
                %2321 = vst [vmem:[%s2233 + $0xac] sm:%s2223] %v2320
                %v2322 = vld [vmem:[%s2232 + $0xb0] sm:%s2223]
                %2323 = vst [vmem:[%s2233 + $0xb0] sm:%s2223] %v2322
                %v2324 = vld [vmem:[%s2232 + $0xb4] sm:%s2223]
                %2325 = vst [vmem:[%s2233 + $0xb4] sm:%s2223] %v2324
                %v2326 = vld [vmem:[%s2232 + $0xb8] sm:%s2223]
                %2327 = vst [vmem:[%s2233 + $0xb8] sm:%s2223] %v2326
                %v2328 = vld [vmem:[%s2232 + $0xbc] sm:%s2223]
                %2329 = vst [vmem:[%s2233 + $0xbc] sm:%s2223] %v2328
                %v2330 = vld [vmem:[%s2232 + $0xc0] sm:%s2223]
                %2331 = vst [vmem:[%s2233 + $0xc0] sm:%s2223] %v2330
                %v2332 = vld [vmem:[%s2232 + $0xc4] sm:%s2223]
                %2333 = vst [vmem:[%s2233 + $0xc4] sm:%s2223] %v2332
                %v2334 = vld [vmem:[%s2232 + $0xc8] sm:%s2223]
                %2335 = vst [vmem:[%s2233 + $0xc8] sm:%s2223] %v2334
                %v2336 = vld [vmem:[%s2232 + $0xcc] sm:%s2223]
                %2337 = vst [vmem:[%s2233 + $0xcc] sm:%s2223] %v2336
                %v2338 = vld [vmem:[%s2232 + $0xd0] sm:%s2223]
                %2339 = vst [vmem:[%s2233 + $0xd0] sm:%s2223] %v2338
                %v2340 = vld [vmem:[%s2232 + $0xd4] sm:%s2223]
                %2341 = vst [vmem:[%s2233 + $0xd4] sm:%s2223] %v2340
                %v2342 = vld [vmem:[%s2232 + $0xd8] sm:%s2223]
                %2343 = vst [vmem:[%s2233 + $0xd8] sm:%s2223] %v2342
                %v2344 = vld [vmem:[%s2232 + $0xdc] sm:%s2223]
                %2345 = vst [vmem:[%s2233 + $0xdc] sm:%s2223] %v2344
                %v2346 = vld [vmem:[%s2232 + $0xe0] sm:%s2223]
                %2347 = vst [vmem:[%s2233 + $0xe0] sm:%s2223] %v2346
                %v2348 = vld [vmem:[%s2232 + $0xe4] sm:%s2223]
                %2349 = vst [vmem:[%s2233 + $0xe4] sm:%s2223] %v2348
                %v2350 = vld [vmem:[%s2232 + $0xe8] sm:%s2223]
                %2351 = vst [vmem:[%s2233 + $0xe8] sm:%s2223] %v2350
                %v2352 = vld [vmem:[%s2232 + $0xec] sm:%s2223]
                %2353 = vst [vmem:[%s2233 + $0xec] sm:%s2223] %v2352
                %v2354 = vld [vmem:[%s2232 + $0xf0] sm:%s2223]
                %2355 = vst [vmem:[%s2233 + $0xf0] sm:%s2223] %v2354
                %v2356 = vld [vmem:[%s2232 + $0xf4] sm:%s2223]
                %2357 = vst [vmem:[%s2233 + $0xf4] sm:%s2223] %v2356
                %v2358 = vld [vmem:[%s2232 + $0xf8] sm:%s2223]
                %2359 = vst [vmem:[%s2233 + $0xf8] sm:%s2223] %v2358
                %v2360 = vld [vmem:[%s2232 + $0xfc] sm:%s2223]
                %2361 = vst [vmem:[%s2233 + $0xfc] sm:%s2223] %v2360
                %s2362 = sadd.s32 1, %s2231
                %p2363 = scmp.ge.s32.totalorder %s2362, %s2224
                %s2364 = scalar_select %p2363, 0, %s2362
                %s2365 = smul.u32 %s2364, 256
                %s2366 = smul.u32 %s2364, 256
                %s2367 = scalar_lea.vmem %s2203, %s2365 [#allocation2]
                %s2368 = scalar_lea.vmem %s2214, %s2366
              $region53: #{simple_cnn3_forward.5} parent=47 // loop_footer
                %s2228 = sadd.s32 %s2226, 1
              $region54: #{simple_cnn3_forward.5} parent=47 // loop_footer_branch
                %2225 = sbr.rel target = $region50
              $region55: #{simple_cnn3_forward.5} parent=47 // loop_exit
                _
              %s2369 = sshrl.u32 %s2210, 6
              %s2370 = sand.u32 %s2210, 63
              %s2371 = smul.u32 %s2369, 64
              %s2372 = smul.u32 4, %s2371
              %s2373 = scalar_lea.vmem %s2203, %s2372 [#allocation2]
              %s2374 = smul.u32 4, %s2371
              %s2375 = scalar_lea.vmem %s2214, %s2374
              // While loop
              $region56: #{simple_cnn3_forward.5} parent=47 // loop_pre_header
                _
              $region57: #{simple_cnn3_forward.5} parent=47 // loop_header
                %s2377 = sphi 0, %s2379
                %p2378 = scmp.ge.s32.totalorder %s2377, %s2370
                %s2382 = sphi 0, %s2389
                %s2383 = sphi %s2373, %s2392
                %s2384 = sphi %s2375, %s2393
              $region58: #{simple_cnn3_forward.5} parent=47 // loop_header_branch
                %2381 = sbr.rel (%p2378) target = $region62
              $region59: #{simple_cnn3_forward.5} parent=47 // loop_body
                %v2385 = vld [vmem:[%s2383] sm:%s2223]
                %2386 = vst [vmem:[%s2384] sm:%s2223] %v2385
                %s2387 = sadd.s32 1, %s2382
                %p2388 = scmp.ge.s32.totalorder %s2387, %s2370
                %s2389 = scalar_select %p2388, 0, %s2387
                %s2390 = smul.u32 %s2389, 4
                %s2391 = smul.u32 %s2389, 4
                %s2392 = scalar_lea.vmem %s2373, %s2390 [#allocation2]
                %s2393 = scalar_lea.vmem %s2375, %s2391
              $region60: #{simple_cnn3_forward.5} parent=47 // loop_footer
                %s2379 = sadd.s32 %s2377, 1
              $region61: #{simple_cnn3_forward.5} parent=47 // loop_footer_branch
                %2376 = sbr.rel target = $region57
              $region62: #{simple_cnn3_forward.5} parent=47 // loop_exit
                _
            $region48: #{simple_cnn3_forward.5} parent=39 // pred_fallthru
              _
          $region40: #{simple_cnn3_forward.5} parent=35 // pred_fallthru
            _
          %2568 = vnop
        $region36: #{simple_cnn3_forward.5} parent=31 // pred_fallthru
          _
      $region32: #{simple_cnn3_forward.5} parent=5 // pred_fallthru
        _
      %p2569 = scmp.le.s32.totalorder 2, %s9
      // Predicated region
      $region81: #{simple_cnn3_forward.5} parent=5 // pred_check
        %p2570 = pneg %p2569
      $region82: #{simple_cnn3_forward.5} parent=5 // pred_check_branch
        %2572 = sbr.rel (%p2570) target = $region84
      $region83: #{simple_cnn3_forward.5} parent=5 // pred_region
        %s2573 = ssub.s32 %s9, 2
        // Predicated region
        $region85: #{simple_cnn3_forward.5} parent=83 // pred_check
          %p2574 = pneg %p106
        $region86: #{simple_cnn3_forward.5} parent=83 // pred_check_branch
          %2576 = sbr.rel (%p2574) target = $region88
        $region87: #{simple_cnn3_forward.5} parent=83 // pred_region
          %s2577 = sand.u32 %s91, 1
          %s2578 = sand.u32 %s91, 1
          %s2579 = smul.addr %s2578, 512
          %s2580 = scalar_lea.vmem [#allocation2], %s2579
        $region88: #{simple_cnn3_forward.5} parent=83 // pred_fallthru
          _
      $region84: #{simple_cnn3_forward.5} parent=5 // pred_fallthru
        _
    $region6: #{simple_cnn3_forward.5} parent=1 // loop_footer
      %s13 = sadd.s32 1, %s9
    $region7: #{simple_cnn3_forward.5} parent=1 // loop_footer_branch
      %8 = sbr.rel target = $region3
    $region8: #{simple_cnn3_forward.5} parent=1 // loop_exit
      _

// kernel: simple_cnn3_forward.8
$region0: #{simple_cnn3_forward.8}
  #allocation0 [shape = 'u32[]', space=smem, size = 0x4, offset = 0x4, fixed_abs, tag = 'smem constant byte address 0x4 - core index']
  #allocation1 [shape = 'u32[144,128]{1,0:T(1,128)}', space=vmem, size = 0x12000, scoped, tag = 'internal scratch']
  %s0 = inlined_call_operand.vmem [shape: bf16[10,2,5,256], index: 0, kind: input, shape index: {}]
  %s1 = inlined_call_operand.vmem [shape: bf16[10,5,128], index: 1, kind: output, shape index: {}]
  %s2 = sld [smem:[#allocation0]]
  $region37: #{simple_cnn3_forward.8} parent=0
    _
  %s4 = ssub.s32 1, %s2
  %s5 = scalar_select 0, %s4, %s2
  loop: start=0, step=1, limit=4
  $region2: #{simple_cnn3_forward.8} parent=0 // loop_pre_header
    _
  $region3: #{simple_cnn3_forward.8} parent=0 // loop_header
    %s7 = sphi 0, %s11
    %p8 = scmp.ge.s32.totalorder %s7, 4
    %s17 = sphi 0, %s19
    %s20 = sphi 0, %s17
    %s21 = sphi 0, %s20
    %s37 = sphi 0, %s21
    %s43 = sphi 0, %s45
    %s46 = sphi 0, %s43
    %s47 = sphi 0, %s46
    %s63 = sphi 0, %s47
  $region4: #{simple_cnn3_forward.8} parent=0 // loop_header_branch
    %10 = sbr.rel (%p8) target = $region8
  $region5: #{simple_cnn3_forward.8} parent=0 // loop_body
    %s12 = ssub.s32 %s7, 1
    %s13 = ssub.s32 %s7, 2
    %s14 = sadd.s32 %s7, 1
    %s15 = ssub.s32 %s7, %s14
    %p16 = scmp.eq.s32.totalorder %s15, 0
    %s18 = sadd.s32 %s17, 1
    %s19 = scalar_select %p16, %s17, %s18
    %p22 = pneg %p16
    %p23 = scmp.eq.s32.totalorder %s7, 1
    %p24 = por %p22, %p23
    %p25 = scmp.ne.s32.totalorder %s17, %s20
    %p26 = scmp.eq.s32.totalorder %s7, 0
    %p27 = por %p25, %p26
    %p28 = scmp.ne.s32.totalorder %s17, %s20
    %p29 = scmp.eq.s32.totalorder %s12, 1
    %p30 = por %p28, %p29
    %p31 = scmp.ne.s32.totalorder %s20, %s21
    %p32 = scmp.eq.s32.totalorder %s12, 0
    %p33 = por %p31, %p32
    %p34 = scmp.ne.s32.totalorder %s20, %s21
    %p35 = scmp.eq.s32.totalorder %s13, 1
    %p36 = por %p34, %p35
    %p38 = scmp.ne.s32.totalorder %s21, %s37
    %p39 = scmp.eq.s32.totalorder %s13, 0
    %p40 = por %p38, %p39
    %s41 = ssub.s32 %s7, %s14
    %p42 = scmp.eq.s32.totalorder %s41, 0
    %s44 = sadd.s32 %s43, 1
    %s45 = scalar_select %p42, %s43, %s44
    %p48 = pneg %p42
    %p49 = scmp.eq.s32.totalorder %s7, 1
    %p50 = por %p48, %p49
    %p51 = scmp.ne.s32.totalorder %s43, %s46
    %p52 = scmp.eq.s32.totalorder %s7, 0
    %p53 = por %p51, %p52
    %p54 = scmp.ne.s32.totalorder %s43, %s46
    %p55 = scmp.eq.s32.totalorder %s12, 1
    %p56 = por %p54, %p55
    %p57 = scmp.ne.s32.totalorder %s46, %s47
    %p58 = scmp.eq.s32.totalorder %s12, 0
    %p59 = por %p57, %p58
    %p60 = scmp.ne.s32.totalorder %s46, %s47
    %p61 = scmp.eq.s32.totalorder %s13, 1
    %p62 = por %p60, %p61
    %p64 = scmp.ne.s32.totalorder %s47, %s63
    %p65 = scmp.eq.s32.totalorder %s13, 0
    %p66 = por %p64, %p65
    %p67 = scmp.le.s32.totalorder 1, %s7
    %p68 = scmp.lt.s32.totalorder %s7, 3
    %p69 = pnand %p67, %p68
    %p70 = pneg %p69
    // Predicated region
    $region9: #{simple_cnn3_forward.8} parent=5 // pred_check
      _
    $region10: #{simple_cnn3_forward.8} parent=5 // pred_check_branch
      %72 = sbr.rel (%p69) target = $region12
    $region11: #{simple_cnn3_forward.8} parent=5 // pred_region
      %s73 = ssub.s32 %s7, 1
    $region12: #{simple_cnn3_forward.8} parent=5 // pred_fallthru
      _
    %p74 = scmp.lt.s32.totalorder %s7, 2
    // Predicated region
    $region13: #{simple_cnn3_forward.8} parent=5 // pred_check
      %p75 = pneg %p74
    $region14: #{simple_cnn3_forward.8} parent=5 // pred_check_branch
      %77 = sbr.rel (%p75) target = $region16
    $region15: #{simple_cnn3_forward.8} parent=5 // pred_region
      // Predicated region
      $region17: #{simple_cnn3_forward.8} parent=15 // pred_check
        %p78 = pneg %p27
      $region18: #{simple_cnn3_forward.8} parent=15 // pred_check_branch
        %80 = sbr.rel (%p78) target = $region20
      $region19: #{simple_cnn3_forward.8} parent=15 // pred_region
        %s81 = smul.u32 5, %s7
        %p82 = scmp.lt.s32.totalorder %s81, 9
        %s83 = scalar_select %p82, %s81, 9
        %s84 = smul.addr %s83, 4
        %s85 = smul.addr %s84, 4
        %s86 = scalar_lea.vmem %s0, %s85
        %s87 = smul.u32 5, %s7
      $region20: #{simple_cnn3_forward.8} parent=15 // pred_fallthru
        _
    $region16: #{simple_cnn3_forward.8} parent=5 // pred_fallthru
      _
    %p88 = scmp.le.s32.totalorder 1, %s7
    %p89 = scmp.lt.s32.totalorder %s7, 3
    %p90 = pnand %p88, %p89
    %p91 = pneg %p90
    // Predicated region
    $region21: #{simple_cnn3_forward.8} parent=5 // pred_check
      _
    $region22: #{simple_cnn3_forward.8} parent=5 // pred_check_branch
      %93 = sbr.rel (%p90) target = $region24
    $region23: #{simple_cnn3_forward.8} parent=5 // pred_region
      %s94 = ssub.s32 %s7, 1
      %s95 = smul.u32 5, %s12
      %p96 = scmp.lt.s32.totalorder %s95, 9
      %s97 = scalar_select %p96, %s95, 9
      %s98 = smul.addr %s97, 4
      %s99 = smul.addr %s98, 4
      %s100 = scalar_lea.vmem %s0, %s99
      %p101 = pneg %p33
      %p102 = pneg %p30
      %p103 = pneg %p59
      %p104 = pneg %p56
      %s105 = smul.u32 5, %s12
      %p106 = scmp.lt.s32.totalorder %s105, 9
      %s107 = scalar_select %p106, %s105, 9
      %s108 = smul.addr %s107, 4
      %s109 = scalar_lea.vmem %s1, %s108
      %s110 = smul.u32 5, %s12
      %p111 = scmp.lt.s32.totalorder %s110, 9
      %s112 = scalar_select %p111, %s110, 9
      %s113 = smul.addr %s112, 4
      %s114 = smul.addr %s113, 4
      %s115 = scalar_lea.vmem %s0, %s114
      %s116 = smul.u32 5, %s12
      %s117 = smul.u32 5, %s12
      %p118 = scmp.lt.s32.totalorder %s117, 9
      %s119 = scalar_select %p118, %s117, 9
      %s120 = smul.addr %s119, 4
      %s121 = scalar_lea.vmem %s1, %s120
      %s122 = smul.u32 5, %s12
      %v123 = vld [vmem:[%s115] sm:$0x77]
      %v124 = vld [vmem:[%s115 + $0x8] sm:$0x77]
      %v125 = vld [vmem:[%s115 + $0x10] sm:$0x77]
      %v126 = vld [vmem:[%s115 + $0x18] sm:$0x77]
      %v127 = vld [vmem:[%s115 + $0x20] sm:$0x77]
      %v128 = vld [vmem:[%s115 + $0x28] sm:$0x77]
      %v129 = vld [vmem:[%s115 + $0x30] sm:$0x77]
      %v130 = vld [vmem:[%s115 + $0x38] sm:$0x77]
      %v131 = vld [vmem:[%s115 + $0x40] sm:$0x77]
      %v132 = vld [vmem:[%s115 + $0x48] sm:$0x77]
      %v133 = vmax.bf16 %v123, %v124
      %v134 = vmax.bf16 %v125, %v126
      %v135 = vmax.bf16 %v127, %v128
      %v136 = vmax.bf16 %v129, %v130
      %v137 = vmax.bf16 %v131, %v132
      %v143 = vrot.slane %v133, 4
      %v144 = vrot.slane %v134, 4
      %v145 = vrot.slane %v135, 4
      %v146 = vrot.slane %v136, 4
      %v147 = vrot.slane %v137, 4
      %v153 = vmax.bf16 %v133, %v143
      %v154 = vmax.bf16 %v134, %v144
      %v155 = vmax.bf16 %v135, %v145
      %v156 = vmax.bf16 %v136, %v146
      %v157 = vmax.bf16 %v137, %v147
      %vm158 = vcmask 1042432
      %vm159 = vsmask.f32 2304
      %vm160 = vmand %vm158, %vm159
      %v161 = vld [vmem:[%s121] sm:$0x7]
      %v162 = vsel %vm160, %v153, %v161
      %163 = vst [vmem:[%s121] sm:$0x7] %v162
      %v164 = vld [vmem:[%s121 + $0x4] sm:$0x7]
      %v165 = vsel %vm160, %v154, %v164
      %166 = vst [vmem:[%s121 + $0x4] sm:$0x7] %v165
      %v167 = vld [vmem:[%s121 + $0x8] sm:$0x7]
      %v168 = vsel %vm160, %v155, %v167
      %169 = vst [vmem:[%s121 + $0x8] sm:$0x7] %v168
      %v170 = vld [vmem:[%s121 + $0xc] sm:$0x7]
      %v171 = vsel %vm160, %v156, %v170
      %172 = vst [vmem:[%s121 + $0xc] sm:$0x7] %v171
      %v173 = vld [vmem:[%s121 + $0x10] sm:$0x7]
      %v174 = vsel %vm160, %v157, %v173
      %175 = vst [vmem:[%s121 + $0x10] sm:$0x7] %v174
      %s176 = smul.u32 5, %s12
      %p177 = scmp.lt.s32.totalorder %s176, 9
      %s178 = scalar_select %p177, %s176, 9
      %s179 = smul.addr %s178, 4
      %s180 = scalar_lea.vmem %s1, %s179
      // Predicated region
      $region25: #{simple_cnn3_forward.8} parent=23 // pred_check
        %p181 = pneg %p56
      $region26: #{simple_cnn3_forward.8} parent=23 // pred_check_branch
        %183 = sbr.rel (%p181) target = $region28
      $region27: #{simple_cnn3_forward.8} parent=23 // pred_region
        %s184 = smul.u32 5, %s12
      $region28: #{simple_cnn3_forward.8} parent=23 // pred_fallthru
        _
    $region24: #{simple_cnn3_forward.8} parent=5 // pred_fallthru
      _
    %p185 = scmp.le.s32.totalorder 2, %s7
    // Predicated region
    $region29: #{simple_cnn3_forward.8} parent=5 // pred_check
      %p186 = pneg %p185
    $region30: #{simple_cnn3_forward.8} parent=5 // pred_check_branch
      %188 = sbr.rel (%p186) target = $region32
    $region31: #{simple_cnn3_forward.8} parent=5 // pred_region
      %s189 = ssub.s32 %s7, 2
      // Predicated region
      $region33: #{simple_cnn3_forward.8} parent=31 // pred_check
        %p190 = pneg %p62
      $region34: #{simple_cnn3_forward.8} parent=31 // pred_check_branch
        %192 = sbr.rel (%p190) target = $region36
      $region35: #{simple_cnn3_forward.8} parent=31 // pred_region
        %s193 = smul.u32 5, %s13
        %p194 = scmp.lt.s32.totalorder %s193, 9
        %s195 = scalar_select %p194, %s193, 9
        %s196 = smul.addr %s195, 4
        %s197 = scalar_lea.vmem %s1, %s196
      $region36: #{simple_cnn3_forward.8} parent=31 // pred_fallthru
        _
    $region32: #{simple_cnn3_forward.8} parent=5 // pred_fallthru
      _
  $region6: #{simple_cnn3_forward.8} parent=0 // loop_footer
    %s11 = sadd.s32 1, %s7
  $region7: #{simple_cnn3_forward.8} parent=0 // loop_footer_branch
    %6 = sbr.rel target = $region3
  $region8: #{simple_cnn3_forward.8} parent=0 // loop_exit
    _

// kernel: simple_cnn3_forward.7
$region0: #{simple_cnn3_forward.7}
  #allocation0 [shape = 'u32[]', space=smem, size = 0x4, offset = 0x4, fixed_abs, tag = 'smem constant byte address 0x4 - core index']
  #allocation1 [shape = 'u32[144,128]{1,0:T(1,128)}', space=vmem, size = 0x12000, scoped, tag = 'internal scratch']
  %s0 = inlined_call_operand.vmem [shape: bf16[200,450], index: 0, kind: input, shape index: {}]
  %s1 = inlined_call_operand.vmem [shape: bf16[450,128], index: 1, kind: input, shape index: {}]
  %s2 = inlined_call_operand.vmem [shape: f32[1,128], index: 2, kind: input, shape index: {}]
  %s3 = inlined_call_operand.vmem [shape: bf16[200,128], index: 3, kind: output, shape index: {}]
  %s4 = sld [smem:[#allocation0]]
  $region89: #{simple_cnn3_forward.7} parent=0
    _
  %s6 = ssub.s32 1, %s4
  %s7 = scalar_select 0, %s6, %s4
  $region1: #{simple_cnn3_forward.7} parent=0
    #allocation2 [shape = 'u8[53248]{0}', space=vmem, size = 0xd000, scoped, tag = 'output window, operand 0']
    loop: start=0, step=1, limit=4
    $region2: #{simple_cnn3_forward.7} parent=1 // loop_pre_header
      _
    $region3: #{simple_cnn3_forward.7} parent=1 // loop_header
      %s9 = sphi 0, %s13
      %p10 = scmp.ge.s32.totalorder %s9, 4
      %s19 = sphi 0, %s21
      %s22 = sphi 0, %s19
      %s23 = sphi 0, %s22
      %s39 = sphi 0, %s23
      %s43 = sphi 0, %s43
      %s45 = sphi 0, %s43
      %s46 = sphi 0, %s45
      %s60 = sphi 0, %s46
      %s64 = sphi 0, %s64
      %s66 = sphi 0, %s64
      %s67 = sphi 0, %s66
      %s81 = sphi 0, %s67
      %s87 = sphi 0, %s89
      %s90 = sphi 0, %s87
      %s91 = sphi 0, %s90
      %s107 = sphi 0, %s91
    $region4: #{simple_cnn3_forward.7} parent=1 // loop_header_branch
      %12 = sbr.rel (%p10) target = $region8
    $region5: #{simple_cnn3_forward.7} parent=1 // loop_body
      %s14 = ssub.s32 %s9, 1
      %s15 = ssub.s32 %s9, 2
      %s16 = sadd.s32 %s9, 1
      %s17 = ssub.s32 %s9, %s16
      %p18 = scmp.eq.s32.totalorder %s17, 0
      %s20 = sadd.s32 %s19, 1
      %s21 = scalar_select %p18, %s19, %s20
      %p24 = pneg %p18
      %p25 = scmp.eq.s32.totalorder %s9, 1
      %p26 = por %p24, %p25
      %p27 = scmp.ne.s32.totalorder %s19, %s22
      %p28 = scmp.eq.s32.totalorder %s9, 0
      %p29 = por %p27, %p28
      %p30 = scmp.ne.s32.totalorder %s19, %s22
      %p31 = scmp.eq.s32.totalorder %s14, 1
      %p32 = por %p30, %p31
      %p33 = scmp.ne.s32.totalorder %s22, %s23
      %p34 = scmp.eq.s32.totalorder %s14, 0
      %p35 = por %p33, %p34
      %p36 = scmp.ne.s32.totalorder %s22, %s23
      %p37 = scmp.eq.s32.totalorder %s15, 1
      %p38 = por %p36, %p37
      %p40 = scmp.ne.s32.totalorder %s23, %s39
      %p41 = scmp.eq.s32.totalorder %s15, 0
      %p42 = por %p40, %p41
      %s44 = sadd.s32 %s43, 1
      %p47 = scmp.eq.s32.totalorder %s9, 1
      %p48 = scmp.ne.s32.totalorder %s43, %s45
      %p49 = scmp.eq.s32.totalorder %s9, 0
      %p50 = por %p48, %p49
      %p51 = scmp.ne.s32.totalorder %s43, %s45
      %p52 = scmp.eq.s32.totalorder %s14, 1
      %p53 = por %p51, %p52
      %p54 = scmp.ne.s32.totalorder %s45, %s46
      %p55 = scmp.eq.s32.totalorder %s14, 0
      %p56 = por %p54, %p55
      %p57 = scmp.ne.s32.totalorder %s45, %s46
      %p58 = scmp.eq.s32.totalorder %s15, 1
      %p59 = por %p57, %p58
      %p61 = scmp.ne.s32.totalorder %s46, %s60
      %p62 = scmp.eq.s32.totalorder %s15, 0
      %p63 = por %p61, %p62
      %s65 = sadd.s32 %s64, 1
      %p68 = scmp.eq.s32.totalorder %s9, 1
      %p69 = scmp.ne.s32.totalorder %s64, %s66
      %p70 = scmp.eq.s32.totalorder %s9, 0
      %p71 = por %p69, %p70
      %p72 = scmp.ne.s32.totalorder %s64, %s66
      %p73 = scmp.eq.s32.totalorder %s14, 1
      %p74 = por %p72, %p73
      %p75 = scmp.ne.s32.totalorder %s66, %s67
      %p76 = scmp.eq.s32.totalorder %s14, 0
      %p77 = por %p75, %p76
      %p78 = scmp.ne.s32.totalorder %s66, %s67
      %p79 = scmp.eq.s32.totalorder %s15, 1
      %p80 = por %p78, %p79
      %p82 = scmp.ne.s32.totalorder %s67, %s81
      %p83 = scmp.eq.s32.totalorder %s15, 0
      %p84 = por %p82, %p83
      %s85 = ssub.s32 %s9, %s16
      %p86 = scmp.eq.s32.totalorder %s85, 0
      %s88 = sadd.s32 %s87, 1
      %s89 = scalar_select %p86, %s87, %s88
      %p92 = pneg %p86
      %p93 = scmp.eq.s32.totalorder %s9, 1
      %p94 = por %p92, %p93
      %p95 = scmp.ne.s32.totalorder %s87, %s90
      %p96 = scmp.eq.s32.totalorder %s9, 0
      %p97 = por %p95, %p96
      %p98 = scmp.ne.s32.totalorder %s87, %s90
      %p99 = scmp.eq.s32.totalorder %s14, 1
      %p100 = por %p98, %p99
      %p101 = scmp.ne.s32.totalorder %s90, %s91
      %p102 = scmp.eq.s32.totalorder %s14, 0
      %p103 = por %p101, %p102
      %p104 = scmp.ne.s32.totalorder %s90, %s91
      %p105 = scmp.eq.s32.totalorder %s15, 1
      %p106 = por %p104, %p105
      %p108 = scmp.ne.s32.totalorder %s91, %s107
      %p109 = scmp.eq.s32.totalorder %s15, 0
      %p110 = por %p108, %p109
      %p111 = scmp.le.s32.totalorder 1, %s9
      %p112 = scmp.lt.s32.totalorder %s9, 3
      %p113 = pnand %p111, %p112
      %p114 = pneg %p113
      // Predicated region
      $region9: #{simple_cnn3_forward.7} parent=5 // pred_check
        _
      $region10: #{simple_cnn3_forward.7} parent=5 // pred_check_branch
        %116 = sbr.rel (%p113) target = $region12
      $region11: #{simple_cnn3_forward.7} parent=5 // pred_region
        %s117 = ssub.s32 %s9, 1
        // Predicated region
        $region13: #{simple_cnn3_forward.7} parent=11 // pred_check
          %p118 = pneg %p56
        $region14: #{simple_cnn3_forward.7} parent=11 // pred_check_branch
          %120 = sbr.rel (%p118) target = $region16
        $region15: #{simple_cnn3_forward.7} parent=11 // pred_region
          _
        $region16: #{simple_cnn3_forward.7} parent=11 // pred_fallthru
          _
        // Predicated region
        $region17: #{simple_cnn3_forward.7} parent=11 // pred_check
          %p121 = pneg %p77
        $region18: #{simple_cnn3_forward.7} parent=11 // pred_check_branch
          %123 = sbr.rel (%p121) target = $region20
        $region19: #{simple_cnn3_forward.7} parent=11 // pred_region
          _
        $region20: #{simple_cnn3_forward.7} parent=11 // pred_fallthru
          _
      $region12: #{simple_cnn3_forward.7} parent=5 // pred_fallthru
        _
      %p124 = scmp.lt.s32.totalorder %s9, 2
      // Predicated region
      $region21: #{simple_cnn3_forward.7} parent=5 // pred_check
        %p125 = pneg %p124
      $region22: #{simple_cnn3_forward.7} parent=5 // pred_check_branch
        %127 = sbr.rel (%p125) target = $region24
      $region23: #{simple_cnn3_forward.7} parent=5 // pred_region
        // Predicated region
        $region25: #{simple_cnn3_forward.7} parent=23 // pred_check
          %p128 = pneg %p29
        $region26: #{simple_cnn3_forward.7} parent=23 // pred_check_branch
          %130 = sbr.rel (%p128) target = $region28
        $region27: #{simple_cnn3_forward.7} parent=23 // pred_region
          %s131 = smul.u32 13, %s9
          %s132 = ssub.s32 25, %s131
          %p133 = scmp.lt.s32.totalorder %s132, 13
          %s134 = scalar_select %p133, %s132, 13
          %s135 = smul.u32 64, %s134
          %s136 = smul.u32 %s135, 4
          %p137 = scmp.lt.s32.totalorder %s131, 24
          %s138 = scalar_select %p137, %s131, 24
          %s139 = smul.addr %s138, 4
          %s140 = smul.addr %s139, 4
          %s141 = scalar_lea.vmem %s0, %s140
          %s142 = smul.u32 13, %s9
          %s143 = ssub.s32 25, %s142
          %p144 = scmp.lt.s32.totalorder %s143, 13
          %s145 = scalar_select %p144, %s143, 13
          %s146 = smul.u32 64, %s145
          %s147 = smul.u32 %s146, 4
        $region28: #{simple_cnn3_forward.7} parent=23 // pred_fallthru
          _
      $region24: #{simple_cnn3_forward.7} parent=5 // pred_fallthru
        _
      %p148 = scmp.le.s32.totalorder 1, %s9
      %p149 = scmp.lt.s32.totalorder %s9, 3
      %p150 = pnand %p148, %p149
      %p151 = pneg %p150
      // Predicated region
      $region29: #{simple_cnn3_forward.7} parent=5 // pred_check
        _
      $region30: #{simple_cnn3_forward.7} parent=5 // pred_check_branch
        %153 = sbr.rel (%p150) target = $region32
      $region31: #{simple_cnn3_forward.7} parent=5 // pred_region
        %s154 = ssub.s32 %s9, 1
        %s155 = smul.u32 13, %s14
        %s156 = ssub.s32 25, %s155
        %p157 = scmp.lt.s32.totalorder %s156, 13
        %s158 = scalar_select %p157, %s156, 13
        %s159 = smul.u32 64, %s158
        %s160 = smul.u32 %s159, 4
        %p161 = scmp.lt.s32.totalorder %s155, 24
        %s162 = scalar_select %p161, %s155, 24
        %s163 = smul.addr %s162, 4
        %s164 = smul.addr %s163, 4
        %s165 = scalar_lea.vmem %s0, %s164
        %p166 = pneg %p35
        %p167 = pneg %p32
        %p168 = pneg %p56
        %p169 = pneg %p53
        %p170 = pneg %p77
        %p171 = pneg %p74
        %p172 = pneg %p103
        %p173 = pneg %p100
        %s174 = sand.u32 %s90, 1
        %s175 = sand.u32 %s90, 1
        %s176 = smul.addr %s175, 52
        %s177 = scalar_lea.vmem [#allocation2], %s176
        %s178 = smul.u32 13, %s14
        %s179 = ssub.s32 25, %s178
        %p180 = scmp.lt.s32.totalorder %s179, 13
        %s181 = scalar_select %p180, %s179, 13
        %s182 = smul.u32 64, %s181
        %s183 = smul.u32 %s182, 4
        %p184 = scmp.lt.s32.totalorder %s178, 24
        %s185 = scalar_select %p184, %s178, 24
        %s186 = smul.addr %s185, 4
        %s187 = smul.addr %s186, 4
        %s188 = scalar_lea.vmem %s0, %s187
        %s189 = smul.u32 13, %s14
        %s190 = ssub.s32 25, %s189
        %p191 = scmp.lt.s32.totalorder %s190, 13
        %s192 = scalar_select %p191, %s190, 13
        %s193 = smul.u32 64, %s192
        %s194 = smul.u32 %s193, 4
        %s195 = smul.u32 13, %s14
        %s196 = ssub.s32 25, %s195
        %p197 = scmp.lt.s32.totalorder %s196, 13
        %s198 = scalar_select %p197, %s196, 13
        %s199 = smul.u32 64, %s198
        %v201 = vld [vmem:[%s188] sm:$0xff]
        %v202 = vld [vmem:[%s188 + $0x8] sm:$0xff]
        %v203 = vld [vmem:[%s188 + $0x10] sm:$0xff]
        %v204 = vld [vmem:[%s188 + $0x18] sm:$0xff]
        %v205 = vld [vmem:[%s188 + $0x20] sm:$0xff]
        %v206 = vld [vmem:[%s188 + $0x28] sm:$0xff]
        %v207 = vld [vmem:[%s188 + $0x30] sm:$0xff]
        %v208 = vld [vmem:[%s188 + $0x38] sm:$0xff]
        %v209 = vld [vmem:[%s188 + $0x40] sm:$0xff]
        %v210 = vld [vmem:[%s188 + $0x48] sm:$0xff]
        %v211 = vld [vmem:[%s188 + $0x50] sm:$0xff]
        %v212 = vld [vmem:[%s188 + $0x58] sm:$0xff]
        %v213 = vld [vmem:[%s188 + $0x60] sm:$0xff]
        %v214 = vld [vmem:[%s188 + $0x68] sm:$0xff]
        %v215 = vld [vmem:[%s188 + $0x70] sm:$0xff]
        %v216 = vld [vmem:[%s188 + $0x78] sm:$0xff]
        %v217 = vld [vmem:[%s188 + $0x80] sm:$0xff]
        %v218 = vld [vmem:[%s188 + $0x88] sm:$0xff]
        %v219 = vld [vmem:[%s188 + $0x90] sm:$0xff]
        %v220 = vld [vmem:[%s188 + $0x98] sm:$0xff]
        %v221 = vld [vmem:[%s188 + $0xa0] sm:$0xff]
        %v222 = vld [vmem:[%s188 + $0xa8] sm:$0xff]
        %v223 = vld [vmem:[%s188 + $0xb0] sm:$0xff]
        %v224 = vld [vmem:[%s188 + $0xb8] sm:$0xff]
        %v225 = vld [vmem:[%s188 + $0xc0] sm:$0xff]
        %v226 = vld [vmem:[%s188 + $0xc8] sm:$0xff]
        %v227 = vld [vmem:[%s1] sm:$0xf]
        %v228 = vld [vmem:[%s1 + $0x4] sm:$0xf]
        %v229 = vld [vmem:[%s1 + $0x8] sm:$0xf]
        %v230 = vld [vmem:[%s1 + $0xc] sm:$0xf]
        %v231 = vld [vmem:[%s1 + $0x10] sm:$0xf]
        %v232 = vld [vmem:[%s1 + $0x14] sm:$0xf]
        %v233 = vld [vmem:[%s1 + $0x18] sm:$0xf]
        %v234 = vld [vmem:[%s1 + $0x1c] sm:$0xf]
        %v235 = vld [vmem:[%s1 + $0x20] sm:$0xf]
        %v236 = vld [vmem:[%s1 + $0x24] sm:$0xf]
        %v237 = vld [vmem:[%s1 + $0x28] sm:$0xf]
        %v238 = vld [vmem:[%s1 + $0x2c] sm:$0xf]
        %v239 = vld [vmem:[%s1 + $0x30] sm:$0xf]
        %v240 = vld [vmem:[%s1 + $0x34] sm:$0xf]
        %v241 = vld [vmem:[%s1 + $0x38] sm:$0xf]
        %v242 = vld [vmem:[%s1 + $0x3c] sm:$0xf]
        %v243 = vld [vmem:[%s1 + $0x40] sm:$0xf]
        %v244 = vld [vmem:[%s1 + $0x44] sm:$0xf]
        %v245 = vld [vmem:[%s1 + $0x48] sm:$0xf]
        %v246 = vld [vmem:[%s1 + $0x4c] sm:$0xf]
        %v247 = vld [vmem:[%s1 + $0x50] sm:$0xf]
        %v248 = vld [vmem:[%s1 + $0x54] sm:$0xf]
        %v249 = vld [vmem:[%s1 + $0x58] sm:$0xf]
        %v250 = vld [vmem:[%s1 + $0x5c] sm:$0xf]
        %v251 = vld [vmem:[%s1 + $0x60] sm:$0xf]
        %v252 = vld [vmem:[%s1 + $0x64] sm:$0xf]
        %v253 = vld [vmem:[%s1 + $0x68] sm:$0xf]
        %v254 = vld [vmem:[%s1 + $0x6c] sm:$0xf]
        %v255 = vld [vmem:[%s1 + $0x70] sm:$0xf]
        %v256 = vld [vmem:[%s1 + $0x74] sm:$0xf]
        %v257 = vld [vmem:[%s1 + $0x78] sm:$0xf]
        %v258 = vld [vmem:[%s1 + $0x7c] sm:$0xf]
        %v259 = vld [vmem:[%s1 + $0x80] sm:$0xf]
        %v260 = vld [vmem:[%s1 + $0x84] sm:$0xf]
        %v261 = vld [vmem:[%s1 + $0x88] sm:$0xf]
        %v262 = vld [vmem:[%s1 + $0x8c] sm:$0xf]
        %v263 = vld [vmem:[%s1 + $0x90] sm:$0xf]
        %v264 = vld [vmem:[%s1 + $0x94] sm:$0xf]
        %v265 = vld [vmem:[%s1 + $0x98] sm:$0xf]
        %v266 = vld [vmem:[%s1 + $0x9c] sm:$0xf]
        %v267 = vld [vmem:[%s1 + $0xa0] sm:$0xf]
        %v268 = vld [vmem:[%s1 + $0xa4] sm:$0xf]
        %v269 = vld [vmem:[%s1 + $0xa8] sm:$0xf]
        %v270 = vld [vmem:[%s1 + $0xac] sm:$0xf]
        %v271 = vld [vmem:[%s1 + $0xb0] sm:$0xf]
        %v272 = vld [vmem:[%s1 + $0xb4] sm:$0xf]
        %v273 = vld [vmem:[%s1 + $0xb8] sm:$0xf]
        %v274 = vld [vmem:[%s1 + $0xbc] sm:$0xf]
        %v275 = vld [vmem:[%s1 + $0xc0] sm:$0xf]
        %v276 = vld [vmem:[%s1 + $0xc4] sm:$0xf]
        %v277 = vld [vmem:[%s1 + $0xc8] sm:$0xf]
        %v278 = vld [vmem:[%s1 + $0xcc] sm:$0xf]
        %v279 = vld [vmem:[%s1 + $0xd0] sm:$0xf]
        %v280 = vld [vmem:[%s1 + $0xd4] sm:$0xf]
        %v281 = vld [vmem:[%s1 + $0xd8] sm:$0xf]
        %v282 = vld [vmem:[%s1 + $0xdc] sm:$0xf]
        %v283 = vld [vmem:[%s1 + $0xe0] sm:$0x1]
        %v284 = vld [vmem:[%s2] sm:$0x1]
        %v286 = vlaneseq
        %v287 = vshrl.u32 %v286, 7
        %v288 = vsub.s32 0, %v287
        %v289 = vrot.slane %v284, %v288
        %v317 = vunpack.c.l.b16 %v201
        %v318 = vunpack.c.h.b16 %v201
        %v319 = vunpack.c.l.b16 %v202
        %v320 = vunpack.c.h.b16 %v202
        %v321 = vunpack.c.l.b16 %v203
        %v322 = vunpack.c.h.b16 %v203
        %v323 = vunpack.c.l.b16 %v204
        %v324 = vunpack.c.h.b16 %v204
        %v325 = vunpack.c.l.b16 %v205
        %v326 = vunpack.c.h.b16 %v205
        %v327 = vunpack.c.l.b16 %v206
        %v328 = vunpack.c.h.b16 %v206
        %v329 = vunpack.c.l.b16 %v207
        %v330 = vunpack.c.h.b16 %v207
        %v331 = vunpack.c.l.b16 %v208
        %v332 = vunpack.c.h.b16 %v208
        %v333 = vunpack.c.l.b16 %v209
        %v334 = vunpack.c.h.b16 %v209
        %v335 = vunpack.c.l.b16 %v210
        %v336 = vunpack.c.h.b16 %v210
        %v337 = vunpack.c.l.b16 %v211
        %v338 = vunpack.c.h.b16 %v211
        %v339 = vunpack.c.l.b16 %v212
        %v340 = vunpack.c.h.b16 %v212
        %v341 = vunpack.c.l.b16 %v213
        %v342 = vunpack.c.h.b16 %v213
        %v343 = vunpack.c.l.b16 %v214
        %v344 = vunpack.c.h.b16 %v214
        %v345 = vunpack.c.l.b16 %v215
        %v346 = vunpack.c.h.b16 %v215
        %v347 = vunpack.c.l.b16 %v216
        %v348 = vunpack.c.h.b16 %v216
        %v349 = vunpack.c.l.b16 %v217
        %v350 = vunpack.c.h.b16 %v217
        %v351 = vunpack.c.l.b16 %v218
        %v352 = vunpack.c.h.b16 %v218
        %v353 = vunpack.c.l.b16 %v219
        %v354 = vunpack.c.h.b16 %v219
        %v355 = vunpack.c.l.b16 %v220
        %v356 = vunpack.c.h.b16 %v220
        %v357 = vunpack.c.l.b16 %v221
        %v358 = vunpack.c.h.b16 %v221
        %v359 = vunpack.c.l.b16 %v222
        %v360 = vunpack.c.h.b16 %v222
        %v361 = vunpack.c.l.b16 %v223
        %v362 = vunpack.c.h.b16 %v223
        %v363 = vunpack.c.l.b16 %v224
        %v364 = vunpack.c.h.b16 %v224
        %v365 = vunpack.c.l.b16 %v225
        %v366 = vunpack.c.h.b16 %v225
        %v367 = vunpack.c.l.b16 %v226
        %v368 = vunpack.c.h.b16 %v226
        %v369 = vpack.c.b16 %v321, %v317
        %v370 = vpack.c.b16 %v322, %v318
        %v371 = vpack.c.b16 %v323, %v319
        %v372 = vpack.c.b16 %v324, %v320
        %v373 = vpack.c.b16 %v329, %v325
        %v374 = vpack.c.b16 %v330, %v326
        %v375 = vpack.c.b16 %v331, %v327
        %v376 = vpack.c.b16 %v332, %v328
        %v377 = vpack.c.b16 %v337, %v333
        %v378 = vpack.c.b16 %v338, %v334
        %v379 = vpack.c.b16 %v339, %v335
        %v380 = vpack.c.b16 %v340, %v336
        %v381 = vpack.c.b16 %v345, %v341
        %v382 = vpack.c.b16 %v346, %v342
        %v383 = vpack.c.b16 %v347, %v343
        %v384 = vpack.c.b16 %v348, %v344
        %v385 = vpack.c.b16 %v353, %v349
        %v386 = vpack.c.b16 %v354, %v350
        %v387 = vpack.c.b16 %v355, %v351
        %v388 = vpack.c.b16 %v356, %v352
        %v389 = vpack.c.b16 %v361, %v357
        %v390 = vpack.c.b16 %v362, %v358
        %v391 = vpack.c.b16 %v363, %v359
        %v392 = vpack.c.b16 %v364, %v360
        %v393 = vpack.c.b16 %v365, %v365
        %v394 = vpack.c.b16 %v366, %v366
        %v395 = vpack.c.b16 %v367, %v367
        %v396 = vpack.c.b16 %v368, %v368
        %v475 = vunpack.c.l.b16 %v227
        %v476 = vunpack.c.l.b16 %v228
        %v477 = vunpack.c.l.b16 %v229
        %v478 = vunpack.c.l.b16 %v230
        %v479 = vunpack.c.l.b16 %v231
        %v480 = vunpack.c.l.b16 %v232
        %v481 = vunpack.c.l.b16 %v233
        %v482 = vunpack.c.l.b16 %v234
        %v483 = vunpack.c.l.b16 %v235
        %v484 = vunpack.c.l.b16 %v236
        %v485 = vunpack.c.l.b16 %v237
        %v486 = vunpack.c.l.b16 %v238
        %v487 = vunpack.c.l.b16 %v239
        %v488 = vunpack.c.l.b16 %v240
        %v489 = vunpack.c.l.b16 %v241
        %v490 = vunpack.c.l.b16 %v242
        %v491 = vunpack.c.l.b16 %v243
        %v492 = vunpack.c.l.b16 %v244
        %v493 = vunpack.c.l.b16 %v245
        %v494 = vunpack.c.l.b16 %v246
        %v495 = vunpack.c.l.b16 %v247
        %v496 = vunpack.c.l.b16 %v248
        %v497 = vunpack.c.l.b16 %v249
        %v498 = vunpack.c.l.b16 %v250
        %v499 = vunpack.c.l.b16 %v251
        %v500 = vunpack.c.l.b16 %v252
        %v501 = vunpack.c.l.b16 %v253
        %v502 = vunpack.c.l.b16 %v254
        %v503 = vunpack.c.l.b16 %v255
        %v504 = vunpack.c.l.b16 %v256
        %v505 = vunpack.c.l.b16 %v257
        %v506 = vunpack.c.l.b16 %v258
        %v507 = vunpack.c.l.b16 %v259
        %v508 = vunpack.c.l.b16 %v260
        %v509 = vunpack.c.l.b16 %v261
        %v510 = vunpack.c.l.b16 %v262
        %v511 = vunpack.c.l.b16 %v263
        %v512 = vunpack.c.l.b16 %v264
        %v513 = vunpack.c.l.b16 %v265
        %v514 = vunpack.c.l.b16 %v266
        %v515 = vunpack.c.l.b16 %v267
        %v516 = vunpack.c.l.b16 %v268
        %v517 = vunpack.c.l.b16 %v269
        %v518 = vunpack.c.l.b16 %v270
        %v519 = vunpack.c.l.b16 %v271
        %v520 = vunpack.c.l.b16 %v272
        %v521 = vunpack.c.l.b16 %v273
        %v522 = vunpack.c.l.b16 %v274
        %v523 = vunpack.c.l.b16 %v275
        %v524 = vunpack.c.l.b16 %v276
        %v525 = vunpack.c.l.b16 %v277
        %v526 = vunpack.c.l.b16 %v278
        %v527 = vunpack.c.l.b16 %v279
        %v528 = vunpack.c.l.b16 %v280
        %v529 = vunpack.c.l.b16 %v281
        %v530 = vunpack.c.l.b16 %v282
        %v531 = vunpack.c.l.b16 %v283
        %v532 = vpack.c.b16 %v476, %v475
        %v533 = vpack.c.b16 %v478, %v477
        %v534 = vpack.c.b16 %v480, %v479
        %v535 = vpack.c.b16 %v482, %v481
        %v536 = vpack.c.b16 %v484, %v483
        %v537 = vpack.c.b16 %v486, %v485
        %v538 = vpack.c.b16 %v488, %v487
        %v539 = vpack.c.b16 %v490, %v489
        %v540 = vpack.c.b16 %v492, %v491
        %v541 = vpack.c.b16 %v494, %v493
        %v542 = vpack.c.b16 %v496, %v495
        %v543 = vpack.c.b16 %v498, %v497
        %v544 = vpack.c.b16 %v500, %v499
        %v545 = vpack.c.b16 %v502, %v501
        %v546 = vpack.c.b16 %v504, %v503
        %v547 = vpack.c.b16 %v506, %v505
        %v548 = vpack.c.b16 %v508, %v507
        %v549 = vpack.c.b16 %v510, %v509
        %v550 = vpack.c.b16 %v512, %v511
        %v551 = vpack.c.b16 %v514, %v513
        %v552 = vpack.c.b16 %v516, %v515
        %v553 = vpack.c.b16 %v518, %v517
        %v554 = vpack.c.b16 %v520, %v519
        %v555 = vpack.c.b16 %v522, %v521
        %v556 = vpack.c.b16 %v524, %v523
        %v557 = vpack.c.b16 %v526, %v525
        %v558 = vpack.c.b16 %v528, %v527
        %v559 = vpack.c.b16 %v530, %v529
        %v560 = vpack.c.b16 %v531, %v531
        %vm589 = vcmask 539648
        %v591 = vsel %vm589, %v372, 0
        %v594 = vsel %vm589, %v376, 0
        %v597 = vsel %vm589, %v380, 0
        %v600 = vsel %vm589, %v384, 0
        %v603 = vsel %vm589, %v388, 0
        %v606 = vsel %vm589, %v392, 0
        %v609 = vsel %vm589, %v396, 0
        %vm611 = vcmask 1040384
        %v613 = vsel %vm611, %v560, 0
        %615 = vmatprep.subr.bf16.mxu0 0
        %616 = vmatpush1.bf16.msra.mxu0 %v539
        %617 = vmatprep.subr.bf16.mxu0 0
        %618 = vmatpush1.bf16.msra.mxu0 %v538
        %619 = vmatprep.subr.bf16.mxu0 0
        %620 = vmatpush1.bf16.msra.mxu0 %v537
        %621 = vmatprep.subr.bf16.mxu0 0
        %622 = vmatpush1.bf16.msra.mxu0 %v536
        %623 = vmatprep.subr.bf16.mxu0 0
        %624 = vmatpush1.bf16.msra.mxu0 %v535
        %625 = vmatprep.subr.bf16.mxu0 0
        %626 = vmatpush1.bf16.msra.mxu0 %v534
        %627 = vmatprep.subr.bf16.mxu0 0
        %628 = vmatpush1.bf16.msra.mxu0 %v533
        %629 = vmatprep.subr.bf16.mxu0 0
        %630 = vmatpush1.bf16.msra.mxu0 %v532
        %631 = vmatprep.subr.bf16.mxu0 0
        %632 = vmatpush2.bf16.msra.mxu0 %v547
        %633 = vmatprep.subr.bf16.mxu0 0
        %634 = vmatpush2.bf16.msra.mxu0 %v546
        %635 = vmatprep.subr.bf16.mxu0 0
        %636 = vmatpush2.bf16.msra.mxu0 %v545
        %637 = vmatprep.subr.bf16.mxu0 0
        %638 = vmatpush2.bf16.msra.mxu0 %v544
        %639 = vmatprep.subr.bf16.mxu0 0
        %640 = vmatpush2.bf16.msra.mxu0 %v543
        %641 = vmatprep.subr.bf16.mxu0 0
        %642 = vmatpush2.bf16.msra.mxu0 %v542
        %643 = vmatprep.subr.bf16.mxu0 0
        %644 = vmatpush2.bf16.msra.mxu0 %v541
        %645 = vmatprep.subr.bf16.mxu0 0
        %646 = vmatpush2.bf16.msra.mxu0 %v540
        %647 = vmatprep.mubr.bf16.mxu0 %v370
        %648 = vmatmul.mubr.bf16.gmra.mxu0 %v369
        %v649 = vpop.f32.mrf.mxu0
        %v650 = vadd.f32 %v289, %v649
        %v651 = vpop.f32.mrf.mxu0
        %v652 = vpop.f32.mrf.mxu0
        %v653 = vadd.f32 %v289, %v652
        %v654 = vpop.f32.mrf.mxu0
        %655 = vmatprep.mubr.bf16.mxu0 %v374
        %656 = vmatmul.mubr.bf16.gmra.mxu0 %v373
        %v657 = vpop.f32.mrf.mxu0
        %v658 = vadd.f32 %v289, %v657
        %v659 = vpop.f32.mrf.mxu0
        %v660 = vpop.f32.mrf.mxu0
        %v661 = vadd.f32 %v289, %v660
        %v662 = vpop.f32.mrf.mxu0
        %663 = vmatprep.mubr.bf16.mxu0 %v378
        %664 = vmatmul.mubr.bf16.gmra.mxu0 %v377
        %v665 = vpop.f32.mrf.mxu0
        %v666 = vadd.f32 %v289, %v665
        %v667 = vpop.f32.mrf.mxu0
        %v668 = vpop.f32.mrf.mxu0
        %v669 = vadd.f32 %v289, %v668
        %v670 = vpop.f32.mrf.mxu0
        %671 = vmatprep.mubr.bf16.mxu0 %v382
        %672 = vmatmul.mubr.bf16.gmra.mxu0 %v381
        %v673 = vpop.f32.mrf.mxu0
        %v674 = vadd.f32 %v289, %v673
        %v675 = vpop.f32.mrf.mxu0
        %v676 = vpop.f32.mrf.mxu0
        %v677 = vadd.f32 %v289, %v676
        %v678 = vpop.f32.mrf.mxu0
        %679 = vmatprep.mubr.bf16.mxu0 %v386
        %680 = vmatmul.mubr.bf16.gmra.mxu0 %v385
        %v681 = vpop.f32.mrf.mxu0
        %v682 = vadd.f32 %v289, %v681
        %v683 = vpop.f32.mrf.mxu0
        %v684 = vpop.f32.mrf.mxu0
        %v685 = vadd.f32 %v289, %v684
        %v686 = vpop.f32.mrf.mxu0
        %687 = vmatprep.mubr.bf16.mxu0 %v390
        %688 = vmatmul.mubr.bf16.gmra.mxu0 %v389
        %v689 = vpop.f32.mrf.mxu0
        %v690 = vadd.f32 %v289, %v689
        %v691 = vpop.f32.mrf.mxu0
        %v692 = vpop.f32.mrf.mxu0
        %v693 = vadd.f32 %v289, %v692
        %v694 = vpop.f32.mrf.mxu0
        %695 = vmatprep.mubr.bf16.mxu0 %v394
        %696 = vmatmul.mubr.bf16.gmra.mxu0 %v393
        %v697 = vpop.f32.mrf.mxu0
        %v698 = vadd.f32 %v289, %v697
        %v699 = vpop.f32.mrf.mxu0
        %v700 = vpop.f32.mrf.mxu0
        %v701 = vpop.f32.mrf.mxu0
        %702 = vdwg.mxu0
        %703 = vmatprep.subr.bf16.mxu0 0
        %704 = vmatpush1.bf16.msra.mxu0 %v555
        %705 = vmatprep.subr.bf16.mxu0 0
        %706 = vmatpush1.bf16.msra.mxu0 %v554
        %707 = vmatprep.subr.bf16.mxu0 0
        %708 = vmatpush1.bf16.msra.mxu0 %v553
        %709 = vmatprep.subr.bf16.mxu0 0
        %710 = vmatpush1.bf16.msra.mxu0 %v552
        %711 = vmatprep.subr.bf16.mxu0 0
        %712 = vmatpush1.bf16.msra.mxu0 %v551
        %713 = vmatprep.subr.bf16.mxu0 0
        %714 = vmatpush1.bf16.msra.mxu0 %v550
        %715 = vmatprep.subr.bf16.mxu0 0
        %716 = vmatpush1.bf16.msra.mxu0 %v549
        %717 = vmatprep.subr.bf16.mxu0 0
        %718 = vmatpush1.bf16.msra.mxu0 %v548
        %719 = vmatprep.subr.bf16.mxu0 0
        %720 = vmatpush2.bf16.msra.mxu0 0
        %721 = vmatprep.subr.bf16.mxu0 0
        %722 = vmatpush2.bf16.msra.mxu0 0
        %723 = vmatprep.subr.bf16.mxu0 0
        %724 = vmatpush2.bf16.msra.mxu0 0
        %725 = vmatprep.subr.bf16.mxu0 0
        %726 = vmatpush2.bf16.msra.mxu0 %v613
        %727 = vmatprep.subr.bf16.mxu0 0
        %728 = vmatpush2.bf16.msra.mxu0 %v559
        %729 = vmatprep.subr.bf16.mxu0 0
        %730 = vmatpush2.bf16.msra.mxu0 %v558
        %731 = vmatprep.subr.bf16.mxu0 0
        %732 = vmatpush2.bf16.msra.mxu0 %v557
        %733 = vmatprep.subr.bf16.mxu0 0
        %734 = vmatpush2.bf16.msra.mxu0 %v556
        %735 = vmatprep.mubr.bf16.mxu0 %v591
        %736 = vmatmul.mubr.bf16.gmra.mxu0 %v371
        %v737 = vpop.f32.mrf.mxu0
        %v738 = vadd.f32 %v650, %v737
        %v739 = vpop.f32.mrf.mxu0
        %v740 = vpop.f32.mrf.mxu0
        %v741 = vadd.f32 %v653, %v740
        %v742 = vpop.f32.mrf.mxu0
        %743 = vmatprep.mubr.bf16.mxu0 %v594
        %744 = vmatmul.mubr.bf16.gmra.mxu0 %v375
        %v745 = vpop.f32.mrf.mxu0
        %v746 = vadd.f32 %v658, %v745
        %v747 = vpop.f32.mrf.mxu0
        %v748 = vpop.f32.mrf.mxu0
        %v749 = vadd.f32 %v661, %v748
        %v750 = vpop.f32.mrf.mxu0
        %751 = vmatprep.mubr.bf16.mxu0 %v597
        %752 = vmatmul.mubr.bf16.gmra.mxu0 %v379
        %v753 = vpop.f32.mrf.mxu0
        %v754 = vadd.f32 %v666, %v753
        %v755 = vpop.f32.mrf.mxu0
        %v756 = vpop.f32.mrf.mxu0
        %v757 = vadd.f32 %v669, %v756
        %v758 = vpop.f32.mrf.mxu0
        %759 = vmatprep.mubr.bf16.mxu0 %v600
        %760 = vmatmul.mubr.bf16.gmra.mxu0 %v383
        %v761 = vpop.f32.mrf.mxu0
        %v762 = vadd.f32 %v674, %v761
        %v763 = vpop.f32.mrf.mxu0
        %v764 = vpop.f32.mrf.mxu0
        %v765 = vadd.f32 %v677, %v764
        %v766 = vpop.f32.mrf.mxu0
        %767 = vmatprep.mubr.bf16.mxu0 %v603
        %768 = vmatmul.mubr.bf16.gmra.mxu0 %v387
        %v769 = vpop.f32.mrf.mxu0
        %v770 = vadd.f32 %v682, %v769
        %v771 = vpop.f32.mrf.mxu0
        %v772 = vpop.f32.mrf.mxu0
        %v773 = vadd.f32 %v685, %v772
        %v774 = vpop.f32.mrf.mxu0
        %775 = vmatprep.mubr.bf16.mxu0 %v606
        %776 = vmatmul.mubr.bf16.gmra.mxu0 %v391
        %v777 = vpop.f32.mrf.mxu0
        %v778 = vadd.f32 %v690, %v777
        %v779 = vpop.f32.mrf.mxu0
        %v780 = vpop.f32.mrf.mxu0
        %v781 = vadd.f32 %v693, %v780
        %v782 = vpop.f32.mrf.mxu0
        %783 = vmatprep.mubr.bf16.mxu0 %v609
        %784 = vmatmul.mubr.bf16.gmra.mxu0 %v395
        %v785 = vpop.f32.mrf.mxu0
        %v786 = vadd.f32 %v698, %v785
        %v787 = vpop.f32.mrf.mxu0
        %v788 = vpop.f32.mrf.mxu0
        %v789 = vpop.f32.mrf.mxu0
        %790 = vdwg.mxu0
        %v791 = vmax.f32 %v738, 0.0
        %v792 = vmax.f32 %v741, 0.0
        %v793 = vmax.f32 %v746, 0.0
        %v794 = vmax.f32 %v749, 0.0
        %v795 = vmax.f32 %v754, 0.0
        %v796 = vmax.f32 %v757, 0.0
        %v797 = vmax.f32 %v762, 0.0
        %v798 = vmax.f32 %v765, 0.0
        %v799 = vmax.f32 %v770, 0.0
        %v800 = vmax.f32 %v773, 0.0
        %v801 = vmax.f32 %v778, 0.0
        %v802 = vmax.f32 %v781, 0.0
        %v803 = vmax.f32 %v786, 0.0
        %v804 = vpack.c.bf16 %v792, %v791
        %v805 = vpack.c.bf16 %v794, %v793
        %v806 = vpack.c.bf16 %v796, %v795
        %v807 = vpack.c.bf16 %v798, %v797
        %v808 = vpack.c.bf16 %v800, %v799
        %v809 = vpack.c.bf16 %v802, %v801
        %v810 = vpack.c.bf16 %v803, %v803
        %v818 = vunpack.c.l.b16 %v804
        %v819 = vunpack.c.h.b16 %v804
        %v820 = vunpack.c.l.b16 %v805
        %v821 = vunpack.c.h.b16 %v805
        %v822 = vunpack.c.l.b16 %v806
        %v823 = vunpack.c.h.b16 %v806
        %v824 = vunpack.c.l.b16 %v807
        %v825 = vunpack.c.h.b16 %v807
        %v826 = vunpack.c.l.b16 %v808
        %v827 = vunpack.c.h.b16 %v808
        %v828 = vunpack.c.l.b16 %v809
        %v829 = vunpack.c.h.b16 %v809
        %v830 = vunpack.c.l.b16 %v810
        %v831 = vpack.c.b16 %v818, %v818
        %v832 = vpack.c.b16 %v819, %v819
        %v833 = vpack.c.b16 %v820, %v820
        %v834 = vpack.c.b16 %v821, %v821
        %v835 = vpack.c.b16 %v822, %v822
        %v836 = vpack.c.b16 %v823, %v823
        %v837 = vpack.c.b16 %v824, %v824
        %v838 = vpack.c.b16 %v825, %v825
        %v839 = vpack.c.b16 %v826, %v826
        %v840 = vpack.c.b16 %v827, %v827
        %v841 = vpack.c.b16 %v828, %v828
        %v842 = vpack.c.b16 %v829, %v829
        %v843 = vpack.c.b16 %v830, %v830
        %857 = vst [vmem:[%s177] sm:$0xf] %v831
        %858 = vst [vmem:[%s177 + $0x4] sm:$0xf] %v832
        %859 = vst [vmem:[%s177 + $0x8] sm:$0xf] %v833
        %860 = vst [vmem:[%s177 + $0xc] sm:$0xf] %v834
        %861 = vst [vmem:[%s177 + $0x10] sm:$0xf] %v835
        %862 = vst [vmem:[%s177 + $0x14] sm:$0xf] %v836
        %863 = vst [vmem:[%s177 + $0x18] sm:$0xf] %v837
        %864 = vst [vmem:[%s177 + $0x1c] sm:$0xf] %v838
        %865 = vst [vmem:[%s177 + $0x20] sm:$0xf] %v839
        %866 = vst [vmem:[%s177 + $0x24] sm:$0xf] %v840
        %867 = vst [vmem:[%s177 + $0x28] sm:$0xf] %v841
        %868 = vst [vmem:[%s177 + $0x2c] sm:$0xf] %v842
        %869 = vst [vmem:[%s177 + $0x30] sm:$0xf] %v843
        %s870 = sand.u32 %s90, 1
        %s871 = sand.u32 %s90, 1
        %s872 = smul.addr %s871, 52
        %s873 = scalar_lea.vmem [#allocation2], %s872
        // Predicated region
        $region33: #{simple_cnn3_forward.7} parent=31 // pred_check
          %p874 = pneg %p100
        $region34: #{simple_cnn3_forward.7} parent=31 // pred_check_branch
          %876 = sbr.rel (%p874) target = $region36
        $region35: #{simple_cnn3_forward.7} parent=31 // pred_region
          %s877 = smul.u32 13, %s14
          %s878 = ssub.s32 25, %s877
          %p879 = scmp.lt.s32.totalorder %s878, 13
          %s880 = scalar_select %p879, %s878, 13
          %s881 = smul.u32 64, %s880
          %p882 = scmp.ne.s32.totalorder 0, %s881
          %s883 = smul.addr %s877, 4
          %s884 = scalar_lea.vmem %s3, %s883
          // Predicated region
          $region37: #{simple_cnn3_forward.7} parent=35 // pred_check
            %p885 = pneg %p882
          $region38: #{simple_cnn3_forward.7} parent=35 // pred_check_branch
            %887 = sbr.rel (%p885) target = $region40
          $region39: #{simple_cnn3_forward.7} parent=35 // pred_region
            // Predicated region
            $region41: #{simple_cnn3_forward.7} parent=39 // pred_check
              _
            $region42: #{simple_cnn3_forward.7} parent=39 // pred_check_branch
              %889 = sbr.rel target = $region44
            $region43: #{simple_cnn3_forward.7} parent=39 // pred_region
              // Predicated region
              $region63: #{simple_cnn3_forward.7} parent=43 // pred_check
                _
              $region64: #{simple_cnn3_forward.7} parent=43 // pred_check_branch
                %964 = sbr.rel (0) target = $region66
              $region65: #{simple_cnn3_forward.7} parent=43 // pred_region
                %s966 = ssub.s32 16, 1
                %s967 = sdiv.u32.pop %s880, 13
                %s968 = srem.u32.pop %s880, 13
                // While loop
                $region67: #{simple_cnn3_forward.7} parent=65 // loop_pre_header
                  _
                $region68: #{simple_cnn3_forward.7} parent=65 // loop_header
                  %s970 = sphi 0, %s972
                  %p971 = scmp.ge.s32.totalorder %s970, %s967
                  %s975 = sphi 0, %s1006
                  %s976 = sphi %s873, %s1009
                  %s977 = sphi %s884, %s1010
                $region69: #{simple_cnn3_forward.7} parent=65 // loop_header_branch
                  %974 = sbr.rel (%p971) target = $region73
                $region70: #{simple_cnn3_forward.7} parent=65 // loop_body
                  %v978 = vld [vmem:[%s976] sm:%s966]
                  %979 = vst [vmem:[%s977] sm:%s966] %v978
                  %v980 = vld [vmem:[%s976 + $0x4] sm:%s966]
                  %981 = vst [vmem:[%s977 + $0x4] sm:%s966] %v980
                  %v982 = vld [vmem:[%s976 + $0x8] sm:%s966]
                  %983 = vst [vmem:[%s977 + $0x8] sm:%s966] %v982
                  %v984 = vld [vmem:[%s976 + $0xc] sm:%s966]
                  %985 = vst [vmem:[%s977 + $0xc] sm:%s966] %v984
                  %v986 = vld [vmem:[%s976 + $0x10] sm:%s966]
                  %987 = vst [vmem:[%s977 + $0x10] sm:%s966] %v986
                  %v988 = vld [vmem:[%s976 + $0x14] sm:%s966]
                  %989 = vst [vmem:[%s977 + $0x14] sm:%s966] %v988
                  %v990 = vld [vmem:[%s976 + $0x18] sm:%s966]
                  %991 = vst [vmem:[%s977 + $0x18] sm:%s966] %v990
                  %v992 = vld [vmem:[%s976 + $0x1c] sm:%s966]
                  %993 = vst [vmem:[%s977 + $0x1c] sm:%s966] %v992
                  %v994 = vld [vmem:[%s976 + $0x20] sm:%s966]
                  %995 = vst [vmem:[%s977 + $0x20] sm:%s966] %v994
                  %v996 = vld [vmem:[%s976 + $0x24] sm:%s966]
                  %997 = vst [vmem:[%s977 + $0x24] sm:%s966] %v996
                  %v998 = vld [vmem:[%s976 + $0x28] sm:%s966]
                  %999 = vst [vmem:[%s977 + $0x28] sm:%s966] %v998
                  %v1000 = vld [vmem:[%s976 + $0x2c] sm:%s966]
                  %1001 = vst [vmem:[%s977 + $0x2c] sm:%s966] %v1000
                  %v1002 = vld [vmem:[%s976 + $0x30] sm:%s966]
                  %1003 = vst [vmem:[%s977 + $0x30] sm:%s966] %v1002
                  %s1004 = sadd.s32 1, %s975
                  %p1005 = scmp.ge.s32.totalorder %s1004, %s967
                  %s1006 = scalar_select %p1005, 0, %s1004
                  %s1007 = smul.u32 %s1006, 52
                  %s1008 = smul.u32 %s1006, 52
                  %s1009 = scalar_lea.vmem %s873, %s1007 [#allocation2]
                  %s1010 = scalar_lea.vmem %s884, %s1008
                $region71: #{simple_cnn3_forward.7} parent=65 // loop_footer
                  %s972 = sadd.s32 %s970, 1
                $region72: #{simple_cnn3_forward.7} parent=65 // loop_footer_branch
                  %969 = sbr.rel target = $region68
                $region73: #{simple_cnn3_forward.7} parent=65 // loop_exit
                  _
                %s1011 = sdiv.u32.pop %s880, 13
                %s1012 = srem.u32.pop %s880, 13
                %s1013 = smul.u32 %s1011, 13
                %s1014 = smul.u32 4, %s1013
                %s1015 = scalar_lea.vmem %s873, %s1014 [#allocation2]
                %s1016 = smul.u32 4, %s1013
                %s1017 = scalar_lea.vmem %s884, %s1016
                // While loop
                $region74: #{simple_cnn3_forward.7} parent=65 // loop_pre_header
                  _
                $region75: #{simple_cnn3_forward.7} parent=65 // loop_header
                  %s1019 = sphi 0, %s1021
                  %p1020 = scmp.ge.s32.totalorder %s1019, %s1012
                  %s1024 = sphi 0, %s1031
                  %s1025 = sphi %s1015, %s1034
                  %s1026 = sphi %s1017, %s1035
                $region76: #{simple_cnn3_forward.7} parent=65 // loop_header_branch
                  %1023 = sbr.rel (%p1020) target = $region80
                $region77: #{simple_cnn3_forward.7} parent=65 // loop_body
                  %v1027 = vld [vmem:[%s1025] sm:%s966]
                  %1028 = vst [vmem:[%s1026] sm:%s966] %v1027
                  %s1029 = sadd.s32 1, %s1024
                  %p1030 = scmp.ge.s32.totalorder %s1029, %s1012
                  %s1031 = scalar_select %p1030, 0, %s1029
                  %s1032 = smul.u32 %s1031, 4
                  %s1033 = smul.u32 %s1031, 4
                  %s1034 = scalar_lea.vmem %s1015, %s1032 [#allocation2]
                  %s1035 = scalar_lea.vmem %s1017, %s1033
                $region78: #{simple_cnn3_forward.7} parent=65 // loop_footer
                  %s1021 = sadd.s32 %s1019, 1
                $region79: #{simple_cnn3_forward.7} parent=65 // loop_footer_branch
                  %1018 = sbr.rel target = $region75
                $region80: #{simple_cnn3_forward.7} parent=65 // loop_exit
                  _
              $region66: #{simple_cnn3_forward.7} parent=43 // pred_fallthru
                _
            $region44: #{simple_cnn3_forward.7} parent=39 // pred_fallthru
              _
            // Predicated region
            $region45: #{simple_cnn3_forward.7} parent=39 // pred_check
              _
            $region46: #{simple_cnn3_forward.7} parent=39 // pred_check_branch
              %891 = sbr.rel (0) target = $region48
            $region47: #{simple_cnn3_forward.7} parent=39 // pred_region
              %s893 = ssub.s32 16, 1
              %s894 = sdiv.u32.pop %s880, 13
              %s895 = srem.u32.pop %s880, 13
              // While loop
              $region49: #{simple_cnn3_forward.7} parent=47 // loop_pre_header
                _
              $region50: #{simple_cnn3_forward.7} parent=47 // loop_header
                %s897 = sphi 0, %s899
                %p898 = scmp.ge.s32.totalorder %s897, %s894
                %s902 = sphi 0, %s933
                %s903 = sphi %s873, %s936
                %s904 = sphi %s884, %s937
              $region51: #{simple_cnn3_forward.7} parent=47 // loop_header_branch
                %901 = sbr.rel (%p898) target = $region55
              $region52: #{simple_cnn3_forward.7} parent=47 // loop_body
                %v905 = vld [vmem:[%s903] sm:%s893]
                %906 = vst [vmem:[%s904] sm:%s893] %v905
                %v907 = vld [vmem:[%s903 + $0x4] sm:%s893]
                %908 = vst [vmem:[%s904 + $0x4] sm:%s893] %v907
                %v909 = vld [vmem:[%s903 + $0x8] sm:%s893]
                %910 = vst [vmem:[%s904 + $0x8] sm:%s893] %v909
                %v911 = vld [vmem:[%s903 + $0xc] sm:%s893]
                %912 = vst [vmem:[%s904 + $0xc] sm:%s893] %v911
                %v913 = vld [vmem:[%s903 + $0x10] sm:%s893]
                %914 = vst [vmem:[%s904 + $0x10] sm:%s893] %v913
                %v915 = vld [vmem:[%s903 + $0x14] sm:%s893]
                %916 = vst [vmem:[%s904 + $0x14] sm:%s893] %v915
                %v917 = vld [vmem:[%s903 + $0x18] sm:%s893]
                %918 = vst [vmem:[%s904 + $0x18] sm:%s893] %v917
                %v919 = vld [vmem:[%s903 + $0x1c] sm:%s893]
                %920 = vst [vmem:[%s904 + $0x1c] sm:%s893] %v919
                %v921 = vld [vmem:[%s903 + $0x20] sm:%s893]
                %922 = vst [vmem:[%s904 + $0x20] sm:%s893] %v921
                %v923 = vld [vmem:[%s903 + $0x24] sm:%s893]
                %924 = vst [vmem:[%s904 + $0x24] sm:%s893] %v923
                %v925 = vld [vmem:[%s903 + $0x28] sm:%s893]
                %926 = vst [vmem:[%s904 + $0x28] sm:%s893] %v925
                %v927 = vld [vmem:[%s903 + $0x2c] sm:%s893]
                %928 = vst [vmem:[%s904 + $0x2c] sm:%s893] %v927
                %v929 = vld [vmem:[%s903 + $0x30] sm:%s893]
                %930 = vst [vmem:[%s904 + $0x30] sm:%s893] %v929
                %s931 = sadd.s32 1, %s902
                %p932 = scmp.ge.s32.totalorder %s931, %s894
                %s933 = scalar_select %p932, 0, %s931
                %s934 = smul.u32 %s933, 52
                %s935 = smul.u32 %s933, 52
                %s936 = scalar_lea.vmem %s873, %s934 [#allocation2]
                %s937 = scalar_lea.vmem %s884, %s935
              $region53: #{simple_cnn3_forward.7} parent=47 // loop_footer
                %s899 = sadd.s32 %s897, 1
              $region54: #{simple_cnn3_forward.7} parent=47 // loop_footer_branch
                %896 = sbr.rel target = $region50
              $region55: #{simple_cnn3_forward.7} parent=47 // loop_exit
                _
              %s938 = sdiv.u32.pop %s880, 13
              %s939 = srem.u32.pop %s880, 13
              %s940 = smul.u32 %s938, 13
              %s941 = smul.u32 4, %s940
              %s942 = scalar_lea.vmem %s873, %s941 [#allocation2]
              %s943 = smul.u32 4, %s940
              %s944 = scalar_lea.vmem %s884, %s943
              // While loop
              $region56: #{simple_cnn3_forward.7} parent=47 // loop_pre_header
                _
              $region57: #{simple_cnn3_forward.7} parent=47 // loop_header
                %s946 = sphi 0, %s948
                %p947 = scmp.ge.s32.totalorder %s946, %s939
                %s951 = sphi 0, %s958
                %s952 = sphi %s942, %s961
                %s953 = sphi %s944, %s962
              $region58: #{simple_cnn3_forward.7} parent=47 // loop_header_branch
                %950 = sbr.rel (%p947) target = $region62
              $region59: #{simple_cnn3_forward.7} parent=47 // loop_body
                %v954 = vld [vmem:[%s952] sm:%s893]
                %955 = vst [vmem:[%s953] sm:%s893] %v954
                %s956 = sadd.s32 1, %s951
                %p957 = scmp.ge.s32.totalorder %s956, %s939
                %s958 = scalar_select %p957, 0, %s956
                %s959 = smul.u32 %s958, 4
                %s960 = smul.u32 %s958, 4
                %s961 = scalar_lea.vmem %s942, %s959 [#allocation2]
                %s962 = scalar_lea.vmem %s944, %s960
              $region60: #{simple_cnn3_forward.7} parent=47 // loop_footer
                %s948 = sadd.s32 %s946, 1
              $region61: #{simple_cnn3_forward.7} parent=47 // loop_footer_branch
                %945 = sbr.rel target = $region57
              $region62: #{simple_cnn3_forward.7} parent=47 // loop_exit
                _
            $region48: #{simple_cnn3_forward.7} parent=39 // pred_fallthru
              _
          $region40: #{simple_cnn3_forward.7} parent=35 // pred_fallthru
            _
          %1036 = vnop
        $region36: #{simple_cnn3_forward.7} parent=31 // pred_fallthru
          _
      $region32: #{simple_cnn3_forward.7} parent=5 // pred_fallthru
        _
      %p1037 = scmp.le.s32.totalorder 2, %s9
      // Predicated region
      $region81: #{simple_cnn3_forward.7} parent=5 // pred_check
        %p1038 = pneg %p1037
      $region82: #{simple_cnn3_forward.7} parent=5 // pred_check_branch
        %1040 = sbr.rel (%p1038) target = $region84
      $region83: #{simple_cnn3_forward.7} parent=5 // pred_region
        %s1041 = ssub.s32 %s9, 2
        // Predicated region
        $region85: #{simple_cnn3_forward.7} parent=83 // pred_check
          %p1042 = pneg %p106
        $region86: #{simple_cnn3_forward.7} parent=83 // pred_check_branch
          %1044 = sbr.rel (%p1042) target = $region88
        $region87: #{simple_cnn3_forward.7} parent=83 // pred_region
          %s1045 = sand.u32 %s91, 1
          %s1046 = sand.u32 %s91, 1
          %s1047 = smul.addr %s1046, 52
          %s1048 = scalar_lea.vmem [#allocation2], %s1047
        $region88: #{simple_cnn3_forward.7} parent=83 // pred_fallthru
          _
      $region84: #{simple_cnn3_forward.7} parent=5 // pred_fallthru
        _
    $region6: #{simple_cnn3_forward.7} parent=1 // loop_footer
      %s13 = sadd.s32 1, %s9
    $region7: #{simple_cnn3_forward.7} parent=1 // loop_footer_branch
      %8 = sbr.rel target = $region3
    $region8: #{simple_cnn3_forward.7} parent=1 // loop_exit
      _

// kernel: simple_cnn3_forward.9
$region0: #{simple_cnn3_forward.9}
  #allocation0 [shape = 'u32[]', space=smem, size = 0x4, offset = 0x4, fixed_abs, tag = 'smem constant byte address 0x4 - core index']
  #allocation1 [shape = 'u32[144,128]{1,0:T(1,128)}', space=vmem, size = 0x12000, scoped, tag = 'internal scratch']
  %s0 = inlined_call_operand.vmem [shape: bf16[2,1200], index: 0, kind: input, shape index: {}]
  %s1 = inlined_call_operand.vmem [shape: bf16[1200,128], index: 1, kind: input, shape index: {}]
  %s2 = inlined_call_operand.vmem [shape: f32[1,128], index: 2, kind: input, shape index: {}]
  %s3 = inlined_call_operand.vmem [shape: bf16[128,128], index: 3, kind: input, shape index: {}]
  %s4 = inlined_call_operand.vmem [shape: f32[1,128], index: 4, kind: input, shape index: {}]
  %s5 = inlined_call_operand.vmem [shape: bf16[128,128], index: 5, kind: input, shape index: {}]
  %s6 = inlined_call_operand.vmem [shape: f32[1,128], index: 6, kind: input, shape index: {}]
  %s7 = inlined_call_operand.hbm [shape: f32[2,128], index: 7, kind: output, shape index: {}]
  %s8 = sld [smem:[#allocation0]]
  $region38: #{simple_cnn3_forward.9} parent=0
    _
  %s10 = ssub.s32 1, %s8
  %s11 = scalar_select 0, %s10, %s8
  $region1: #{simple_cnn3_forward.9} parent=0
    #allocation2 [shape = 'u8[1024]{0}', space=vmem, size = 0x400, scoped, tag = 'output window, operand 0, single buffered']
    #allocation3 [shape = 's32[1]{0}', space=sflag, size = 0x4, scoped, tag = 'scoped memory for simple_cnn3_forward.9']
    %12 = vsyncpa [#allocation3], 0
    // Predicated region
    $region2: #{simple_cnn3_forward.9} parent=1 // pred_check
      _
    $region3: #{simple_cnn3_forward.9} parent=1 // pred_check_branch
      %14 = sbr.rel (0) target = $region5
    $region4: #{simple_cnn3_forward.9} parent=1 // pred_region
      _
    $region5: #{simple_cnn3_forward.9} parent=1 // pred_fallthru
      _
    // Predicated region
    $region6: #{simple_cnn3_forward.9} parent=1 // pred_check
      _
    $region7: #{simple_cnn3_forward.9} parent=1 // pred_check_branch
      %16 = sbr.rel (0) target = $region9
    $region8: #{simple_cnn3_forward.9} parent=1 // pred_region
      _
    $region9: #{simple_cnn3_forward.9} parent=1 // pred_fallthru
      _
    // Predicated region
    $region10: #{simple_cnn3_forward.9} parent=1 // pred_check
      _
    $region11: #{simple_cnn3_forward.9} parent=1 // pred_check_branch
      %18 = sbr.rel (0) target = $region13
    $region12: #{simple_cnn3_forward.9} parent=1 // pred_region
      _
    $region13: #{simple_cnn3_forward.9} parent=1 // pred_fallthru
      _
    // Predicated region
    $region14: #{simple_cnn3_forward.9} parent=1 // pred_check
      _
    $region15: #{simple_cnn3_forward.9} parent=1 // pred_check_branch
      %20 = sbr.rel (0) target = $region17
    $region16: #{simple_cnn3_forward.9} parent=1 // pred_region
      _
    $region17: #{simple_cnn3_forward.9} parent=1 // pred_fallthru
      _
    // Predicated region
    $region18: #{simple_cnn3_forward.9} parent=1 // pred_check
      _
    $region19: #{simple_cnn3_forward.9} parent=1 // pred_check_branch
      %22 = sbr.rel (0) target = $region21
    $region20: #{simple_cnn3_forward.9} parent=1 // pred_region
      _
    $region21: #{simple_cnn3_forward.9} parent=1 // pred_fallthru
      _
    // Predicated region
    $region22: #{simple_cnn3_forward.9} parent=1 // pred_check
      _
    $region23: #{simple_cnn3_forward.9} parent=1 // pred_check_branch
      %24 = sbr.rel (0) target = $region25
    $region24: #{simple_cnn3_forward.9} parent=1 // pred_region
      _
    $region25: #{simple_cnn3_forward.9} parent=1 // pred_fallthru
      _
    // Predicated region
    $region26: #{simple_cnn3_forward.9} parent=1 // pred_check
      _
    $region27: #{simple_cnn3_forward.9} parent=1 // pred_check_branch
      %26 = sbr.rel (0) target = $region29
    $region28: #{simple_cnn3_forward.9} parent=1 // pred_region
      _
    $region29: #{simple_cnn3_forward.9} parent=1 // pred_fallthru
      _
    %v28 = vld [vmem:[%s0] sm:$0xff]
    %v29 = vld [vmem:[%s0 + $0x8] sm:$0x3]
    %v30 = vld [vmem:[%s1] sm:$0xf]
    %v31 = vld [vmem:[%s1 + $0x4] sm:$0xf]
    %v32 = vld [vmem:[%s1 + $0x8] sm:$0xf]
    %v33 = vld [vmem:[%s1 + $0xc] sm:$0xf]
    %v34 = vld [vmem:[%s1 + $0x10] sm:$0xf]
    %v35 = vld [vmem:[%s1 + $0x14] sm:$0xf]
    %v36 = vld [vmem:[%s1 + $0x18] sm:$0xf]
    %v37 = vld [vmem:[%s1 + $0x1c] sm:$0xf]
    %v38 = vld [vmem:[%s1 + $0x20] sm:$0xf]
    %v39 = vld [vmem:[%s1 + $0x24] sm:$0xf]
    %v40 = vld [vmem:[%s1 + $0x28] sm:$0xf]
    %v41 = vld [vmem:[%s1 + $0x2c] sm:$0xf]
    %v42 = vld [vmem:[%s1 + $0x30] sm:$0xf]
    %v43 = vld [vmem:[%s1 + $0x34] sm:$0xf]
    %v44 = vld [vmem:[%s1 + $0x38] sm:$0xf]
    %v45 = vld [vmem:[%s1 + $0x3c] sm:$0xf]
    %v46 = vld [vmem:[%s1 + $0x40] sm:$0xf]
    %v47 = vld [vmem:[%s1 + $0x44] sm:$0xf]
    %v48 = vld [vmem:[%s1 + $0x48] sm:$0xf]
    %v49 = vld [vmem:[%s1 + $0x4c] sm:$0xf]
    %v50 = vld [vmem:[%s1 + $0x50] sm:$0xf]
    %v51 = vld [vmem:[%s1 + $0x54] sm:$0xf]
    %v52 = vld [vmem:[%s1 + $0x58] sm:$0xf]
    %v53 = vld [vmem:[%s1 + $0x5c] sm:$0xf]
    %v54 = vld [vmem:[%s1 + $0x60] sm:$0xf]
    %v55 = vld [vmem:[%s1 + $0x64] sm:$0xf]
    %v56 = vld [vmem:[%s1 + $0x68] sm:$0xf]
    %v57 = vld [vmem:[%s1 + $0x6c] sm:$0xf]
    %v58 = vld [vmem:[%s1 + $0x70] sm:$0xf]
    %v59 = vld [vmem:[%s1 + $0x74] sm:$0xf]
    %v60 = vld [vmem:[%s1 + $0x78] sm:$0xf]
    %v61 = vld [vmem:[%s1 + $0x7c] sm:$0xf]
    %v62 = vld [vmem:[%s1 + $0x80] sm:$0xf]
    %v63 = vld [vmem:[%s1 + $0x84] sm:$0xf]
    %v64 = vld [vmem:[%s1 + $0x88] sm:$0xf]
    %v65 = vld [vmem:[%s1 + $0x8c] sm:$0xf]
    %v66 = vld [vmem:[%s1 + $0x90] sm:$0xf]
    %v67 = vld [vmem:[%s1 + $0x94] sm:$0xf]
    %v68 = vld [vmem:[%s1 + $0x98] sm:$0xf]
    %v69 = vld [vmem:[%s1 + $0x9c] sm:$0xf]
    %v70 = vld [vmem:[%s1 + $0xa0] sm:$0xf]
    %v71 = vld [vmem:[%s1 + $0xa4] sm:$0xf]
    %v72 = vld [vmem:[%s1 + $0xa8] sm:$0xf]
    %v73 = vld [vmem:[%s1 + $0xac] sm:$0xf]
    %v74 = vld [vmem:[%s1 + $0xb0] sm:$0xf]
    %v75 = vld [vmem:[%s1 + $0xb4] sm:$0xf]
    %v76 = vld [vmem:[%s1 + $0xb8] sm:$0xf]
    %v77 = vld [vmem:[%s1 + $0xbc] sm:$0xf]
    %v78 = vld [vmem:[%s1 + $0xc0] sm:$0xf]
    %v79 = vld [vmem:[%s1 + $0xc4] sm:$0xf]
    %v80 = vld [vmem:[%s1 + $0xc8] sm:$0xf]
    %v81 = vld [vmem:[%s1 + $0xcc] sm:$0xf]
    %v82 = vld [vmem:[%s1 + $0xd0] sm:$0xf]
    %v83 = vld [vmem:[%s1 + $0xd4] sm:$0xf]
    %v84 = vld [vmem:[%s1 + $0xd8] sm:$0xf]
    %v85 = vld [vmem:[%s1 + $0xdc] sm:$0xf]
    %v86 = vld [vmem:[%s1 + $0xe0] sm:$0xf]
    %v87 = vld [vmem:[%s1 + $0xe4] sm:$0xf]
    %v88 = vld [vmem:[%s1 + $0xe8] sm:$0xf]
    %v89 = vld [vmem:[%s1 + $0xec] sm:$0xf]
    %v90 = vld [vmem:[%s1 + $0xf0] sm:$0xf]
    %v91 = vld [vmem:[%s1 + $0xf4] sm:$0xf]
    %v92 = vld [vmem:[%s1 + $0xf8] sm:$0xf]
    %v93 = vld [vmem:[%s1 + $0xfc] sm:$0xf]
    %v94 = vld [vmem:[%s1 + $0x100] sm:$0xf]
    %v95 = vld [vmem:[%s1 + $0x104] sm:$0xf]
    %v96 = vld [vmem:[%s1 + $0x108] sm:$0xf]
    %v97 = vld [vmem:[%s1 + $0x10c] sm:$0xf]
    %v98 = vld [vmem:[%s1 + $0x110] sm:$0xf]
    %v99 = vld [vmem:[%s1 + $0x114] sm:$0xf]
    %v100 = vld [vmem:[%s1 + $0x118] sm:$0xf]
    %v101 = vld [vmem:[%s1 + $0x11c] sm:$0xf]
    %v102 = vld [vmem:[%s1 + $0x120] sm:$0xf]
    %v103 = vld [vmem:[%s1 + $0x124] sm:$0xf]
    %v104 = vld [vmem:[%s1 + $0x128] sm:$0xf]
    %v105 = vld [vmem:[%s1 + $0x12c] sm:$0xf]
    %v106 = vld [vmem:[%s1 + $0x130] sm:$0xf]
    %v107 = vld [vmem:[%s1 + $0x134] sm:$0xf]
    %v108 = vld [vmem:[%s1 + $0x138] sm:$0xf]
    %v109 = vld [vmem:[%s1 + $0x13c] sm:$0xf]
    %v110 = vld [vmem:[%s1 + $0x140] sm:$0xf]
    %v111 = vld [vmem:[%s1 + $0x144] sm:$0xf]
    %v112 = vld [vmem:[%s1 + $0x148] sm:$0xf]
    %v113 = vld [vmem:[%s1 + $0x14c] sm:$0xf]
    %v114 = vld [vmem:[%s1 + $0x150] sm:$0xf]
    %v115 = vld [vmem:[%s1 + $0x154] sm:$0xf]
    %v116 = vld [vmem:[%s1 + $0x158] sm:$0xf]
    %v117 = vld [vmem:[%s1 + $0x15c] sm:$0xf]
    %v118 = vld [vmem:[%s1 + $0x160] sm:$0xf]
    %v119 = vld [vmem:[%s1 + $0x164] sm:$0xf]
    %v120 = vld [vmem:[%s1 + $0x168] sm:$0xf]
    %v121 = vld [vmem:[%s1 + $0x16c] sm:$0xf]
    %v122 = vld [vmem:[%s1 + $0x170] sm:$0xf]
    %v123 = vld [vmem:[%s1 + $0x174] sm:$0xf]
    %v124 = vld [vmem:[%s1 + $0x178] sm:$0xf]
    %v125 = vld [vmem:[%s1 + $0x17c] sm:$0xf]
    %v126 = vld [vmem:[%s1 + $0x180] sm:$0xf]
    %v127 = vld [vmem:[%s1 + $0x184] sm:$0xf]
    %v128 = vld [vmem:[%s1 + $0x188] sm:$0xf]
    %v129 = vld [vmem:[%s1 + $0x18c] sm:$0xf]
    %v130 = vld [vmem:[%s1 + $0x190] sm:$0xf]
    %v131 = vld [vmem:[%s1 + $0x194] sm:$0xf]
    %v132 = vld [vmem:[%s1 + $0x198] sm:$0xf]
    %v133 = vld [vmem:[%s1 + $0x19c] sm:$0xf]
    %v134 = vld [vmem:[%s1 + $0x1a0] sm:$0xf]
    %v135 = vld [vmem:[%s1 + $0x1a4] sm:$0xf]
    %v136 = vld [vmem:[%s1 + $0x1a8] sm:$0xf]
    %v137 = vld [vmem:[%s1 + $0x1ac] sm:$0xf]
    %v138 = vld [vmem:[%s1 + $0x1b0] sm:$0xf]
    %v139 = vld [vmem:[%s1 + $0x1b4] sm:$0xf]
    %v140 = vld [vmem:[%s1 + $0x1b8] sm:$0xf]
    %v141 = vld [vmem:[%s1 + $0x1bc] sm:$0xf]
    %v142 = vld [vmem:[%s1 + $0x1c0] sm:$0xf]
    %v143 = vld [vmem:[%s1 + $0x1c4] sm:$0xf]
    %v144 = vld [vmem:[%s1 + $0x1c8] sm:$0xf]
    %v145 = vld [vmem:[%s1 + $0x1cc] sm:$0xf]
    %v146 = vld [vmem:[%s1 + $0x1d0] sm:$0xf]
    %v147 = vld [vmem:[%s1 + $0x1d4] sm:$0xf]
    %v148 = vld [vmem:[%s1 + $0x1d8] sm:$0xf]
    %v149 = vld [vmem:[%s1 + $0x1dc] sm:$0xf]
    %v150 = vld [vmem:[%s1 + $0x1e0] sm:$0xf]
    %v151 = vld [vmem:[%s1 + $0x1e4] sm:$0xf]
    %v152 = vld [vmem:[%s1 + $0x1e8] sm:$0xf]
    %v153 = vld [vmem:[%s1 + $0x1ec] sm:$0xf]
    %v154 = vld [vmem:[%s1 + $0x1f0] sm:$0xf]
    %v155 = vld [vmem:[%s1 + $0x1f4] sm:$0xf]
    %v156 = vld [vmem:[%s1 + $0x1f8] sm:$0xf]
    %v157 = vld [vmem:[%s1 + $0x1fc] sm:$0xf]
    %v158 = vld [vmem:[%s1 + $0x200] sm:$0xf]
    %v159 = vld [vmem:[%s1 + $0x204] sm:$0xf]
    %v160 = vld [vmem:[%s1 + $0x208] sm:$0xf]
    %v161 = vld [vmem:[%s1 + $0x20c] sm:$0xf]
    %v162 = vld [vmem:[%s1 + $0x210] sm:$0xf]
    %v163 = vld [vmem:[%s1 + $0x214] sm:$0xf]
    %v164 = vld [vmem:[%s1 + $0x218] sm:$0xf]
    %v165 = vld [vmem:[%s1 + $0x21c] sm:$0xf]
    %v166 = vld [vmem:[%s1 + $0x220] sm:$0xf]
    %v167 = vld [vmem:[%s1 + $0x224] sm:$0xf]
    %v168 = vld [vmem:[%s1 + $0x228] sm:$0xf]
    %v169 = vld [vmem:[%s1 + $0x22c] sm:$0xf]
    %v170 = vld [vmem:[%s1 + $0x230] sm:$0xf]
    %v171 = vld [vmem:[%s1 + $0x234] sm:$0xf]
    %v172 = vld [vmem:[%s1 + $0x238] sm:$0xf]
    %v173 = vld [vmem:[%s1 + $0x23c] sm:$0xf]
    %v174 = vld [vmem:[%s1 + $0x240] sm:$0xf]
    %v175 = vld [vmem:[%s1 + $0x244] sm:$0xf]
    %v176 = vld [vmem:[%s1 + $0x248] sm:$0xf]
    %v177 = vld [vmem:[%s1 + $0x24c] sm:$0xf]
    %v178 = vld [vmem:[%s1 + $0x250] sm:$0xf]
    %v179 = vld [vmem:[%s1 + $0x254] sm:$0xf]
    %v180 = vld [vmem:[%s2] sm:$0x1]
    %v182 = vlaneseq
    %v183 = vshrl.u32 %v182, 7
    %v184 = vsub.s32 0, %v183
    %v185 = vrot.slane %v180, %v184
    %v189 = vcombine.high %v28, %v28
    %v191 = vunpack.c.l.s4 1966171168
    %v192 = vunpack.c.0.s8 %v191
    %v193 = vlaneseq
    %v194 = vshrl.u32 %v193, 7
    %v195 = vsub.s32 %v192, %v194
    %v196 = vrot.slane %v28, %v195
    %v198 = vunpack.c.l.s4 1966171168
    %v199 = vunpack.c.0.s8 %v198
    %v200 = vlaneseq
    %v201 = vshrl.u32 %v200, 7
    %v202 = vsub.s32 %v199, %v201
    %v203 = vrot.slane %v189, %v202
    %v204 = vcombine.high %v196, %v196
    %v205 = vcombine.high %v203, %v203
    %v207 = vunpack.c.l.s4 1966171168
    %v208 = vunpack.c.0.s8 %v207
    %v209 = vlaneseq
    %v210 = vshrl.u32 %v209, 7
    %v211 = vsub.s32 %v208, %v210
    %v212 = vrot.slane %v196, %v211
    %v214 = vunpack.c.l.s4 1966171168
    %v215 = vunpack.c.0.s8 %v214
    %v216 = vlaneseq
    %v217 = vshrl.u32 %v216, 7
    %v218 = vsub.s32 %v215, %v217
    %v219 = vrot.slane %v203, %v218
    %v221 = vunpack.c.l.s4 1966171168
    %v222 = vunpack.c.0.s8 %v221
    %v223 = vlaneseq
    %v224 = vshrl.u32 %v223, 7
    %v225 = vsub.s32 %v222, %v224
    %v226 = vrot.slane %v204, %v225
    %v228 = vunpack.c.l.s4 1966171168
    %v229 = vunpack.c.0.s8 %v228
    %v230 = vlaneseq
    %v231 = vshrl.u32 %v230, 7
    %v232 = vsub.s32 %v229, %v231
    %v233 = vrot.slane %v205, %v232
    %v234 = vcombine.high %v212, %v212
    %v235 = vcombine.high %v219, %v219
    %v236 = vcombine.high %v226, %v226
    %v237 = vcombine.high %v233, %v233
    %v239 = vunpack.c.l.s4 1966171168
    %v240 = vunpack.c.0.s8 %v239
    %v241 = vlaneseq
    %v242 = vshrl.u32 %v241, 7
    %v243 = vsub.s32 %v240, %v242
    %v244 = vrot.slane %v29, %v243
    %v245 = vcombine.high %v244, %v244
    %v247 = vunpack.c.l.s4 1966171168
    %v248 = vunpack.c.0.s8 %v247
    %v249 = vlaneseq
    %v250 = vshrl.u32 %v249, 7
    %v251 = vsub.s32 %v248, %v250
    %v252 = vrot.slane %v244, %v251
    %v254 = vunpack.c.l.s4 1966171168
    %v255 = vunpack.c.0.s8 %v254
    %v256 = vlaneseq
    %v257 = vshrl.u32 %v256, 7
    %v258 = vsub.s32 %v255, %v257
    %v259 = vrot.slane %v245, %v258
    %v419 = vunpack.c.l.b16 %v30
    %v420 = vunpack.c.l.b16 %v31
    %v421 = vunpack.c.l.b16 %v32
    %v422 = vunpack.c.l.b16 %v33
    %v423 = vunpack.c.l.b16 %v34
    %v424 = vunpack.c.l.b16 %v35
    %v425 = vunpack.c.l.b16 %v36
    %v426 = vunpack.c.l.b16 %v37
    %v427 = vunpack.c.l.b16 %v38
    %v428 = vunpack.c.l.b16 %v39
    %v429 = vunpack.c.l.b16 %v40
    %v430 = vunpack.c.l.b16 %v41
    %v431 = vunpack.c.l.b16 %v42
    %v432 = vunpack.c.l.b16 %v43
    %v433 = vunpack.c.l.b16 %v44
    %v434 = vunpack.c.l.b16 %v45
    %v435 = vunpack.c.l.b16 %v46
    %v436 = vunpack.c.l.b16 %v47
    %v437 = vunpack.c.l.b16 %v48
    %v438 = vunpack.c.l.b16 %v49
    %v439 = vunpack.c.l.b16 %v50
    %v440 = vunpack.c.l.b16 %v51
    %v441 = vunpack.c.l.b16 %v52
    %v442 = vunpack.c.l.b16 %v53
    %v443 = vunpack.c.l.b16 %v54
    %v444 = vunpack.c.l.b16 %v55
    %v445 = vunpack.c.l.b16 %v56
    %v446 = vunpack.c.l.b16 %v57
    %v447 = vunpack.c.l.b16 %v58
    %v448 = vunpack.c.l.b16 %v59
    %v449 = vunpack.c.l.b16 %v60
    %v450 = vunpack.c.l.b16 %v61
    %v451 = vunpack.c.l.b16 %v62
    %v452 = vunpack.c.l.b16 %v63
    %v453 = vunpack.c.l.b16 %v64
    %v454 = vunpack.c.l.b16 %v65
    %v455 = vunpack.c.l.b16 %v66
    %v456 = vunpack.c.l.b16 %v67
    %v457 = vunpack.c.l.b16 %v68
    %v458 = vunpack.c.l.b16 %v69
    %v459 = vunpack.c.l.b16 %v70
    %v460 = vunpack.c.l.b16 %v71
    %v461 = vunpack.c.l.b16 %v72
    %v462 = vunpack.c.l.b16 %v73
    %v463 = vunpack.c.l.b16 %v74
    %v464 = vunpack.c.l.b16 %v75
    %v465 = vunpack.c.l.b16 %v76
    %v466 = vunpack.c.l.b16 %v77
    %v467 = vunpack.c.l.b16 %v78
    %v468 = vunpack.c.l.b16 %v79
    %v469 = vunpack.c.l.b16 %v80
    %v470 = vunpack.c.l.b16 %v81
    %v471 = vunpack.c.l.b16 %v82
    %v472 = vunpack.c.l.b16 %v83
    %v473 = vunpack.c.l.b16 %v84
    %v474 = vunpack.c.l.b16 %v85
    %v475 = vunpack.c.l.b16 %v86
    %v476 = vunpack.c.l.b16 %v87
    %v477 = vunpack.c.l.b16 %v88
    %v478 = vunpack.c.l.b16 %v89
    %v479 = vunpack.c.l.b16 %v90
    %v480 = vunpack.c.l.b16 %v91
    %v481 = vunpack.c.l.b16 %v92
    %v482 = vunpack.c.l.b16 %v93
    %v483 = vunpack.c.l.b16 %v94
    %v484 = vunpack.c.l.b16 %v95
    %v485 = vunpack.c.l.b16 %v96
    %v486 = vunpack.c.l.b16 %v97
    %v487 = vunpack.c.l.b16 %v98
    %v488 = vunpack.c.l.b16 %v99
    %v489 = vunpack.c.l.b16 %v100
    %v490 = vunpack.c.l.b16 %v101
    %v491 = vunpack.c.l.b16 %v102
    %v492 = vunpack.c.l.b16 %v103
    %v493 = vunpack.c.l.b16 %v104
    %v494 = vunpack.c.l.b16 %v105
    %v495 = vunpack.c.l.b16 %v106
    %v496 = vunpack.c.l.b16 %v107
    %v497 = vunpack.c.l.b16 %v108
    %v498 = vunpack.c.l.b16 %v109
    %v499 = vunpack.c.l.b16 %v110
    %v500 = vunpack.c.l.b16 %v111
    %v501 = vunpack.c.l.b16 %v112
    %v502 = vunpack.c.l.b16 %v113
    %v503 = vunpack.c.l.b16 %v114
    %v504 = vunpack.c.l.b16 %v115
    %v505 = vunpack.c.l.b16 %v116
    %v506 = vunpack.c.l.b16 %v117
    %v507 = vunpack.c.l.b16 %v118
    %v508 = vunpack.c.l.b16 %v119
    %v509 = vunpack.c.l.b16 %v120
    %v510 = vunpack.c.l.b16 %v121
    %v511 = vunpack.c.l.b16 %v122
    %v512 = vunpack.c.l.b16 %v123
    %v513 = vunpack.c.l.b16 %v124
    %v514 = vunpack.c.l.b16 %v125
    %v515 = vunpack.c.l.b16 %v126
    %v516 = vunpack.c.l.b16 %v127
    %v517 = vunpack.c.l.b16 %v128
    %v518 = vunpack.c.l.b16 %v129
    %v519 = vunpack.c.l.b16 %v130
    %v520 = vunpack.c.l.b16 %v131
    %v521 = vunpack.c.l.b16 %v132
    %v522 = vunpack.c.l.b16 %v133
    %v523 = vunpack.c.l.b16 %v134
    %v524 = vunpack.c.l.b16 %v135
    %v525 = vunpack.c.l.b16 %v136
    %v526 = vunpack.c.l.b16 %v137
    %v527 = vunpack.c.l.b16 %v138
    %v528 = vunpack.c.l.b16 %v139
    %v529 = vunpack.c.l.b16 %v140
    %v530 = vunpack.c.l.b16 %v141
    %v531 = vunpack.c.l.b16 %v142
    %v532 = vunpack.c.l.b16 %v143
    %v533 = vunpack.c.l.b16 %v144
    %v534 = vunpack.c.l.b16 %v145
    %v535 = vunpack.c.l.b16 %v146
    %v536 = vunpack.c.l.b16 %v147
    %v537 = vunpack.c.l.b16 %v148
    %v538 = vunpack.c.l.b16 %v149
    %v539 = vunpack.c.l.b16 %v150
    %v540 = vunpack.c.l.b16 %v151
    %v541 = vunpack.c.l.b16 %v152
    %v542 = vunpack.c.l.b16 %v153
    %v543 = vunpack.c.l.b16 %v154
    %v544 = vunpack.c.l.b16 %v155
    %v545 = vunpack.c.l.b16 %v156
    %v546 = vunpack.c.l.b16 %v157
    %v547 = vunpack.c.l.b16 %v158
    %v548 = vunpack.c.l.b16 %v159
    %v549 = vunpack.c.l.b16 %v160
    %v550 = vunpack.c.l.b16 %v161
    %v551 = vunpack.c.l.b16 %v162
    %v552 = vunpack.c.l.b16 %v163
    %v553 = vunpack.c.l.b16 %v164
    %v554 = vunpack.c.l.b16 %v165
    %v555 = vunpack.c.l.b16 %v166
    %v556 = vunpack.c.l.b16 %v167
    %v557 = vunpack.c.l.b16 %v168
    %v558 = vunpack.c.l.b16 %v169
    %v559 = vunpack.c.l.b16 %v170
    %v560 = vunpack.c.l.b16 %v171
    %v561 = vunpack.c.l.b16 %v172
    %v562 = vunpack.c.l.b16 %v173
    %v563 = vunpack.c.l.b16 %v174
    %v564 = vunpack.c.l.b16 %v175
    %v565 = vunpack.c.l.b16 %v176
    %v566 = vunpack.c.l.b16 %v177
    %v567 = vunpack.c.l.b16 %v178
    %v568 = vunpack.c.l.b16 %v179
    %v569 = vpack.c.b16 %v420, %v419
    %v570 = vpack.c.b16 %v422, %v421
    %v571 = vpack.c.b16 %v424, %v423
    %v572 = vpack.c.b16 %v426, %v425
    %v573 = vpack.c.b16 %v428, %v427
    %v574 = vpack.c.b16 %v430, %v429
    %v575 = vpack.c.b16 %v432, %v431
    %v576 = vpack.c.b16 %v434, %v433
    %v577 = vpack.c.b16 %v436, %v435
    %v578 = vpack.c.b16 %v438, %v437
    %v579 = vpack.c.b16 %v440, %v439
    %v580 = vpack.c.b16 %v442, %v441
    %v581 = vpack.c.b16 %v444, %v443
    %v582 = vpack.c.b16 %v446, %v445
    %v583 = vpack.c.b16 %v448, %v447
    %v584 = vpack.c.b16 %v450, %v449
    %v585 = vpack.c.b16 %v452, %v451
    %v586 = vpack.c.b16 %v454, %v453
    %v587 = vpack.c.b16 %v456, %v455
    %v588 = vpack.c.b16 %v458, %v457
    %v589 = vpack.c.b16 %v460, %v459
    %v590 = vpack.c.b16 %v462, %v461
    %v591 = vpack.c.b16 %v464, %v463
    %v592 = vpack.c.b16 %v466, %v465
    %v593 = vpack.c.b16 %v468, %v467
    %v594 = vpack.c.b16 %v470, %v469
    %v595 = vpack.c.b16 %v472, %v471
    %v596 = vpack.c.b16 %v474, %v473
    %v597 = vpack.c.b16 %v476, %v475
    %v598 = vpack.c.b16 %v478, %v477
    %v599 = vpack.c.b16 %v480, %v479
    %v600 = vpack.c.b16 %v482, %v481
    %v601 = vpack.c.b16 %v484, %v483
    %v602 = vpack.c.b16 %v486, %v485
    %v603 = vpack.c.b16 %v488, %v487
    %v604 = vpack.c.b16 %v490, %v489
    %v605 = vpack.c.b16 %v492, %v491
    %v606 = vpack.c.b16 %v494, %v493
    %v607 = vpack.c.b16 %v496, %v495
    %v608 = vpack.c.b16 %v498, %v497
    %v609 = vpack.c.b16 %v500, %v499
    %v610 = vpack.c.b16 %v502, %v501
    %v611 = vpack.c.b16 %v504, %v503
    %v612 = vpack.c.b16 %v506, %v505
    %v613 = vpack.c.b16 %v508, %v507
    %v614 = vpack.c.b16 %v510, %v509
    %v615 = vpack.c.b16 %v512, %v511
    %v616 = vpack.c.b16 %v514, %v513
    %v617 = vpack.c.b16 %v516, %v515
    %v618 = vpack.c.b16 %v518, %v517
    %v619 = vpack.c.b16 %v520, %v519
    %v620 = vpack.c.b16 %v522, %v521
    %v621 = vpack.c.b16 %v524, %v523
    %v622 = vpack.c.b16 %v526, %v525
    %v623 = vpack.c.b16 %v528, %v527
    %v624 = vpack.c.b16 %v530, %v529
    %v625 = vpack.c.b16 %v532, %v531
    %v626 = vpack.c.b16 %v534, %v533
    %v627 = vpack.c.b16 %v536, %v535
    %v628 = vpack.c.b16 %v538, %v537
    %v629 = vpack.c.b16 %v540, %v539
    %v630 = vpack.c.b16 %v542, %v541
    %v631 = vpack.c.b16 %v544, %v543
    %v632 = vpack.c.b16 %v546, %v545
    %v633 = vpack.c.b16 %v548, %v547
    %v634 = vpack.c.b16 %v550, %v549
    %v635 = vpack.c.b16 %v552, %v551
    %v636 = vpack.c.b16 %v554, %v553
    %v637 = vpack.c.b16 %v556, %v555
    %v638 = vpack.c.b16 %v558, %v557
    %v639 = vpack.c.b16 %v560, %v559
    %v640 = vpack.c.b16 %v562, %v561
    %v641 = vpack.c.b16 %v564, %v563
    %v642 = vpack.c.b16 %v566, %v565
    %v643 = vpack.c.b16 %v568, %v567
    %vm719 = vcmask 392192
    %v721 = vsel %vm719, %v259, 0
    %723 = vmatprep.subr.bf16.mxu0 0
    %724 = vmatpush1.bf16.msra.mxu0 %v576
    %725 = vmatprep.subr.bf16.mxu0 0
    %726 = vmatpush1.bf16.msra.mxu0 %v575
    %727 = vmatprep.subr.bf16.mxu0 0
    %728 = vmatpush1.bf16.msra.mxu0 %v574
    %729 = vmatprep.subr.bf16.mxu0 0
    %730 = vmatpush1.bf16.msra.mxu0 %v573
    %731 = vmatprep.subr.bf16.mxu0 0
    %732 = vmatpush1.bf16.msra.mxu0 %v572
    %733 = vmatprep.subr.bf16.mxu0 0
    %734 = vmatpush1.bf16.msra.mxu0 %v571
    %735 = vmatprep.subr.bf16.mxu0 0
    %736 = vmatpush1.bf16.msra.mxu0 %v570
    %737 = vmatprep.subr.bf16.mxu0 0
    %738 = vmatpush1.bf16.msra.mxu0 %v569
    %739 = vmatprep.subr.bf16.mxu0 0
    %740 = vmatpush2.bf16.msra.mxu0 %v584
    %741 = vmatprep.subr.bf16.mxu0 0
    %742 = vmatpush2.bf16.msra.mxu0 %v583
    %743 = vmatprep.subr.bf16.mxu0 0
    %744 = vmatpush2.bf16.msra.mxu0 %v582
    %745 = vmatprep.subr.bf16.mxu0 0
    %746 = vmatpush2.bf16.msra.mxu0 %v581
    %747 = vmatprep.subr.bf16.mxu0 0
    %748 = vmatpush2.bf16.msra.mxu0 %v580
    %749 = vmatprep.subr.bf16.mxu0 0
    %750 = vmatpush2.bf16.msra.mxu0 %v579
    %751 = vmatprep.subr.bf16.mxu0 0
    %752 = vmatpush2.bf16.msra.mxu0 %v578
    %753 = vmatprep.subr.bf16.mxu0 0
    %754 = vmatpush2.bf16.msra.mxu0 %v577
    %755 = vmatprep.mubr.bf16.mxu0 %v226
    %756 = vmatmul.mubr.bf16.gmra.mxu0 %v212
    %v757 = vpop.f32.mrf.mxu0
    %v758 = vadd.f32 %v185, %v757
    %v759 = vpop.f32.mrf.mxu0
    %v760 = vpop.f32.mrf.mxu0
    %v761 = vpop.f32.mrf.mxu0
    %762 = vdwg.mxu0
    %763 = vmatprep.subr.bf16.mxu0 0
    %764 = vmatpush1.bf16.msra.mxu0 %v592
    %765 = vmatprep.subr.bf16.mxu0 0
    %766 = vmatpush1.bf16.msra.mxu0 %v591
    %767 = vmatprep.subr.bf16.mxu0 0
    %768 = vmatpush1.bf16.msra.mxu0 %v590
    %769 = vmatprep.subr.bf16.mxu0 0
    %770 = vmatpush1.bf16.msra.mxu0 %v589
    %771 = vmatprep.subr.bf16.mxu0 0
    %772 = vmatpush1.bf16.msra.mxu0 %v588
    %773 = vmatprep.subr.bf16.mxu0 0
    %774 = vmatpush1.bf16.msra.mxu0 %v587
    %775 = vmatprep.subr.bf16.mxu0 0
    %776 = vmatpush1.bf16.msra.mxu0 %v586
    %777 = vmatprep.subr.bf16.mxu0 0
    %778 = vmatpush1.bf16.msra.mxu0 %v585
    %779 = vmatprep.subr.bf16.mxu0 0
    %780 = vmatpush2.bf16.msra.mxu0 %v600
    %781 = vmatprep.subr.bf16.mxu0 0
    %782 = vmatpush2.bf16.msra.mxu0 %v599
    %783 = vmatprep.subr.bf16.mxu0 0
    %784 = vmatpush2.bf16.msra.mxu0 %v598
    %785 = vmatprep.subr.bf16.mxu0 0
    %786 = vmatpush2.bf16.msra.mxu0 %v597
    %787 = vmatprep.subr.bf16.mxu0 0
    %788 = vmatpush2.bf16.msra.mxu0 %v596
    %789 = vmatprep.subr.bf16.mxu0 0
    %790 = vmatpush2.bf16.msra.mxu0 %v595
    %791 = vmatprep.subr.bf16.mxu0 0
    %792 = vmatpush2.bf16.msra.mxu0 %v594
    %793 = vmatprep.subr.bf16.mxu0 0
    %794 = vmatpush2.bf16.msra.mxu0 %v593
    %795 = vmatprep.mubr.bf16.mxu0 %v236
    %796 = vmatmul.mubr.bf16.gmra.mxu0 %v234
    %v797 = vpop.f32.mrf.mxu0
    %v798 = vadd.f32 %v758, %v797
    %v799 = vpop.f32.mrf.mxu0
    %v800 = vpop.f32.mrf.mxu0
    %v801 = vpop.f32.mrf.mxu0
    %802 = vdwg.mxu0
    %803 = vmatprep.subr.bf16.mxu0 0
    %804 = vmatpush1.bf16.msra.mxu0 %v608
    %805 = vmatprep.subr.bf16.mxu0 0
    %806 = vmatpush1.bf16.msra.mxu0 %v607
    %807 = vmatprep.subr.bf16.mxu0 0
    %808 = vmatpush1.bf16.msra.mxu0 %v606
    %809 = vmatprep.subr.bf16.mxu0 0
    %810 = vmatpush1.bf16.msra.mxu0 %v605
    %811 = vmatprep.subr.bf16.mxu0 0
    %812 = vmatpush1.bf16.msra.mxu0 %v604
    %813 = vmatprep.subr.bf16.mxu0 0
    %814 = vmatpush1.bf16.msra.mxu0 %v603
    %815 = vmatprep.subr.bf16.mxu0 0
    %816 = vmatpush1.bf16.msra.mxu0 %v602
    %817 = vmatprep.subr.bf16.mxu0 0
    %818 = vmatpush1.bf16.msra.mxu0 %v601
    %819 = vmatprep.subr.bf16.mxu0 0
    %820 = vmatpush2.bf16.msra.mxu0 %v616
    %821 = vmatprep.subr.bf16.mxu0 0
    %822 = vmatpush2.bf16.msra.mxu0 %v615
    %823 = vmatprep.subr.bf16.mxu0 0
    %824 = vmatpush2.bf16.msra.mxu0 %v614
    %825 = vmatprep.subr.bf16.mxu0 0
    %826 = vmatpush2.bf16.msra.mxu0 %v613
    %827 = vmatprep.subr.bf16.mxu0 0
    %828 = vmatpush2.bf16.msra.mxu0 %v612
    %829 = vmatprep.subr.bf16.mxu0 0
    %830 = vmatpush2.bf16.msra.mxu0 %v611
    %831 = vmatprep.subr.bf16.mxu0 0
    %832 = vmatpush2.bf16.msra.mxu0 %v610
    %833 = vmatprep.subr.bf16.mxu0 0
    %834 = vmatpush2.bf16.msra.mxu0 %v609
    %835 = vmatprep.mubr.bf16.mxu0 %v233
    %836 = vmatmul.mubr.bf16.gmra.mxu0 %v219
    %v837 = vpop.f32.mrf.mxu0
    %v838 = vadd.f32 %v798, %v837
    %v839 = vpop.f32.mrf.mxu0
    %v840 = vpop.f32.mrf.mxu0
    %v841 = vpop.f32.mrf.mxu0
    %842 = vdwg.mxu0
    %843 = vmatprep.subr.bf16.mxu0 0
    %844 = vmatpush1.bf16.msra.mxu0 %v624
    %845 = vmatprep.subr.bf16.mxu0 0
    %846 = vmatpush1.bf16.msra.mxu0 %v623
    %847 = vmatprep.subr.bf16.mxu0 0
    %848 = vmatpush1.bf16.msra.mxu0 %v622
    %849 = vmatprep.subr.bf16.mxu0 0
    %850 = vmatpush1.bf16.msra.mxu0 %v621
    %851 = vmatprep.subr.bf16.mxu0 0
    %852 = vmatpush1.bf16.msra.mxu0 %v620
    %853 = vmatprep.subr.bf16.mxu0 0
    %854 = vmatpush1.bf16.msra.mxu0 %v619
    %855 = vmatprep.subr.bf16.mxu0 0
    %856 = vmatpush1.bf16.msra.mxu0 %v618
    %857 = vmatprep.subr.bf16.mxu0 0
    %858 = vmatpush1.bf16.msra.mxu0 %v617
    %859 = vmatprep.subr.bf16.mxu0 0
    %860 = vmatpush2.bf16.msra.mxu0 %v632
    %861 = vmatprep.subr.bf16.mxu0 0
    %862 = vmatpush2.bf16.msra.mxu0 %v631
    %863 = vmatprep.subr.bf16.mxu0 0
    %864 = vmatpush2.bf16.msra.mxu0 %v630
    %865 = vmatprep.subr.bf16.mxu0 0
    %866 = vmatpush2.bf16.msra.mxu0 %v629
    %867 = vmatprep.subr.bf16.mxu0 0
    %868 = vmatpush2.bf16.msra.mxu0 %v628
    %869 = vmatprep.subr.bf16.mxu0 0
    %870 = vmatpush2.bf16.msra.mxu0 %v627
    %871 = vmatprep.subr.bf16.mxu0 0
    %872 = vmatpush2.bf16.msra.mxu0 %v626
    %873 = vmatprep.subr.bf16.mxu0 0
    %874 = vmatpush2.bf16.msra.mxu0 %v625
    %875 = vmatprep.mubr.bf16.mxu0 %v237
    %876 = vmatmul.mubr.bf16.gmra.mxu0 %v235
    %v877 = vpop.f32.mrf.mxu0
    %v878 = vadd.f32 %v838, %v877
    %v879 = vpop.f32.mrf.mxu0
    %v880 = vpop.f32.mrf.mxu0
    %v881 = vpop.f32.mrf.mxu0
    %882 = vdwg.mxu0
    %883 = vmatprep.subr.bf16.mxu0 0
    %884 = vmatpush1.bf16.msra.mxu0 %v640
    %885 = vmatprep.subr.bf16.mxu0 0
    %886 = vmatpush1.bf16.msra.mxu0 %v639
    %887 = vmatprep.subr.bf16.mxu0 0
    %888 = vmatpush1.bf16.msra.mxu0 %v638
    %889 = vmatprep.subr.bf16.mxu0 0
    %890 = vmatpush1.bf16.msra.mxu0 %v637
    %891 = vmatprep.subr.bf16.mxu0 0
    %892 = vmatpush1.bf16.msra.mxu0 %v636
    %893 = vmatprep.subr.bf16.mxu0 0
    %894 = vmatpush1.bf16.msra.mxu0 %v635
    %895 = vmatprep.subr.bf16.mxu0 0
    %896 = vmatpush1.bf16.msra.mxu0 %v634
    %897 = vmatprep.subr.bf16.mxu0 0
    %898 = vmatpush1.bf16.msra.mxu0 %v633
    %899 = vmatprep.subr.bf16.mxu0 0
    %900 = vmatpush2.bf16.msra.mxu0 0
    %901 = vmatprep.subr.bf16.mxu0 0
    %902 = vmatpush2.bf16.msra.mxu0 0
    %903 = vmatprep.subr.bf16.mxu0 0
    %904 = vmatpush2.bf16.msra.mxu0 0
    %905 = vmatprep.subr.bf16.mxu0 0
    %906 = vmatpush2.bf16.msra.mxu0 0
    %907 = vmatprep.subr.bf16.mxu0 0
    %908 = vmatpush2.bf16.msra.mxu0 0
    %909 = vmatprep.subr.bf16.mxu0 0
    %910 = vmatpush2.bf16.msra.mxu0 %v643
    %911 = vmatprep.subr.bf16.mxu0 0
    %912 = vmatpush2.bf16.msra.mxu0 %v642
    %913 = vmatprep.subr.bf16.mxu0 0
    %914 = vmatpush2.bf16.msra.mxu0 %v641
    %915 = vmatprep.mubr.bf16.mxu0 %v721
    %916 = vmatmul.mubr.bf16.gmra.mxu0 %v252
    %v917 = vpop.f32.mrf.mxu0
    %v918 = vadd.f32 %v878, %v917
    %v919 = vpop.f32.mrf.mxu0
    %v920 = vpop.f32.mrf.mxu0
    %v921 = vpop.f32.mrf.mxu0
    %922 = vdwg.mxu0
    %v923 = vmax.f32 %v918, 0.0
    %v924 = vpack.c.bf16 %v923, %v923
    %v925 = vld [vmem:[%s3] sm:$0xf]
    %v926 = vld [vmem:[%s3 + $0x4] sm:$0xf]
    %v927 = vld [vmem:[%s3 + $0x8] sm:$0xf]
    %v928 = vld [vmem:[%s3 + $0xc] sm:$0xf]
    %v929 = vld [vmem:[%s3 + $0x10] sm:$0xf]
    %v930 = vld [vmem:[%s3 + $0x14] sm:$0xf]
    %v931 = vld [vmem:[%s3 + $0x18] sm:$0xf]
    %v932 = vld [vmem:[%s3 + $0x1c] sm:$0xf]
    %v933 = vld [vmem:[%s3 + $0x20] sm:$0xf]
    %v934 = vld [vmem:[%s3 + $0x24] sm:$0xf]
    %v935 = vld [vmem:[%s3 + $0x28] sm:$0xf]
    %v936 = vld [vmem:[%s3 + $0x2c] sm:$0xf]
    %v937 = vld [vmem:[%s3 + $0x30] sm:$0xf]
    %v938 = vld [vmem:[%s3 + $0x34] sm:$0xf]
    %v939 = vld [vmem:[%s3 + $0x38] sm:$0xf]
    %v940 = vld [vmem:[%s3 + $0x3c] sm:$0xf]
    %v941 = vld [vmem:[%s4] sm:$0x1]
    %v943 = vlaneseq
    %v944 = vshrl.u32 %v943, 7
    %v945 = vsub.s32 0, %v944
    %v946 = vrot.slane %v941, %v945
    %v964 = vunpack.c.l.b16 %v925
    %v965 = vunpack.c.l.b16 %v926
    %v966 = vunpack.c.l.b16 %v927
    %v967 = vunpack.c.l.b16 %v928
    %v968 = vunpack.c.l.b16 %v929
    %v969 = vunpack.c.l.b16 %v930
    %v970 = vunpack.c.l.b16 %v931
    %v971 = vunpack.c.l.b16 %v932
    %v972 = vunpack.c.l.b16 %v933
    %v973 = vunpack.c.l.b16 %v934
    %v974 = vunpack.c.l.b16 %v935
    %v975 = vunpack.c.l.b16 %v936
    %v976 = vunpack.c.l.b16 %v937
    %v977 = vunpack.c.l.b16 %v938
    %v978 = vunpack.c.l.b16 %v939
    %v979 = vunpack.c.l.b16 %v940
    %v980 = vpack.c.b16 %v965, %v964
    %v981 = vpack.c.b16 %v967, %v966
    %v982 = vpack.c.b16 %v969, %v968
    %v983 = vpack.c.b16 %v971, %v970
    %v984 = vpack.c.b16 %v973, %v972
    %v985 = vpack.c.b16 %v975, %v974
    %v986 = vpack.c.b16 %v977, %v976
    %v987 = vpack.c.b16 %v979, %v978
    %996 = vmatprep.subr.bf16.mxu0 0
    %997 = vmatpush1.bf16.msra.mxu0 %v987
    %998 = vmatprep.subr.bf16.mxu0 0
    %999 = vmatpush1.bf16.msra.mxu0 %v986
    %1000 = vmatprep.subr.bf16.mxu0 0
    %1001 = vmatpush1.bf16.msra.mxu0 %v985
    %1002 = vmatprep.subr.bf16.mxu0 0
    %1003 = vmatpush1.bf16.msra.mxu0 %v984
    %1004 = vmatprep.subr.bf16.mxu0 0
    %1005 = vmatpush1.bf16.msra.mxu0 %v983
    %1006 = vmatprep.subr.bf16.mxu0 0
    %1007 = vmatpush1.bf16.msra.mxu0 %v982
    %1008 = vmatprep.subr.bf16.mxu0 0
    %1009 = vmatpush1.bf16.msra.mxu0 %v981
    %1010 = vmatprep.subr.bf16.mxu0 0
    %1011 = vmatpush1.bf16.msra.mxu0 %v980
    %1012 = vmatprep.subr.bf16.mxu0 0
    %1013 = vmatpush2.bf16.msra.mxu0 0
    %1014 = vmatprep.subr.bf16.mxu0 0
    %1015 = vmatpush2.bf16.msra.mxu0 0
    %1016 = vmatprep.subr.bf16.mxu0 0
    %1017 = vmatpush2.bf16.msra.mxu0 0
    %1018 = vmatprep.subr.bf16.mxu0 0
    %1019 = vmatpush2.bf16.msra.mxu0 0
    %1020 = vmatprep.subr.bf16.mxu0 0
    %1021 = vmatpush2.bf16.msra.mxu0 0
    %1022 = vmatprep.subr.bf16.mxu0 0
    %1023 = vmatpush2.bf16.msra.mxu0 0
    %1024 = vmatprep.subr.bf16.mxu0 0
    %1025 = vmatpush2.bf16.msra.mxu0 0
    %1026 = vmatprep.subr.bf16.mxu0 0
    %1027 = vmatpush2.bf16.msra.mxu0 0
    %1028 = vmatprep.mubr.bf16.mxu0 0
    %1029 = vmatmul.mubr.bf16.gmra.mxu0 %v924
    %v1030 = vpop.f32.mrf.mxu0
    %v1031 = vadd.f32 %v946, %v1030
    %v1032 = vpop.f32.mrf.mxu0
    %v1033 = vpop.f32.mrf.mxu0
    %v1034 = vpop.f32.mrf.mxu0
    %1035 = vdwg.mxu0
    %v1036 = vmax.f32 %v1031, 0.0
    %v1037 = vpack.c.bf16 %v1036, %v1036
    %v1038 = vld [vmem:[%s5] sm:$0xf]
    %v1039 = vld [vmem:[%s5 + $0x4] sm:$0xf]
    %v1040 = vld [vmem:[%s5 + $0x8] sm:$0xf]
    %v1041 = vld [vmem:[%s5 + $0xc] sm:$0xf]
    %v1042 = vld [vmem:[%s5 + $0x10] sm:$0xf]
    %v1043 = vld [vmem:[%s5 + $0x14] sm:$0xf]
    %v1044 = vld [vmem:[%s5 + $0x18] sm:$0xf]
    %v1045 = vld [vmem:[%s5 + $0x1c] sm:$0xf]
    %v1046 = vld [vmem:[%s5 + $0x20] sm:$0xf]
    %v1047 = vld [vmem:[%s5 + $0x24] sm:$0xf]
    %v1048 = vld [vmem:[%s5 + $0x28] sm:$0xf]
    %v1049 = vld [vmem:[%s5 + $0x2c] sm:$0xf]
    %v1050 = vld [vmem:[%s5 + $0x30] sm:$0xf]
    %v1051 = vld [vmem:[%s5 + $0x34] sm:$0xf]
    %v1052 = vld [vmem:[%s5 + $0x38] sm:$0xf]
    %v1053 = vld [vmem:[%s5 + $0x3c] sm:$0xf]
    %v1054 = vld [vmem:[%s6] sm:$0x1]
    %v1056 = vlaneseq
    %v1057 = vshrl.u32 %v1056, 7
    %v1058 = vsub.s32 0, %v1057
    %v1059 = vrot.slane %v1054, %v1058
    %v1077 = vunpack.c.l.b16 %v1038
    %v1078 = vunpack.c.l.b16 %v1039
    %v1079 = vunpack.c.l.b16 %v1040
    %v1080 = vunpack.c.l.b16 %v1041
    %v1081 = vunpack.c.l.b16 %v1042
    %v1082 = vunpack.c.l.b16 %v1043
    %v1083 = vunpack.c.l.b16 %v1044
    %v1084 = vunpack.c.l.b16 %v1045
    %v1085 = vunpack.c.l.b16 %v1046
    %v1086 = vunpack.c.l.b16 %v1047
    %v1087 = vunpack.c.l.b16 %v1048
    %v1088 = vunpack.c.l.b16 %v1049
    %v1089 = vunpack.c.l.b16 %v1050
    %v1090 = vunpack.c.l.b16 %v1051
    %v1091 = vunpack.c.l.b16 %v1052
    %v1092 = vunpack.c.l.b16 %v1053
    %v1093 = vpack.c.b16 %v1078, %v1077
    %v1094 = vpack.c.b16 %v1080, %v1079
    %v1095 = vpack.c.b16 %v1082, %v1081
    %v1096 = vpack.c.b16 %v1084, %v1083
    %v1097 = vpack.c.b16 %v1086, %v1085
    %v1098 = vpack.c.b16 %v1088, %v1087
    %v1099 = vpack.c.b16 %v1090, %v1089
    %v1100 = vpack.c.b16 %v1092, %v1091
    %1109 = vmatprep.subr.bf16.mxu0 0
    %1110 = vmatpush1.bf16.msra.mxu0 %v1100
    %1111 = vmatprep.subr.bf16.mxu0 0
    %1112 = vmatpush1.bf16.msra.mxu0 %v1099
    %1113 = vmatprep.subr.bf16.mxu0 0
    %1114 = vmatpush1.bf16.msra.mxu0 %v1098
    %1115 = vmatprep.subr.bf16.mxu0 0
    %1116 = vmatpush1.bf16.msra.mxu0 %v1097
    %1117 = vmatprep.subr.bf16.mxu0 0
    %1118 = vmatpush1.bf16.msra.mxu0 %v1096
    %1119 = vmatprep.subr.bf16.mxu0 0
    %1120 = vmatpush1.bf16.msra.mxu0 %v1095
    %1121 = vmatprep.subr.bf16.mxu0 0
    %1122 = vmatpush1.bf16.msra.mxu0 %v1094
    %1123 = vmatprep.subr.bf16.mxu0 0
    %1124 = vmatpush1.bf16.msra.mxu0 %v1093
    %1125 = vmatprep.subr.bf16.mxu0 0
    %1126 = vmatpush2.bf16.msra.mxu0 0
    %1127 = vmatprep.subr.bf16.mxu0 0
    %1128 = vmatpush2.bf16.msra.mxu0 0
    %1129 = vmatprep.subr.bf16.mxu0 0
    %1130 = vmatpush2.bf16.msra.mxu0 0
    %1131 = vmatprep.subr.bf16.mxu0 0
    %1132 = vmatpush2.bf16.msra.mxu0 0
    %1133 = vmatprep.subr.bf16.mxu0 0
    %1134 = vmatpush2.bf16.msra.mxu0 0
    %1135 = vmatprep.subr.bf16.mxu0 0
    %1136 = vmatpush2.bf16.msra.mxu0 0
    %1137 = vmatprep.subr.bf16.mxu0 0
    %1138 = vmatpush2.bf16.msra.mxu0 0
    %1139 = vmatprep.subr.bf16.mxu0 0
    %1140 = vmatpush2.bf16.msra.mxu0 0
    %1141 = vmatprep.mubr.bf16.mxu0 0
    %1142 = vmatmul.mubr.bf16.gmra.mxu0 %v1037
    %v1143 = vpop.f32.mrf.mxu0
    %v1144 = vadd.f32 %v1059, %v1143
    %v1145 = vpop.f32.mrf.mxu0
    %v1146 = vpop.f32.mrf.mxu0
    %v1147 = vpop.f32.mrf.mxu0
    %1148 = vdwg.mxu0
    %1149 = vst [vmem:[#allocation2] sm:$0x3] %v1144
    // Predicated region
    $region30: #{simple_cnn3_forward.9} parent=1 // pred_check
      _
    $region31: #{simple_cnn3_forward.9} parent=1 // pred_check_branch
      %1151 = sbr.rel (0) target = $region33
    $region32: #{simple_cnn3_forward.9} parent=1 // pred_region
      %s1153 = ssub.s32 32, 32
      %1154 = vsyncadd [#allocation3], %s1153
      %s1156 = sshll.u32 [#allocation2], 4
      %s1157 = int_to_ptr.vmem [resolvable:$true] %s1156
      %1159 = dma.vmem_to_hbm [thread:$0]  %s1157, 32, %s7, [#allocation3]
    $region33: #{simple_cnn3_forward.9} parent=1 // pred_fallthru
      _
    // Predicated region
    $region34: #{simple_cnn3_forward.9} parent=1 // pred_check
      _
    $region35: #{simple_cnn3_forward.9} parent=1 // pred_check_branch
      %1161 = sbr.rel (0) target = $region37
    $region36: #{simple_cnn3_forward.9} parent=1 // pred_region
      %1162 = dma.done [#allocation3], 32
    $region37: #{simple_cnn3_forward.9} parent=1 // pred_fallthru
      _
    %1163 = vsyncpa [#allocation3], 1

</llo_original>
